<compile_context>
chip_gen: v7x
topology: tpu7x:2x2x1
jax: 0.10.0
libtpu: 0.0.40
codegen_flags: <defaults>
</compile_context>

<pallas_src>
import functools

import jax
import jax.numpy as jnp
from jax.experimental import pallas as pl
from jax.experimental.pallas import tpu as pltpu


# ------------------------------ Pallas kernel --------------------------------

def _make_resblock_kernel(*, k, stride, TH, Wo, Cin, C, has_proj):
    """Fused ResBlock body: conv1+BN+ReLU, shortcut, conv2+BN, add, ReLU.

    Each grid step (n, t) produces TH output rows of image n.  conv1 is
    evaluated on TH+2 rows (1-row halo) so conv2 never needs y1 from a
    neighbouring tile; the zero-padded y1 tile lives in a small VMEM scratch
    and never round-trips HBM.
    """
    s = stride
    ntap = k * k
    M1 = (TH + 2) * Wo          # conv1 rows (incl. halo)
    M2 = TH * Wo                # conv2 / output rows
    f32 = jnp.float32

    def kernel(*refs):
        if has_proj:
            (x_ref, w1_ref, s1_ref, b1_ref, wsc_ref, ssc_ref, bsc_ref,
             w2_ref, s2_ref, b2_ref, o_ref, t1_ref, t2_ref, y1p_ref) = refs
        else:
            (x_ref, w1_ref, s1_ref, b1_ref,
             w2_ref, s2_ref, b2_ref, o_ref, t1_ref, t2_ref, y1p_ref) = refs

        t = pl.program_id(1)
        nt = pl.num_programs(1)
        r0 = t * TH                                   # first output row of tile

        # ---- conv1 tap matrix: 9 ref-window loads -> (TH+2, Wo, 9*Cin) ------
        # Ref-window loads (not value slices) lower to plain vlds and avoid
        # VMEM copies / vreg pressure from slicing a fully-loaded block.
        for kh in range(k):
            for kw in range(k):
                p = (kh % s) * s + (kw % s)           # stride phase
                dh, dw = kh // s, kw // s             # offset inside the phase
                tap = kh * k + kw
                t1_ref[:, :, tap * Cin:(tap + 1) * Cin] = (
                    x_ref[p, pl.ds(r0 + dh, TH + 2), dw:dw + Wo, :])

        t1 = t1_ref[...].reshape(M1, ntap * Cin)

        # ---- conv1 + folded BN + ReLU (one deep-K MXU matmul) ---------------
        acc1 = jnp.dot(t1, w1_ref[...], preferred_element_type=f32)
        y1 = jnp.maximum(acc1 * s1_ref[...] + b1_ref[...], 0.0)

        # ---- stage the padded y1 tile in VMEM; zero only the border ---------
        y1p_ref[:, 1:Wo + 1, :] = y1.reshape(TH + 2, Wo, C).astype(y1p_ref.dtype)
        zcol = jnp.zeros((TH + 2, 1, C), y1p_ref.dtype)
        y1p_ref[:, 0:1, :] = zcol                     # left pad column
        y1p_ref[:, Wo + 1:Wo + 2, :] = zcol           # right pad column

        @pl.when(t == 0)                              # top image border
        def _():
            y1p_ref[0:1, :, :] = jnp.zeros((1, Wo + 2, C), y1p_ref.dtype)

        @pl.when(t == nt - 1)                         # bottom image border
        def _():
            y1p_ref[TH + 1:TH + 2, :, :] = jnp.zeros((1, Wo + 2, C),
                                                     y1p_ref.dtype)

        # ---- shortcut / residual for this tile's TH rows ---------------------
        if has_proj:
            # 3x3 projection shortcut (as in the reference module) reuses the
            # same tap matrix (middle TH rows) as a second matmul -> no
            # lane-offset slicing of a fused accumulator.
            t1_mid = t1_ref[1:TH + 1, :, :].reshape(M2, ntap * Cin)
            res = (jnp.dot(t1_mid, wsc_ref[...], preferred_element_type=f32)
                   * ssc_ref[...] + bsc_ref[...])
        else:
            # Identity shortcut: centre window of the padded input.
            # TODO(synk): residual comes from the bf16 input copy; PyTorch adds
            # the f32 activation (tiny precision delta).
            res = x_ref[0, pl.ds(r0 + 2, TH), 1:Wo + 1, :]
            res = res.reshape(M2, C).astype(f32)

        # ---- conv2 tap matrix from the staged y1 -----------------------------
        for kh in range(k):
            for kw in range(k):
                tap = kh * k + kw
                t2_ref[:, :, tap * C:(tap + 1) * C] = (
                    y1p_ref[kh:kh + TH, kw:kw + Wo, :])
        t2 = t2_ref[...].reshape(M2, ntap * C)

        # ---- conv2 + folded BN + residual add + final ReLU -------------------
        acc2 = jnp.dot(t2, w2_ref[...], preferred_element_type=f32)
        out = jnp.maximum(acc2 * s2_ref[...] + b2_ref[...] + res, 0.0)
        o_ref[0] = out.reshape(TH, Wo, C).astype(o_ref.dtype)

    return kernel


# ------------------------------ JAX wrapper ----------------------------------

def _pick_row_tile(ho, max_rows=8):
    """Largest divisor of `ho` that is <= max_rows (keeps Ho % TH == 0)."""
    th = 1
    for d in range(1, ho + 1):
        if ho % d == 0 and d <= max_rows:
            th = d
    return th


def res_block_forward(params, x_nchw, *, stride, has_proj, row_tile=None):
    """NCHW f32 in, NCHW f32 out — semantics of ResBlock.forward (eval-mode BN)."""
    k = 3
    s = stride
    # TODO(synk): keeping activations NHWC end-to-end would drop these boundary
    # transposes (extra HBM passes outside the kernel).
    x = jnp.transpose(x_nchw, (0, 2, 3, 1)).astype(jnp.bfloat16)   # NCHW -> NHWC
    N, H, W, Cin = x.shape
    C = params["scale1"].shape[-1]
    if not has_proj:
        assert Cin == C and s == 1, "identity shortcut needs Cin==Cout, stride 1"

    pad = k // 2
    Ho = (H + 2 * pad - k) // s + 1
    Wo = (W + 2 * pad - k) // s + 1
    Hn = Ho + (k - 1) // s            # rows per stride phase
    Wn = Wo + (k - 1) // s            # cols per stride phase
    # Zero-pad + split into s*s stride phases so every in-kernel tap window is
    # an unstrided contiguous slice (total bytes ~= input size, no im2col).
    xp = jnp.pad(x, ((0, 0), (pad, s * Hn - H - pad),
                     (pad, s * Wn - W - pad), (0, 0)))
    if s == 1:
        ph = xp[:, None]
    else:
        ph = jnp.stack([xp[:, a::s, b::s, :] for a in range(s) for b in range(s)],
                       axis=1)
    # One extra zero row above/below every phase so the halo'd conv1 window of
    # the first/last row tile stays in bounds without per-row predication.
    ph = jnp.pad(ph, ((0, 0), (0, 0), (1, 1), (0, 0), (0, 0)))
    P, Hn2 = ph.shape[1], ph.shape[2]
    ph = ph.reshape(N * P, Hn2, Wn, Cin)

    TH = row_tile if row_tile is not None else _pick_row_tile(Ho)
    n_tiles = Ho // TH

    kernel = _make_resblock_kernel(k=k, stride=s, TH=TH, Wo=Wo, Cin=Cin, C=C,
                                   has_proj=has_proj)

    args = [ph, params["w1"], params["scale1"], params["bias1"]]
    if has_proj:
        args += [params["w_sc"], params["scale_sc"], params["bias_sc"]]
    args += [params["w2"], params["scale2"], params["bias2"]]

    def _resident(a):                 # small param arrays, resident every step
        zeros = (0,) * a.ndim
        return pl.BlockSpec(a.shape, lambda n, t: zeros)

    in_specs = ([pl.BlockSpec((P, Hn2, Wn, Cin), lambda n, t: (n, 0, 0, 0))]
                + [_resident(a) for a in args[1:]])

    flops = 2 * N * Ho * Wo * k * k * (Cin * C * (2 if has_proj else 1) + C * C)
    bytes_accessed = int(ph.size * ph.dtype.itemsize
                         + N * Ho * Wo * C * 2
                         + sum(a.size * a.dtype.itemsize for a in args[1:]))

    out = pl.pallas_call(
        kernel,
        out_shape=jax.ShapeDtypeStruct((N, Ho, Wo, C), jnp.bfloat16),
        grid=(N, n_tiles),
        in_specs=in_specs,
        out_specs=pl.BlockSpec((1, TH, Wo, C), lambda n, t: (n, t, 0, 0)),
        scratch_shapes=[
            pltpu.VMEM((TH + 2, Wo, k * k * Cin), jnp.bfloat16),  # conv1 taps
            pltpu.VMEM((TH, Wo, k * k * C), jnp.bfloat16),        # conv2 taps
            pltpu.VMEM((TH + 2, Wo + 2, C), jnp.bfloat16),        # padded y1 tile
        ],
        compiler_params=pltpu.CompilerParams(
            dimension_semantics=("parallel", "parallel"),
            # Explicit VMEM budget: fits v5e/v6e (128 MiB) and v7x (64 MiB).
            vmem_limit_bytes=40 * 1024 * 1024),
        cost_estimate=pl.CostEstimate(flops=flops, transcendentals=0,
                                      bytes_accessed=bytes_accessed),
    )(*args)
    # bf16 kernel output halves HBM writeback; cast back together with the
    # NHWC -> NCHW transpose (fused by XLA).
    return jnp.transpose(out, (0, 3, 1, 2)).astype(jnp.float32)


# --------------------------- parameter construction --------------------------

def make_resblock_params(key, in_channel, out_channel, stride=1, eps=1e-5):
    """Random ResBlock parameters with eval-mode BatchNorm folded into the conv."""
    k = 3
    has_proj = (in_channel != out_channel) or (stride > 1)

    def conv_bn(k_, cin, cout):
        k1, k2, k3, k4 = jax.random.split(k_, 4)
        fan_in = cin * k * k
        w = jax.random.normal(k1, (cout, cin, k, k), jnp.float32) * fan_in ** -0.5
        conv_b = 0.1 * jax.random.normal(k2, (cout,), jnp.float32)
        gamma = 1.0 + 0.1 * jax.random.normal(k3, (cout,), jnp.float32)
        beta = 0.1 * jax.random.normal(k4, (cout,), jnp.float32)
        run_mean = jnp.zeros((cout,), jnp.float32)       # PyTorch-default stats
        run_var = jnp.ones((cout,), jnp.float32)
        scale = gamma / jnp.sqrt(run_var + eps)
        bias = beta + scale * (conv_b - run_mean)
        # (Cout,Cin,Kh,Kw) -> (Kh*Kw*Cin, Cout); row index = (kh*K+kw)*Cin + ci,
        # matching the tap-matrix column layout inside the kernel.
        w_k = jnp.transpose(w, (2, 3, 1, 0)).reshape(k * k * cin, cout)
        return (w_k.astype(jnp.bfloat16),
                scale.reshape(1, cout), bias.reshape(1, cout))

    k1, k2, k3 = jax.random.split(key, 3)
    w1, s1, b1 = conv_bn(k1, in_channel, out_channel)
    w2, s2, b2 = conv_bn(k2, out_channel, out_channel)
    params = {"w1": w1, "scale1": s1, "bias1": b1,
              "w2": w2, "scale2": s2, "bias2": b2}
    if has_proj:
        wsc, ssc, bsc = conv_bn(k3, in_channel, out_channel)
        params.update({"w_sc": wsc, "scale_sc": ssc, "bias_sc": bsc})
    return params, has_proj


# ------------------------------ pure-JAX reference ---------------------------

def _conv3x3_ref(x_nhwc, w_flat, stride):
    cout = w_flat.shape[-1]
    w = w_flat.reshape(3, 3, -1, cout).astype(jnp.bfloat16)   # HWIO
    return jax.lax.conv_general_dilated(
        x_nhwc, w, window_strides=(stride, stride), padding=((1, 1), (1, 1)),
        dimension_numbers=("NHWC", "HWIO", "NHWC"),
        preferred_element_type=jnp.float32)


def ref_forward(params, x_nchw, *, stride, has_proj):
    """Reference with the same precision choices (bf16 matmuls, f32 epilogue)."""
    x = jnp.transpose(x_nchw, (0, 2, 3, 1)).astype(jnp.bfloat16)
    y1 = jnp.maximum(_conv3x3_ref(x, params["w1"], stride)
                     * params["scale1"] + params["bias1"], 0.0)
    y2 = (_conv3x3_ref(y1.astype(jnp.bfloat16), params["w2"], 1)
          * params["scale2"] + params["bias2"])
    if has_proj:
        res = (_conv3x3_ref(x, params["w_sc"], stride)
               * params["scale_sc"] + params["bias_sc"])
    else:
        res = x.astype(jnp.float32)
    out = jnp.maximum(y2 + res, 0.0).astype(jnp.bfloat16)
    return jnp.transpose(out, (0, 3, 1, 2)).astype(jnp.float32)


# ----------------------------------- main -------------------------------------

if __name__ == "__main__":
    kp1, kx1, kp2, kx2 = jax.random.split(jax.random.PRNGKey(0), 4)

    # Config 1: projection shortcut (in != out, stride 2).
    params1, hp1 = make_resblock_params(kp1, 4, 8, stride=2)
    x1 = jax.random.normal(kx1, (2, 4, 16, 16), jnp.float32)
    fwd1 = jax.jit(functools.partial(res_block_forward, stride=2, has_proj=hp1))
    out1 = jax.block_until_ready(fwd1(params1, x1))
    ref1 = ref_forward(params1, x1, stride=2, has_proj=hp1)
    assert out1.shape == (2, 8, 8, 8), out1.shape
    assert bool(jnp.all(jnp.isfinite(out1)))
    assert bool(jnp.all(out1 >= 0.0))                 # post-ReLU
    assert bool(jnp.allclose(out1, ref1, atol=3e-2, rtol=3e-2)), (
        "config1 mismatch, max abs err "
        f"{float(jnp.max(jnp.abs(out1 - ref1)))}")

    # Config 2: identity shortcut (in == out, stride 1); Ho=16 with TH=8 gives
    # 2 row tiles per image -> exercises the cross-tile y1 halo handling.
    params2, hp2 = make_resblock_params(kp2, 8, 8, stride=1)
    x2 = jax.random.normal(kx2, (2, 8, 16, 16), jnp.float32)
    fwd2 = jax.jit(functools.partial(res_block_forward, stride=1, has_proj=hp2))
    out2 = jax.block_until_ready(fwd2(params2, x2))
    ref2 = ref_forward(params2, x2, stride=1, has_proj=hp2)
    assert out2.shape == (2, 8, 16, 16), out2.shape
    assert bool(jnp.all(jnp.isfinite(out2)))
    assert bool(jnp.all(out2 >= 0.0))
    assert bool(jnp.allclose(out2, ref2, atol=3e-2, rtol=3e-2)), (
        "config2 mismatch, max abs err "
        f"{float(jnp.max(jnp.abs(out2 - ref2)))}")

    print("KERNEL_OK")
</pallas_src>

<mosaic_0001>
module attributes {stable_mosaic.version = 11 : i64} {
  func.func @kernel(%arg0: i32, %arg1: i32, %arg2: memref<4x11x9x4xbf16, #tpu.memory_space<vmem>>, %arg3: memref<36x8xbf16, #tpu.memory_space<vmem>>, %arg4: memref<1x8xf32, #tpu.memory_space<vmem>>, %arg5: memref<1x8xf32, #tpu.memory_space<vmem>>, %arg6: memref<36x8xbf16, #tpu.memory_space<vmem>>, %arg7: memref<1x8xf32, #tpu.memory_space<vmem>>, %arg8: memref<1x8xf32, #tpu.memory_space<vmem>>, %arg9: memref<72x8xbf16, #tpu.memory_space<vmem>>, %arg10: memref<1x8xf32, #tpu.memory_space<vmem>>, %arg11: memref<1x8xf32, #tpu.memory_space<vmem>>, %arg12: memref<1x8x8x8xbf16, #tpu.memory_space<vmem>>, %arg13: memref<10x8x36xbf16, #tpu.memory_space<vmem>>, %arg14: memref<8x8x72xbf16, #tpu.memory_space<vmem>>, %arg15: memref<10x10x8xbf16, #tpu.memory_space<vmem>>) attributes {dimension_semantics = [#tpu.dimension_semantics<parallel>, #tpu.dimension_semantics<parallel>], iteration_bounds = array<i64: 2, 1>, scalar_prefetch = 0 : i64, scratch_operands = 3 : i64, tpu.core_type = #tpu.core_type<tc>, window_params = [{transform_indices = @transform_0, window_bounds = array<i64: 4, 11, 9, 4>}, {pipeline_mode = #tpu.pipeline_mode<synchronous>, transform_indices = @transform_1, window_bounds = array<i64: 36, 8>}, {pipeline_mode = #tpu.pipeline_mode<synchronous>, transform_indices = @transform_2, window_bounds = array<i64: 1, 8>}, {pipeline_mode = #tpu.pipeline_mode<synchronous>, transform_indices = @transform_3, window_bounds = array<i64: 1, 8>}, {pipeline_mode = #tpu.pipeline_mode<synchronous>, transform_indices = @transform_4, window_bounds = array<i64: 36, 8>}, {pipeline_mode = #tpu.pipeline_mode<synchronous>, transform_indices = @transform_5, window_bounds = array<i64: 1, 8>}, {pipeline_mode = #tpu.pipeline_mode<synchronous>, transform_indices = @transform_6, window_bounds = array<i64: 1, 8>}, {pipeline_mode = #tpu.pipeline_mode<synchronous>, transform_indices = @transform_7, window_bounds = array<i64: 72, 8>}, {pipeline_mode = #tpu.pipeline_mode<synchronous>, transform_indices = @transform_8, window_bounds = array<i64: 1, 8>}, {pipeline_mode = #tpu.pipeline_mode<synchronous>, transform_indices = @transform_9, window_bounds = array<i64: 1, 8>}, {transform_indices = @transform_10, window_bounds = array<i64: 1, 8, 8, 8>}]} {
    %c8_i32 = arith.constant 8 : i32
    %0 = arith.muli %arg1, %c8_i32 : i32
    %c0_i32 = arith.constant 0 : i32
    %1 = arith.addi %0, %c0_i32 : i32
    %c0 = arith.constant 0 : index
    %2 = arith.index_cast %1 : i32 to index
    %c0_0 = arith.constant 0 : index
    %c0_1 = arith.constant 0 : index
    %3 = vector.load %arg2[%c0, %2, %c0_0, %c0_1] : memref<4x11x9x4xbf16, #tpu.memory_space<vmem>>, vector<1x10x8x4xbf16>
    %4 = vector.shape_cast %3 : vector<1x10x8x4xbf16> to vector<10x8x4xbf16>
    %c0_2 = arith.constant 0 : index
    %c0_3 = arith.constant 0 : index
    %c0_4 = arith.constant 0 : index
    %5 = vector.load %arg13[%c0_2, %c0_3, %c0_4] : memref<10x8x36xbf16, #tpu.memory_space<vmem>>, vector<10x8x4xbf16>
    tpu.vector_store %arg13[%c0_2, %c0_3, %c0_4], %4 {strides = array<i32>} : memref<10x8x36xbf16, #tpu.memory_space<vmem>>, vector<10x8x4xbf16>,
    %c0_i32_5 = arith.constant 0 : i32
    %6 = arith.addi %0, %c0_i32_5 : i32
    %c1 = arith.constant 1 : index
    %7 = arith.index_cast %6 : i32 to index
    %c0_6 = arith.constant 0 : index
    %c0_7 = arith.constant 0 : index
    %8 = vector.load %arg2[%c1, %7, %c0_6, %c0_7] : memref<4x11x9x4xbf16, #tpu.memory_space<vmem>>, vector<1x10x8x4xbf16>
    %9 = vector.shape_cast %8 : vector<1x10x8x4xbf16> to vector<10x8x4xbf16>
    %c0_8 = arith.constant 0 : index
    %c0_9 = arith.constant 0 : index
    %c4 = arith.constant 4 : index
    %10 = vector.load %arg13[%c0_8, %c0_9, %c4] : memref<10x8x36xbf16, #tpu.memory_space<vmem>>, vector<10x8x4xbf16>
    tpu.vector_store %arg13[%c0_8, %c0_9, %c4], %9 {strides = array<i32>} : memref<10x8x36xbf16, #tpu.memory_space<vmem>>, vector<10x8x4xbf16>,
    %c0_i32_10 = arith.constant 0 : i32
    %11 = arith.addi %0, %c0_i32_10 : i32
    %c0_11 = arith.constant 0 : index
    %12 = arith.index_cast %11 : i32 to index
    %c1_12 = arith.constant 1 : index
    %c0_13 = arith.constant 0 : index
    %13 = vector.load %arg2[%c0_11, %12, %c1_12, %c0_13] : memref<4x11x9x4xbf16, #tpu.memory_space<vmem>>, vector<1x10x8x4xbf16>
    %14 = vector.shape_cast %13 : vector<1x10x8x4xbf16> to vector<10x8x4xbf16>
    %c0_14 = arith.constant 0 : index
    %c0_15 = arith.constant 0 : index
    %c8 = arith.constant 8 : index
    %15 = vector.load %arg13[%c0_14, %c0_15, %c8] : memref<10x8x36xbf16, #tpu.memory_space<vmem>>, vector<10x8x4xbf16>
    tpu.vector_store %arg13[%c0_14, %c0_15, %c8], %14 {strides = array<i32>} : memref<10x8x36xbf16, #tpu.memory_space<vmem>>, vector<10x8x4xbf16>,
    %c0_i32_16 = arith.constant 0 : i32
    %16 = arith.addi %0, %c0_i32_16 : i32
    %c2 = arith.constant 2 : index
    %17 = arith.index_cast %16 : i32 to index
    %c0_17 = arith.constant 0 : index
    %c0_18 = arith.constant 0 : index
    %18 = vector.load %arg2[%c2, %17, %c0_17, %c0_18] : memref<4x11x9x4xbf16, #tpu.memory_space<vmem>>, vector<1x10x8x4xbf16>
    %19 = vector.shape_cast %18 : vector<1x10x8x4xbf16> to vector<10x8x4xbf16>
    %c0_19 = arith.constant 0 : index
    %c0_20 = arith.constant 0 : index
    %c12 = arith.constant 12 : index
    %20 = vector.load %arg13[%c0_19, %c0_20, %c12] : memref<10x8x36xbf16, #tpu.memory_space<vmem>>, vector<10x8x4xbf16>
    tpu.vector_store %arg13[%c0_19, %c0_20, %c12], %19 {strides = array<i32>} : memref<10x8x36xbf16, #tpu.memory_space<vmem>>, vector<10x8x4xbf16>,
    %c0_i32_21 = arith.constant 0 : i32
    %21 = arith.addi %0, %c0_i32_21 : i32
    %c3 = arith.constant 3 : index
    %22 = arith.index_cast %21 : i32 to index
    %c0_22 = arith.constant 0 : index
    %c0_23 = arith.constant 0 : index
    %23 = vector.load %arg2[%c3, %22, %c0_22, %c0_23] : memref<4x11x9x4xbf16, #tpu.memory_space<vmem>>, vector<1x10x8x4xbf16>
    %24 = vector.shape_cast %23 : vector<1x10x8x4xbf16> to vector<10x8x4xbf16>
    %c0_24 = arith.constant 0 : index
    %c0_25 = arith.constant 0 : index
    %c16 = arith.constant 16 : index
    %25 = vector.load %arg13[%c0_24, %c0_25, %c16] : memref<10x8x36xbf16, #tpu.memory_space<vmem>>, vector<10x8x4xbf16>
    tpu.vector_store %arg13[%c0_24, %c0_25, %c16], %24 {strides = array<i32>} : memref<10x8x36xbf16, #tpu.memory_space<vmem>>, vector<10x8x4xbf16>,
    %c0_i32_26 = arith.constant 0 : i32
    %26 = arith.addi %0, %c0_i32_26 : i32
    %c2_27 = arith.constant 2 : index
    %27 = arith.index_cast %26 : i32 to index
    %c1_28 = arith.constant 1 : index
    %c0_29 = arith.constant 0 : index
    %28 = vector.load %arg2[%c2_27, %27, %c1_28, %c0_29] : memref<4x11x9x4xbf16, #tpu.memory_space<vmem>>, vector<1x10x8x4xbf16>
    %29 = vector.shape_cast %28 : vector<1x10x8x4xbf16> to vector<10x8x4xbf16>
    %c0_30 = arith.constant 0 : index
    %c0_31 = arith.constant 0 : index
    %c20 = arith.constant 20 : index
    %30 = vector.load %arg13[%c0_30, %c0_31, %c20] : memref<10x8x36xbf16, #tpu.memory_space<vmem>>, vector<10x8x4xbf16>
    tpu.vector_store %arg13[%c0_30, %c0_31, %c20], %29 {strides = array<i32>} : memref<10x8x36xbf16, #tpu.memory_space<vmem>>, vector<10x8x4xbf16>,
    %c1_i32 = arith.constant 1 : i32
    %31 = arith.addi %0, %c1_i32 : i32
    %c0_32 = arith.constant 0 : index
    %32 = arith.index_cast %31 : i32 to index
    %c0_33 = arith.constant 0 : index
    %c0_34 = arith.constant 0 : index
    %33 = vector.load %arg2[%c0_32, %32, %c0_33, %c0_34] : memref<4x11x9x4xbf16, #tpu.memory_space<vmem>>, vector<1x10x8x4xbf16>
    %34 = vector.shape_cast %33 : vector<1x10x8x4xbf16> to vector<10x8x4xbf16>
    %c0_35 = arith.constant 0 : index
    %c0_36 = arith.constant 0 : index
    %c24 = arith.constant 24 : index
    %35 = vector.load %arg13[%c0_35, %c0_36, %c24] : memref<10x8x36xbf16, #tpu.memory_space<vmem>>, vector<10x8x4xbf16>
    tpu.vector_store %arg13[%c0_35, %c0_36, %c24], %34 {strides = array<i32>} : memref<10x8x36xbf16, #tpu.memory_space<vmem>>, vector<10x8x4xbf16>,
    %c1_i32_37 = arith.constant 1 : i32
    %36 = arith.addi %0, %c1_i32_37 : i32
    %c1_38 = arith.constant 1 : index
    %37 = arith.index_cast %36 : i32 to index
    %c0_39 = arith.constant 0 : index
    %c0_40 = arith.constant 0 : index
    %38 = vector.load %arg2[%c1_38, %37, %c0_39, %c0_40] : memref<4x11x9x4xbf16, #tpu.memory_space<vmem>>, vector<1x10x8x4xbf16>
    %39 = vector.shape_cast %38 : vector<1x10x8x4xbf16> to vector<10x8x4xbf16>
    %c0_41 = arith.constant 0 : index
    %c0_42 = arith.constant 0 : index
    %c28 = arith.constant 28 : index
    %40 = vector.load %arg13[%c0_41, %c0_42, %c28] : memref<10x8x36xbf16, #tpu.memory_space<vmem>>, vector<10x8x4xbf16>
    tpu.vector_store %arg13[%c0_41, %c0_42, %c28], %39 {strides = array<i32>} : memref<10x8x36xbf16, #tpu.memory_space<vmem>>, vector<10x8x4xbf16>,
    %c1_i32_43 = arith.constant 1 : i32
    %41 = arith.addi %0, %c1_i32_43 : i32
    %c0_44 = arith.constant 0 : index
    %42 = arith.index_cast %41 : i32 to index
    %c1_45 = arith.constant 1 : index
    %c0_46 = arith.constant 0 : index
    %43 = vector.load %arg2[%c0_44, %42, %c1_45, %c0_46] : memref<4x11x9x4xbf16, #tpu.memory_space<vmem>>, vector<1x10x8x4xbf16>
    %44 = vector.shape_cast %43 : vector<1x10x8x4xbf16> to vector<10x8x4xbf16>
    %c0_47 = arith.constant 0 : index
    %c0_48 = arith.constant 0 : index
    %c32 = arith.constant 32 : index
    %45 = vector.load %arg13[%c0_47, %c0_48, %c32] : memref<10x8x36xbf16, #tpu.memory_space<vmem>>, vector<10x8x4xbf16>
    tpu.vector_store %arg13[%c0_47, %c0_48, %c32], %44 {strides = array<i32>} : memref<10x8x36xbf16, #tpu.memory_space<vmem>>, vector<10x8x4xbf16>,
    %c0_49 = arith.constant 0 : index
    %c0_50 = arith.constant 0 : index
    %c0_51 = arith.constant 0 : index
    %46 = vector.load %arg13[%c0_49, %c0_50, %c0_51] : memref<10x8x36xbf16, #tpu.memory_space<vmem>>, vector<10x8x36xbf16>
    %47 = vector.shape_cast %46 : vector<10x8x36xbf16> to vector<80x36xbf16>
    %c0_52 = arith.constant 0 : index
    %c0_53 = arith.constant 0 : index
    %48 = vector.load %arg3[%c0_52, %c0_53] : memref<36x8xbf16, #tpu.memory_space<vmem>>, vector<36x8xbf16>
    %cst = arith.constant dense<0.000000e+00> : vector<80x8xf32>
    %49 = tpu.matmul %47, %48, %cst {dimension_numbers = #tpu.dot_dimension_numbers<[1], [0], [0], [1], [0, 0, 1, 1], [], []>} : vector<80x36xbf16>, vector<36x8xbf16>, vector<80x8xf32> -> vector<80x8xf32>
    %c0_54 = arith.constant 0 : index
    %c0_55 = arith.constant 0 : index
    %50 = vector.load %arg4[%c0_54, %c0_55] : memref<1x8xf32, #tpu.memory_space<vmem>>, vector<1x8xf32>
    %51 = vector.broadcast %50 : vector<1x8xf32> to vector<80x8xf32>
    %52 = arith.mulf %49, %51 : vector<80x8xf32>
    %c0_56 = arith.constant 0 : index
    %c0_57 = arith.constant 0 : index
    %53 = vector.load %arg5[%c0_56, %c0_57] : memref<1x8xf32, #tpu.memory_space<vmem>>, vector<1x8xf32>
    %54 = vector.broadcast %53 : vector<1x8xf32> to vector<80x8xf32>
    %55 = arith.addf %52, %54 : vector<80x8xf32>
    %cst_58 = arith.constant 0.000000e+00 : f32
    %56 = vector.broadcast %cst_58 : f32 to vector<80x8xf32>
    %57 = arith.maximumf %55, %56 : vector<80x8xf32>
    %58 = vector.shape_cast %57 : vector<80x8xf32> to vector<10x8x8xf32>
    %59 = arith.truncf %58 : vector<10x8x8xf32> to vector<10x8x8xbf16>
    %c0_59 = arith.constant 0 : index
    %c1_60 = arith.constant 1 : index
    %c0_61 = arith.constant 0 : index
    %60 = vector.load %arg15[%c0_59, %c1_60, %c0_61] : memref<10x10x8xbf16, #tpu.memory_space<vmem>>, vector<10x8x8xbf16>
    tpu.vector_store %arg15[%c0_59, %c1_60, %c0_61], %59 {strides = array<i32>} : memref<10x10x8xbf16, #tpu.memory_space<vmem>>, vector<10x8x8xbf16>,
    %cst_62 = arith.constant 0.000000e+00 : bf16
    %61 = vector.broadcast %cst_62 : bf16 to vector<10x1x8xbf16>
    %c0_63 = arith.constant 0 : index
    %c0_64 = arith.constant 0 : index
    %c0_65 = arith.constant 0 : index
    %62 = vector.load %arg15[%c0_63, %c0_64, %c0_65] : memref<10x10x8xbf16, #tpu.memory_space<vmem>>, vector<10x1x8xbf16>
    tpu.vector_store %arg15[%c0_63, %c0_64, %c0_65], %61 {strides = array<i32>} : memref<10x10x8xbf16, #tpu.memory_space<vmem>>, vector<10x1x8xbf16>,
    %c0_66 = arith.constant 0 : index
    %c9 = arith.constant 9 : index
    %c0_67 = arith.constant 0 : index
    %63 = vector.load %arg15[%c0_66, %c9, %c0_67] : memref<10x10x8xbf16, #tpu.memory_space<vmem>>, vector<10x1x8xbf16>
    tpu.vector_store %arg15[%c0_66, %c9, %c0_67], %61 {strides = array<i32>} : memref<10x10x8xbf16, #tpu.memory_space<vmem>>, vector<10x1x8xbf16>,
    %c0_i32_68 = arith.constant 0 : i32
    %64 = arith.cmpi eq, %arg1, %c0_i32_68 : i32
    %65 = arith.extui %64 : i1 to i32
    %c0_i32_69 = arith.constant 0 : i32
    %66 = arith.cmpi ne, %65, %c0_i32_69 : i32
    scf.if %66 {
      %cst_147 = arith.constant 0.000000e+00 : bf16
      %116 = vector.broadcast %cst_147 : bf16 to vector<1x10x8xbf16>
      %c0_148 = arith.constant 0 : index
      %c0_149 = arith.constant 0 : index
      %c0_150 = arith.constant 0 : index
      %117 = vector.load %arg15[%c0_148, %c0_149, %c0_150] : memref<10x10x8xbf16, #tpu.memory_space<vmem>>, vector<1x10x8xbf16>
      tpu.vector_store %arg15[%c0_148, %c0_149, %c0_150], %116 {strides = array<i32>} : memref<10x10x8xbf16, #tpu.memory_space<vmem>>, vector<1x10x8xbf16>,
    } else {
    }
    %c0_i32_70 = arith.constant 0 : i32
    %67 = arith.cmpi eq, %arg1, %c0_i32_70 : i32
    %68 = arith.extui %67 : i1 to i32
    %c0_i32_71 = arith.constant 0 : i32
    %69 = arith.cmpi ne, %68, %c0_i32_71 : i32
    scf.if %69 {
      %cst_147 = arith.constant 0.000000e+00 : bf16
      %116 = vector.broadcast %cst_147 : bf16 to vector<1x10x8xbf16>
      %c9_148 = arith.constant 9 : index
      %c0_149 = arith.constant 0 : index
      %c0_150 = arith.constant 0 : index
      %117 = vector.load %arg15[%c9_148, %c0_149, %c0_150] : memref<10x10x8xbf16, #tpu.memory_space<vmem>>, vector<1x10x8xbf16>
      tpu.vector_store %arg15[%c9_148, %c0_149, %c0_150], %116 {strides = array<i32>} : memref<10x10x8xbf16, #tpu.memory_space<vmem>>, vector<1x10x8xbf16>,
    } else {
    }
    %c1_72 = arith.constant 1 : index
    %c0_73 = arith.constant 0 : index
    %c0_74 = arith.constant 0 : index
    %70 = vector.load %arg13[%c1_72, %c0_73, %c0_74] : memref<10x8x36xbf16, #tpu.memory_space<vmem>>, vector<8x8x36xbf16>
    %71 = vector.shape_cast %70 : vector<8x8x36xbf16> to vector<64x36xbf16>
    %c0_75 = arith.constant 0 : index
    %c0_76 = arith.constant 0 : index
    %72 = vector.load %arg6[%c0_75, %c0_76] : memref<36x8xbf16, #tpu.memory_space<vmem>>, vector<36x8xbf16>
    %cst_77 = arith.constant dense<0.000000e+00> : vector<64x8xf32>
    %73 = tpu.matmul %71, %72, %cst_77 {dimension_numbers = #tpu.dot_dimension_numbers<[1], [0], [0], [1], [0, 0, 1, 1], [], []>} : vector<64x36xbf16>, vector<36x8xbf16>, vector<64x8xf32> -> vector<64x8xf32>
    %c0_78 = arith.constant 0 : index
    %c0_79 = arith.constant 0 : index
    %74 = vector.load %arg7[%c0_78, %c0_79] : memref<1x8xf32, #tpu.memory_space<vmem>>, vector<1x8xf32>
    %75 = vector.broadcast %74 : vector<1x8xf32> to vector<64x8xf32>
    %76 = arith.mulf %73, %75 : vector<64x8xf32>
    %c0_80 = arith.constant 0 : index
    %c0_81 = arith.constant 0 : index
    %77 = vector.load %arg8[%c0_80, %c0_81] : memref<1x8xf32, #tpu.memory_space<vmem>>, vector<1x8xf32>
    %78 = vector.broadcast %77 : vector<1x8xf32> to vector<64x8xf32>
    %79 = arith.addf %76, %78 : vector<64x8xf32>
    %c0_82 = arith.constant 0 : index
    %c0_83 = arith.constant 0 : index
    %c0_84 = arith.constant 0 : index
    %80 = vector.load %arg15[%c0_82, %c0_83, %c0_84] : memref<10x10x8xbf16, #tpu.memory_space<vmem>>, vector<8x8x8xbf16>
    %c0_85 = arith.constant 0 : index
    %c0_86 = arith.constant 0 : index
    %c0_87 = arith.constant 0 : index
    %81 = vector.load %arg14[%c0_85, %c0_86, %c0_87] : memref<8x8x72xbf16, #tpu.memory_space<vmem>>, vector<8x8x8xbf16>
    tpu.vector_store %arg14[%c0_85, %c0_86, %c0_87], %80 {strides = array<i32>} : memref<8x8x72xbf16, #tpu.memory_space<vmem>>, vector<8x8x8xbf16>,
    %c0_88 = arith.constant 0 : index
    %c1_89 = arith.constant 1 : index
    %c0_90 = arith.constant 0 : index
    %82 = vector.load %arg15[%c0_88, %c1_89, %c0_90] : memref<10x10x8xbf16, #tpu.memory_space<vmem>>, vector<8x8x8xbf16>
    %c0_91 = arith.constant 0 : index
    %c0_92 = arith.constant 0 : index
    %c8_93 = arith.constant 8 : index
    %83 = vector.load %arg14[%c0_91, %c0_92, %c8_93] : memref<8x8x72xbf16, #tpu.memory_space<vmem>>, vector<8x8x8xbf16>
    tpu.vector_store %arg14[%c0_91, %c0_92, %c8_93], %82 {strides = array<i32>} : memref<8x8x72xbf16, #tpu.memory_space<vmem>>, vector<8x8x8xbf16>,
    %c0_94 = arith.constant 0 : index
    %c2_95 = arith.constant 2 : index
    %c0_96 = arith.constant 0 : index
    %84 = vector.load %arg15[%c0_94, %c2_95, %c0_96] : memref<10x10x8xbf16, #tpu.memory_space<vmem>>, vector<8x8x8xbf16>
    %c0_97 = arith.constant 0 : index
    %c0_98 = arith.constant 0 : index
    %c16_99 = arith.constant 16 : index
    %85 = vector.load %arg14[%c0_97, %c0_98, %c16_99] : memref<8x8x72xbf16, #tpu.memory_space<vmem>>, vector<8x8x8xbf16>
    tpu.vector_store %arg14[%c0_97, %c0_98, %c16_99], %84 {strides = array<i32>} : memref<8x8x72xbf16, #tpu.memory_space<vmem>>, vector<8x8x8xbf16>,
    %c1_100 = arith.constant 1 : index
    %c0_101 = arith.constant 0 : index
    %c0_102 = arith.constant 0 : index
    %86 = vector.load %arg15[%c1_100, %c0_101, %c0_102] : memref<10x10x8xbf16, #tpu.memory_space<vmem>>, vector<8x8x8xbf16>
    %c0_103 = arith.constant 0 : index
    %c0_104 = arith.constant 0 : index
    %c24_105 = arith.constant 24 : index
    %87 = vector.load %arg14[%c0_103, %c0_104, %c24_105] : memref<8x8x72xbf16, #tpu.memory_space<vmem>>, vector<8x8x8xbf16>
    tpu.vector_store %arg14[%c0_103, %c0_104, %c24_105], %86 {strides = array<i32>} : memref<8x8x72xbf16, #tpu.memory_space<vmem>>, vector<8x8x8xbf16>,
    %c1_106 = arith.constant 1 : index
    %c1_107 = arith.constant 1 : index
    %c0_108 = arith.constant 0 : index
    %88 = vector.load %arg15[%c1_106, %c1_107, %c0_108] : memref<10x10x8xbf16, #tpu.memory_space<vmem>>, vector<8x8x8xbf16>
    %c0_109 = arith.constant 0 : index
    %c0_110 = arith.constant 0 : index
    %c32_111 = arith.constant 32 : index
    %89 = vector.load %arg14[%c0_109, %c0_110, %c32_111] : memref<8x8x72xbf16, #tpu.memory_space<vmem>>, vector<8x8x8xbf16>
    tpu.vector_store %arg14[%c0_109, %c0_110, %c32_111], %88 {strides = array<i32>} : memref<8x8x72xbf16, #tpu.memory_space<vmem>>, vector<8x8x8xbf16>,
    %c1_112 = arith.constant 1 : index
    %c2_113 = arith.constant 2 : index
    %c0_114 = arith.constant 0 : index
    %90 = vector.load %arg15[%c1_112, %c2_113, %c0_114] : memref<10x10x8xbf16, #tpu.memory_space<vmem>>, vector<8x8x8xbf16>
    %c0_115 = arith.constant 0 : index
    %c0_116 = arith.constant 0 : index
    %c40 = arith.constant 40 : index
    %91 = vector.load %arg14[%c0_115, %c0_116, %c40] : memref<8x8x72xbf16, #tpu.memory_space<vmem>>, vector<8x8x8xbf16>
    tpu.vector_store %arg14[%c0_115, %c0_116, %c40], %90 {strides = array<i32>} : memref<8x8x72xbf16, #tpu.memory_space<vmem>>, vector<8x8x8xbf16>,
    %c2_117 = arith.constant 2 : index
    %c0_118 = arith.constant 0 : index
    %c0_119 = arith.constant 0 : index
    %92 = vector.load %arg15[%c2_117, %c0_118, %c0_119] : memref<10x10x8xbf16, #tpu.memory_space<vmem>>, vector<8x8x8xbf16>
    %c0_120 = arith.constant 0 : index
    %c0_121 = arith.constant 0 : index
    %c48 = arith.constant 48 : index
    %93 = vector.load %arg14[%c0_120, %c0_121, %c48] : memref<8x8x72xbf16, #tpu.memory_space<vmem>>, vector<8x8x8xbf16>
    tpu.vector_store %arg14[%c0_120, %c0_121, %c48], %92 {strides = array<i32>} : memref<8x8x72xbf16, #tpu.memory_space<vmem>>, vector<8x8x8xbf16>,
    %c2_122 = arith.constant 2 : index
    %c1_123 = arith.constant 1 : index
    %c0_124 = arith.constant 0 : index
    %94 = vector.load %arg15[%c2_122, %c1_123, %c0_124] : memref<10x10x8xbf16, #tpu.memory_space<vmem>>, vector<8x8x8xbf16>
    %c0_125 = arith.constant 0 : index
    %c0_126 = arith.constant 0 : index
    %c56 = arith.constant 56 : index
    %95 = vector.load %arg14[%c0_125, %c0_126, %c56] : memref<8x8x72xbf16, #tpu.memory_space<vmem>>, vector<8x8x8xbf16>
    tpu.vector_store %arg14[%c0_125, %c0_126, %c56], %94 {strides = array<i32>} : memref<8x8x72xbf16, #tpu.memory_space<vmem>>, vector<8x8x8xbf16>,
    %c2_127 = arith.constant 2 : index
    %c2_128 = arith.constant 2 : index
    %c0_129 = arith.constant 0 : index
    %96 = vector.load %arg15[%c2_127, %c2_128, %c0_129] : memref<10x10x8xbf16, #tpu.memory_space<vmem>>, vector<8x8x8xbf16>
    %c0_130 = arith.constant 0 : index
    %c0_131 = arith.constant 0 : index
    %c64 = arith.constant 64 : index
    %97 = vector.load %arg14[%c0_130, %c0_131, %c64] : memref<8x8x72xbf16, #tpu.memory_space<vmem>>, vector<8x8x8xbf16>
    tpu.vector_store %arg14[%c0_130, %c0_131, %c64], %96 {strides = array<i32>} : memref<8x8x72xbf16, #tpu.memory_space<vmem>>, vector<8x8x8xbf16>,
    %c0_132 = arith.constant 0 : index
    %c0_133 = arith.constant 0 : index
    %c0_134 = arith.constant 0 : index
    %98 = vector.load %arg14[%c0_132, %c0_133, %c0_134] : memref<8x8x72xbf16, #tpu.memory_space<vmem>>, vector<8x8x72xbf16>
    %99 = vector.shape_cast %98 : vector<8x8x72xbf16> to vector<64x72xbf16>
    %c0_135 = arith.constant 0 : index
    %c0_136 = arith.constant 0 : index
    %100 = vector.load %arg9[%c0_135, %c0_136] : memref<72x8xbf16, #tpu.memory_space<vmem>>, vector<72x8xbf16>
    %cst_137 = arith.constant dense<0.000000e+00> : vector<64x8xf32>
    %101 = tpu.matmul %99, %100, %cst_137 {dimension_numbers = #tpu.dot_dimension_numbers<[1], [0], [0], [1], [0, 0, 1, 1], [], []>} : vector<64x72xbf16>, vector<72x8xbf16>, vector<64x8xf32> -> vector<64x8xf32>
    %c0_138 = arith.constant 0 : index
    %c0_139 = arith.constant 0 : index
    %102 = vector.load %arg10[%c0_138, %c0_139] : memref<1x8xf32, #tpu.memory_space<vmem>>, vector<1x8xf32>
    %103 = vector.broadcast %102 : vector<1x8xf32> to vector<64x8xf32>
    %104 = arith.mulf %101, %103 : vector<64x8xf32>
    %c0_140 = arith.constant 0 : index
    %c0_141 = arith.constant 0 : index
    %105 = vector.load %arg11[%c0_140, %c0_141] : memref<1x8xf32, #tpu.memory_space<vmem>>, vector<1x8xf32>
    %106 = vector.broadcast %105 : vector<1x8xf32> to vector<64x8xf32>
    %107 = arith.addf %104, %106 : vector<64x8xf32>
    %108 = arith.addf %107, %79 : vector<64x8xf32>
    %cst_142 = arith.constant 0.000000e+00 : f32
    %109 = vector.broadcast %cst_142 : f32 to vector<64x8xf32>
    %110 = arith.maximumf %108, %109 : vector<64x8xf32>
    %111 = vector.shape_cast %110 : vector<64x8xf32> to vector<8x8x8xf32>
    %112 = arith.truncf %111 : vector<8x8x8xf32> to vector<8x8x8xbf16>
    %c0_143 = arith.constant 0 : index
    %c0_144 = arith.constant 0 : index
    %c0_145 = arith.constant 0 : index
    %c0_146 = arith.constant 0 : index
    %113 = vector.load %arg12[%c0_143, %c0_144, %c0_145, %c0_146] : memref<1x8x8x8xbf16, #tpu.memory_space<vmem>>, vector<1x8x8x8xbf16>
    %114 = vector.shape_cast %113 : vector<1x8x8x8xbf16> to vector<8x8x8xbf16>
    %115 = vector.shape_cast %112 : vector<8x8x8xbf16> to vector<1x8x8x8xbf16>
    tpu.vector_store %arg12[%c0_143, %c0_144, %c0_145, %c0_146], %115 {strides = array<i32>} : memref<1x8x8x8xbf16, #tpu.memory_space<vmem>>, vector<1x8x8x8xbf16>,
    return
  }
  func.func @transform_0(%arg0: i32, %arg1: i32) -> (i32, i32, i32, i32) {
    %c0_i32 = arith.constant 0 : i32
    %c0_i32_0 = arith.constant 0 : i32
    %c0_i32_1 = arith.constant 0 : i32
    %c0_i32_2 = arith.constant 0 : i32
    return %arg0, %c0_i32, %c0_i32_0, %c0_i32_1 : i32, i32, i32, i32
  }
  func.func @transform_1(%arg0: i32, %arg1: i32) -> (i32, i32) {
    %c0_i32 = arith.constant 0 : i32
    %c0_i32_0 = arith.constant 0 : i32
    %c0_i32_1 = arith.constant 0 : i32
    return %c0_i32, %c0_i32_0 : i32, i32
  }
  func.func @transform_2(%arg0: i32, %arg1: i32) -> (i32, i32) {
    %c0_i32 = arith.constant 0 : i32
    %c0_i32_0 = arith.constant 0 : i32
    %c0_i32_1 = arith.constant 0 : i32
    return %c0_i32, %c0_i32_0 : i32, i32
  }
  func.func @transform_3(%arg0: i32, %arg1: i32) -> (i32, i32) {
    %c0_i32 = arith.constant 0 : i32
    %c0_i32_0 = arith.constant 0 : i32
    %c0_i32_1 = arith.constant 0 : i32
    return %c0_i32, %c0_i32_0 : i32, i32
  }
  func.func @transform_4(%arg0: i32, %arg1: i32) -> (i32, i32) {
    %c0_i32 = arith.constant 0 : i32
    %c0_i32_0 = arith.constant 0 : i32
    %c0_i32_1 = arith.constant 0 : i32
    return %c0_i32, %c0_i32_0 : i32, i32
  }
  func.func @transform_5(%arg0: i32, %arg1: i32) -> (i32, i32) {
    %c0_i32 = arith.constant 0 : i32
    %c0_i32_0 = arith.constant 0 : i32
    %c0_i32_1 = arith.constant 0 : i32
    return %c0_i32, %c0_i32_0 : i32, i32
  }
  func.func @transform_6(%arg0: i32, %arg1: i32) -> (i32, i32) {
    %c0_i32 = arith.constant 0 : i32
    %c0_i32_0 = arith.constant 0 : i32
    %c0_i32_1 = arith.constant 0 : i32
    return %c0_i32, %c0_i32_0 : i32, i32
  }
  func.func @transform_7(%arg0: i32, %arg1: i32) -> (i32, i32) {
    %c0_i32 = arith.constant 0 : i32
    %c0_i32_0 = arith.constant 0 : i32
    %c0_i32_1 = arith.constant 0 : i32
    return %c0_i32, %c0_i32_0 : i32, i32
  }
  func.func @transform_8(%arg0: i32, %arg1: i32) -> (i32, i32) {
    %c0_i32 = arith.constant 0 : i32
    %c0_i32_0 = arith.constant 0 : i32
    %c0_i32_1 = arith.constant 0 : i32
    return %c0_i32, %c0_i32_0 : i32, i32
  }
  func.func @transform_9(%arg0: i32, %arg1: i32) -> (i32, i32) {
    %c0_i32 = arith.constant 0 : i32
    %c0_i32_0 = arith.constant 0 : i32
    %c0_i32_1 = arith.constant 0 : i32
    return %c0_i32, %c0_i32_0 : i32, i32
  }
  func.func @transform_10(%arg0: i32, %arg1: i32) -> (i32, i32, i32, i32) {
    %c0_i32 = arith.constant 0 : i32
    %c0_i32_0 = arith.constant 0 : i32
    %c0_i32_1 = arith.constant 0 : i32
    return %arg0, %arg1, %c0_i32, %c0_i32_0 : i32, i32, i32, i32
  }
}

</mosaic_0001>

<llo_original>
// kernel: res_block_forward.1
$region0: #{res_block_forward.1}
  #allocation0 [shape = 'u32[]', space=smem, size = 0x4, offset = 0x4, fixed_abs, tag = 'smem constant byte address 0x4 - core index']
  #allocation1 [shape = 'u32[144,128]{1,0:T(1,128)}', space=vmem, size = 0x12000, scoped, tag = 'internal scratch']
  #allocation2 [shape = 'bf16[10,8,36]{2,1,0:T(8,128)(2,1)}', space=vmem, size = 0x5000, scoped, tag = 'scratch operand']
  #allocation3 [shape = 'bf16[8,8,72]{2,1,0:T(8,128)(2,1)}', space=vmem, size = 0x4000, scoped, tag = 'scratch operand']
  #allocation4 [shape = 'bf16[10,10,8]{2,1,0:T(8,128)(2,1)}', space=vmem, size = 0xa000, scoped, tag = 'scratch operand']
  %s0 = inlined_call_operand.vmem [shape: bf16[8,11,9,4], index: 0, kind: input, shape index: {}]
  %s1 = inlined_call_operand.vmem [shape: bf16[36,8], index: 1, kind: input, shape index: {}]
  %s2 = inlined_call_operand.vmem [shape: f32[1,8], index: 2, kind: input, shape index: {}]
  %s3 = inlined_call_operand.vmem [shape: f32[1,8], index: 3, kind: input, shape index: {}]
  %s4 = inlined_call_operand.vmem [shape: bf16[36,8], index: 4, kind: input, shape index: {}]
  %s5 = inlined_call_operand.vmem [shape: f32[1,8], index: 5, kind: input, shape index: {}]
  %s6 = inlined_call_operand.vmem [shape: f32[1,8], index: 6, kind: input, shape index: {}]
  %s7 = inlined_call_operand.vmem [shape: bf16[72,8], index: 7, kind: input, shape index: {}]
  %s8 = inlined_call_operand.vmem [shape: f32[1,8], index: 8, kind: input, shape index: {}]
  %s9 = inlined_call_operand.vmem [shape: f32[1,8], index: 9, kind: input, shape index: {}]
  %s10 = inlined_call_operand.vmem [shape: bf16[2,8,8,8], index: 10, kind: output, shape index: {}]
  %s11 = sld [smem:[#allocation0]]
  $region77: #{res_block_forward.1} parent=0
    _
  %s13 = ssub.s32 1, %s11
  %s14 = scalar_select 0, %s13, %s11
  loop: start=0, step=1, limit=4
  $region2: #{res_block_forward.1} parent=0 // loop_pre_header
    _
  $region3: #{res_block_forward.1} parent=0 // loop_header
    %s16 = sphi 0, %s20
    %p17 = scmp.ge.s32.totalorder %s16, 4
    %s23 = sphi 0, %s35
    %s24 = sphi 0, %s31
    %s25 = sphi 0, %s23
    %s26 = sphi 0, %s24
    %s27 = sphi 0, %s25
    %s28 = sphi 0, %s26
    %s38 = sphi 0, %s40
    %s41 = sphi 0, %s38
    %s42 = sphi 0, %s41
    %s58 = sphi 0, %s42
    %s62 = sphi 0, %s62
    %s64 = sphi 0, %s62
    %s65 = sphi 0, %s64
    %s79 = sphi 0, %s65
    %s83 = sphi 0, %s83
    %s85 = sphi 0, %s83
    %s86 = sphi 0, %s85
    %s100 = sphi 0, %s86
    %s104 = sphi 0, %s104
    %s106 = sphi 0, %s104
    %s107 = sphi 0, %s106
    %s121 = sphi 0, %s107
    %s125 = sphi 0, %s125
    %s127 = sphi 0, %s125
    %s128 = sphi 0, %s127
    %s142 = sphi 0, %s128
    %s146 = sphi 0, %s146
    %s148 = sphi 0, %s146
    %s149 = sphi 0, %s148
    %s163 = sphi 0, %s149
    %s167 = sphi 0, %s167
    %s169 = sphi 0, %s167
    %s170 = sphi 0, %s169
    %s184 = sphi 0, %s170
    %s188 = sphi 0, %s188
    %s190 = sphi 0, %s188
    %s191 = sphi 0, %s190
    %s205 = sphi 0, %s191
    %s209 = sphi 0, %s209
    %s211 = sphi 0, %s209
    %s212 = sphi 0, %s211
    %s226 = sphi 0, %s212
    %s230 = sphi 0, %s230
    %s232 = sphi 0, %s230
    %s233 = sphi 0, %s232
    %s247 = sphi 0, %s233
    %s255 = sphi 0, %s257
    %s258 = sphi 0, %s255
    %s259 = sphi 0, %s258
    %s275 = sphi 0, %s259
  $region4: #{res_block_forward.1} parent=0 // loop_header_branch
    %19 = sbr.rel (%p17) target = $region8
  $region5: #{res_block_forward.1} parent=0 // loop_body
    %s21 = ssub.s32 %s16, 1
    %s22 = ssub.s32 %s16, 2
    %s29 = sadd.s32 1, %s24
    %p30 = scmp.ge.s32.totalorder %s29, 1
    %s31 = scalar_select %p30, 0, %s29
    %s32 = sadd.s32 1, %s23
    %s33 = scalar_select %p30, %s32, %s23
    %p34 = scmp.ge.s32.totalorder %s33, 2
    %s35 = scalar_select %p34, 0, %s33
    %s36 = ssub.s32 %s23, %s35
    %p37 = scmp.eq.s32.totalorder %s36, 0
    %s39 = sadd.s32 %s38, 1
    %s40 = scalar_select %p37, %s38, %s39
    %p43 = pneg %p37
    %p44 = scmp.eq.s32.totalorder %s16, 1
    %p45 = por %p43, %p44
    %p46 = scmp.ne.s32.totalorder %s38, %s41
    %p47 = scmp.eq.s32.totalorder %s16, 0
    %p48 = por %p46, %p47
    %p49 = scmp.ne.s32.totalorder %s38, %s41
    %p50 = scmp.eq.s32.totalorder %s21, 1
    %p51 = por %p49, %p50
    %p52 = scmp.ne.s32.totalorder %s41, %s42
    %p53 = scmp.eq.s32.totalorder %s21, 0
    %p54 = por %p52, %p53
    %p55 = scmp.ne.s32.totalorder %s41, %s42
    %p56 = scmp.eq.s32.totalorder %s22, 1
    %p57 = por %p55, %p56
    %p59 = scmp.ne.s32.totalorder %s42, %s58
    %p60 = scmp.eq.s32.totalorder %s22, 0
    %p61 = por %p59, %p60
    %s63 = sadd.s32 %s62, 1
    %p66 = scmp.eq.s32.totalorder %s16, 1
    %p67 = scmp.ne.s32.totalorder %s62, %s64
    %p68 = scmp.eq.s32.totalorder %s16, 0
    %p69 = por %p67, %p68
    %p70 = scmp.ne.s32.totalorder %s62, %s64
    %p71 = scmp.eq.s32.totalorder %s21, 1
    %p72 = por %p70, %p71
    %p73 = scmp.ne.s32.totalorder %s64, %s65
    %p74 = scmp.eq.s32.totalorder %s21, 0
    %p75 = por %p73, %p74
    %p76 = scmp.ne.s32.totalorder %s64, %s65
    %p77 = scmp.eq.s32.totalorder %s22, 1
    %p78 = por %p76, %p77
    %p80 = scmp.ne.s32.totalorder %s65, %s79
    %p81 = scmp.eq.s32.totalorder %s22, 0
    %p82 = por %p80, %p81
    %s84 = sadd.s32 %s83, 1
    %p87 = scmp.eq.s32.totalorder %s16, 1
    %p88 = scmp.ne.s32.totalorder %s83, %s85
    %p89 = scmp.eq.s32.totalorder %s16, 0
    %p90 = por %p88, %p89
    %p91 = scmp.ne.s32.totalorder %s83, %s85
    %p92 = scmp.eq.s32.totalorder %s21, 1
    %p93 = por %p91, %p92
    %p94 = scmp.ne.s32.totalorder %s85, %s86
    %p95 = scmp.eq.s32.totalorder %s21, 0
    %p96 = por %p94, %p95
    %p97 = scmp.ne.s32.totalorder %s85, %s86
    %p98 = scmp.eq.s32.totalorder %s22, 1
    %p99 = por %p97, %p98
    %p101 = scmp.ne.s32.totalorder %s86, %s100
    %p102 = scmp.eq.s32.totalorder %s22, 0
    %p103 = por %p101, %p102
    %s105 = sadd.s32 %s104, 1
    %p108 = scmp.eq.s32.totalorder %s16, 1
    %p109 = scmp.ne.s32.totalorder %s104, %s106
    %p110 = scmp.eq.s32.totalorder %s16, 0
    %p111 = por %p109, %p110
    %p112 = scmp.ne.s32.totalorder %s104, %s106
    %p113 = scmp.eq.s32.totalorder %s21, 1
    %p114 = por %p112, %p113
    %p115 = scmp.ne.s32.totalorder %s106, %s107
    %p116 = scmp.eq.s32.totalorder %s21, 0
    %p117 = por %p115, %p116
    %p118 = scmp.ne.s32.totalorder %s106, %s107
    %p119 = scmp.eq.s32.totalorder %s22, 1
    %p120 = por %p118, %p119
    %p122 = scmp.ne.s32.totalorder %s107, %s121
    %p123 = scmp.eq.s32.totalorder %s22, 0
    %p124 = por %p122, %p123
    %s126 = sadd.s32 %s125, 1
    %p129 = scmp.eq.s32.totalorder %s16, 1
    %p130 = scmp.ne.s32.totalorder %s125, %s127
    %p131 = scmp.eq.s32.totalorder %s16, 0
    %p132 = por %p130, %p131
    %p133 = scmp.ne.s32.totalorder %s125, %s127
    %p134 = scmp.eq.s32.totalorder %s21, 1
    %p135 = por %p133, %p134
    %p136 = scmp.ne.s32.totalorder %s127, %s128
    %p137 = scmp.eq.s32.totalorder %s21, 0
    %p138 = por %p136, %p137
    %p139 = scmp.ne.s32.totalorder %s127, %s128
    %p140 = scmp.eq.s32.totalorder %s22, 1
    %p141 = por %p139, %p140
    %p143 = scmp.ne.s32.totalorder %s128, %s142
    %p144 = scmp.eq.s32.totalorder %s22, 0
    %p145 = por %p143, %p144
    %s147 = sadd.s32 %s146, 1
    %p150 = scmp.eq.s32.totalorder %s16, 1
    %p151 = scmp.ne.s32.totalorder %s146, %s148
    %p152 = scmp.eq.s32.totalorder %s16, 0
    %p153 = por %p151, %p152
    %p154 = scmp.ne.s32.totalorder %s146, %s148
    %p155 = scmp.eq.s32.totalorder %s21, 1
    %p156 = por %p154, %p155
    %p157 = scmp.ne.s32.totalorder %s148, %s149
    %p158 = scmp.eq.s32.totalorder %s21, 0
    %p159 = por %p157, %p158
    %p160 = scmp.ne.s32.totalorder %s148, %s149
    %p161 = scmp.eq.s32.totalorder %s22, 1
    %p162 = por %p160, %p161
    %p164 = scmp.ne.s32.totalorder %s149, %s163
    %p165 = scmp.eq.s32.totalorder %s22, 0
    %p166 = por %p164, %p165
    %s168 = sadd.s32 %s167, 1
    %p171 = scmp.eq.s32.totalorder %s16, 1
    %p172 = scmp.ne.s32.totalorder %s167, %s169
    %p173 = scmp.eq.s32.totalorder %s16, 0
    %p174 = por %p172, %p173
    %p175 = scmp.ne.s32.totalorder %s167, %s169
    %p176 = scmp.eq.s32.totalorder %s21, 1
    %p177 = por %p175, %p176
    %p178 = scmp.ne.s32.totalorder %s169, %s170
    %p179 = scmp.eq.s32.totalorder %s21, 0
    %p180 = por %p178, %p179
    %p181 = scmp.ne.s32.totalorder %s169, %s170
    %p182 = scmp.eq.s32.totalorder %s22, 1
    %p183 = por %p181, %p182
    %p185 = scmp.ne.s32.totalorder %s170, %s184
    %p186 = scmp.eq.s32.totalorder %s22, 0
    %p187 = por %p185, %p186
    %s189 = sadd.s32 %s188, 1
    %p192 = scmp.eq.s32.totalorder %s16, 1
    %p193 = scmp.ne.s32.totalorder %s188, %s190
    %p194 = scmp.eq.s32.totalorder %s16, 0
    %p195 = por %p193, %p194
    %p196 = scmp.ne.s32.totalorder %s188, %s190
    %p197 = scmp.eq.s32.totalorder %s21, 1
    %p198 = por %p196, %p197
    %p199 = scmp.ne.s32.totalorder %s190, %s191
    %p200 = scmp.eq.s32.totalorder %s21, 0
    %p201 = por %p199, %p200
    %p202 = scmp.ne.s32.totalorder %s190, %s191
    %p203 = scmp.eq.s32.totalorder %s22, 1
    %p204 = por %p202, %p203
    %p206 = scmp.ne.s32.totalorder %s191, %s205
    %p207 = scmp.eq.s32.totalorder %s22, 0
    %p208 = por %p206, %p207
    %s210 = sadd.s32 %s209, 1
    %p213 = scmp.eq.s32.totalorder %s16, 1
    %p214 = scmp.ne.s32.totalorder %s209, %s211
    %p215 = scmp.eq.s32.totalorder %s16, 0
    %p216 = por %p214, %p215
    %p217 = scmp.ne.s32.totalorder %s209, %s211
    %p218 = scmp.eq.s32.totalorder %s21, 1
    %p219 = por %p217, %p218
    %p220 = scmp.ne.s32.totalorder %s211, %s212
    %p221 = scmp.eq.s32.totalorder %s21, 0
    %p222 = por %p220, %p221
    %p223 = scmp.ne.s32.totalorder %s211, %s212
    %p224 = scmp.eq.s32.totalorder %s22, 1
    %p225 = por %p223, %p224
    %p227 = scmp.ne.s32.totalorder %s212, %s226
    %p228 = scmp.eq.s32.totalorder %s22, 0
    %p229 = por %p227, %p228
    %s231 = sadd.s32 %s230, 1
    %p234 = scmp.eq.s32.totalorder %s16, 1
    %p235 = scmp.ne.s32.totalorder %s230, %s232
    %p236 = scmp.eq.s32.totalorder %s16, 0
    %p237 = por %p235, %p236
    %p238 = scmp.ne.s32.totalorder %s230, %s232
    %p239 = scmp.eq.s32.totalorder %s21, 1
    %p240 = por %p238, %p239
    %p241 = scmp.ne.s32.totalorder %s232, %s233
    %p242 = scmp.eq.s32.totalorder %s21, 0
    %p243 = por %p241, %p242
    %p244 = scmp.ne.s32.totalorder %s232, %s233
    %p245 = scmp.eq.s32.totalorder %s22, 1
    %p246 = por %p244, %p245
    %p248 = scmp.ne.s32.totalorder %s233, %s247
    %p249 = scmp.eq.s32.totalorder %s22, 0
    %p250 = por %p248, %p249
    %s251 = ssub.s32 %s23, %s35
    %s252 = ssub.s32 %s24, %s31
    %s253 = sor.u32 %s251, %s252
    %p254 = scmp.eq.s32.totalorder %s253, 0
    %s256 = sadd.s32 %s255, 1
    %s257 = scalar_select %p254, %s255, %s256
    %p260 = pneg %p254
    %p261 = scmp.eq.s32.totalorder %s16, 1
    %p262 = por %p260, %p261
    %p263 = scmp.ne.s32.totalorder %s255, %s258
    %p264 = scmp.eq.s32.totalorder %s16, 0
    %p265 = por %p263, %p264
    %p266 = scmp.ne.s32.totalorder %s255, %s258
    %p267 = scmp.eq.s32.totalorder %s21, 1
    %p268 = por %p266, %p267
    %p269 = scmp.ne.s32.totalorder %s258, %s259
    %p270 = scmp.eq.s32.totalorder %s21, 0
    %p271 = por %p269, %p270
    %p272 = scmp.ne.s32.totalorder %s258, %s259
    %p273 = scmp.eq.s32.totalorder %s22, 1
    %p274 = por %p272, %p273
    %p276 = scmp.ne.s32.totalorder %s259, %s275
    %p277 = scmp.eq.s32.totalorder %s22, 0
    %p278 = por %p276, %p277
    %p279 = scmp.le.s32.totalorder 1, %s16
    %p280 = scmp.lt.s32.totalorder %s16, 3
    %p281 = pnand %p279, %p280
    %p282 = pneg %p281
    // Predicated region
    $region9: #{res_block_forward.1} parent=5 // pred_check
      _
    $region10: #{res_block_forward.1} parent=5 // pred_check_branch
      %284 = sbr.rel (%p281) target = $region12
    $region11: #{res_block_forward.1} parent=5 // pred_region
      %s285 = ssub.s32 %s16, 1
      // Predicated region
      $region13: #{res_block_forward.1} parent=11 // pred_check
        %p286 = pneg %p75
      $region14: #{res_block_forward.1} parent=11 // pred_check_branch
        %288 = sbr.rel (%p286) target = $region16
      $region15: #{res_block_forward.1} parent=11 // pred_region
        _
      $region16: #{res_block_forward.1} parent=11 // pred_fallthru
        _
      // Predicated region
      $region17: #{res_block_forward.1} parent=11 // pred_check
        %p289 = pneg %p96
      $region18: #{res_block_forward.1} parent=11 // pred_check_branch
        %291 = sbr.rel (%p289) target = $region20
      $region19: #{res_block_forward.1} parent=11 // pred_region
        _
      $region20: #{res_block_forward.1} parent=11 // pred_fallthru
        _
      // Predicated region
      $region21: #{res_block_forward.1} parent=11 // pred_check
        %p292 = pneg %p117
      $region22: #{res_block_forward.1} parent=11 // pred_check_branch
        %294 = sbr.rel (%p292) target = $region24
      $region23: #{res_block_forward.1} parent=11 // pred_region
        _
      $region24: #{res_block_forward.1} parent=11 // pred_fallthru
        _
      // Predicated region
      $region25: #{res_block_forward.1} parent=11 // pred_check
        %p295 = pneg %p138
      $region26: #{res_block_forward.1} parent=11 // pred_check_branch
        %297 = sbr.rel (%p295) target = $region28
      $region27: #{res_block_forward.1} parent=11 // pred_region
        _
      $region28: #{res_block_forward.1} parent=11 // pred_fallthru
        _
      // Predicated region
      $region29: #{res_block_forward.1} parent=11 // pred_check
        %p298 = pneg %p159
      $region30: #{res_block_forward.1} parent=11 // pred_check_branch
        %300 = sbr.rel (%p298) target = $region32
      $region31: #{res_block_forward.1} parent=11 // pred_region
        _
      $region32: #{res_block_forward.1} parent=11 // pred_fallthru
        _
      // Predicated region
      $region33: #{res_block_forward.1} parent=11 // pred_check
        %p301 = pneg %p180
      $region34: #{res_block_forward.1} parent=11 // pred_check_branch
        %303 = sbr.rel (%p301) target = $region36
      $region35: #{res_block_forward.1} parent=11 // pred_region
        _
      $region36: #{res_block_forward.1} parent=11 // pred_fallthru
        _
      // Predicated region
      $region37: #{res_block_forward.1} parent=11 // pred_check
        %p304 = pneg %p201
      $region38: #{res_block_forward.1} parent=11 // pred_check_branch
        %306 = sbr.rel (%p304) target = $region40
      $region39: #{res_block_forward.1} parent=11 // pred_region
        _
      $region40: #{res_block_forward.1} parent=11 // pred_fallthru
        _
      // Predicated region
      $region41: #{res_block_forward.1} parent=11 // pred_check
        %p307 = pneg %p222
      $region42: #{res_block_forward.1} parent=11 // pred_check_branch
        %309 = sbr.rel (%p307) target = $region44
      $region43: #{res_block_forward.1} parent=11 // pred_region
        _
      $region44: #{res_block_forward.1} parent=11 // pred_fallthru
        _
      // Predicated region
      $region45: #{res_block_forward.1} parent=11 // pred_check
        %p310 = pneg %p243
      $region46: #{res_block_forward.1} parent=11 // pred_check_branch
        %312 = sbr.rel (%p310) target = $region48
      $region47: #{res_block_forward.1} parent=11 // pred_region
        _
      $region48: #{res_block_forward.1} parent=11 // pred_fallthru
        _
    $region12: #{res_block_forward.1} parent=5 // pred_fallthru
      _
    %p313 = scmp.lt.s32.totalorder %s16, 2
    // Predicated region
    $region49: #{res_block_forward.1} parent=5 // pred_check
      %p314 = pneg %p313
    $region50: #{res_block_forward.1} parent=5 // pred_check_branch
      %316 = sbr.rel (%p314) target = $region52
    $region51: #{res_block_forward.1} parent=5 // pred_region
      // Predicated region
      $region53: #{res_block_forward.1} parent=51 // pred_check
        %p317 = pneg %p48
      $region54: #{res_block_forward.1} parent=51 // pred_check_branch
        %319 = sbr.rel (%p317) target = $region56
      $region55: #{res_block_forward.1} parent=51 // pred_region
        %s320 = smul.u32 4, %s23
        %p321 = scmp.lt.s32.totalorder %s320, 7
        %s322 = scalar_select %p321, %s320, 7
        %s323 = smul.addr %s322, 22
        %s324 = smul.addr %s323, 4
        %s325 = scalar_lea.vmem %s0, %s324
        %s326 = smul.u32 4, %s23
      $region56: #{res_block_forward.1} parent=51 // pred_fallthru
        _
    $region52: #{res_block_forward.1} parent=5 // pred_fallthru
      _
    %p327 = scmp.le.s32.totalorder 1, %s16
    %p328 = scmp.lt.s32.totalorder %s16, 3
    %p329 = pnand %p327, %p328
    %p330 = pneg %p329
    // Predicated region
    $region57: #{res_block_forward.1} parent=5 // pred_check
      _
    $region58: #{res_block_forward.1} parent=5 // pred_check_branch
      %332 = sbr.rel (%p329) target = $region60
    $region59: #{res_block_forward.1} parent=5 // pred_region
      %s333 = ssub.s32 %s16, 1
      %s334 = smul.u32 4, %s25
      %p335 = scmp.lt.s32.totalorder %s334, 7
      %s336 = scalar_select %p335, %s334, 7
      %s337 = smul.addr %s336, 22
      %s338 = smul.addr %s337, 4
      %s339 = scalar_lea.vmem %s0, %s338
      %p340 = pneg %p54
      %p341 = pneg %p51
      %p342 = pneg %p75
      %p343 = pneg %p72
      %p344 = pneg %p96
      %p345 = pneg %p93
      %p346 = pneg %p117
      %p347 = pneg %p114
      %p348 = pneg %p138
      %p349 = pneg %p135
      %p350 = pneg %p159
      %p351 = pneg %p156
      %p352 = pneg %p180
      %p353 = pneg %p177
      %p354 = pneg %p201
      %p355 = pneg %p198
      %p356 = pneg %p222
      %p357 = pneg %p219
      %p358 = pneg %p243
      %p359 = pneg %p240
      %p360 = pneg %p271
      %p361 = pneg %p268
      %s362 = smul.u32 8, %s26
      %p363 = scmp.lt.s32.totalorder %s25, 1
      %s364 = scalar_select %p363, %s25, 1
      %p365 = scmp.lt.s32.totalorder %s362, 7
      %s366 = scalar_select %p365, %s362, 7
      %s367 = smul.addr %s364, 8
      %s368 = sadd.s32 %s366, %s367
      %s369 = smul.addr %s368, 4
      %s370 = scalar_lea.vmem %s10, %s369
      %s371 = smul.u32 4, %s25
      %p372 = scmp.lt.s32.totalorder %s371, 7
      %s373 = scalar_select %p372, %s371, 7
      %s374 = smul.addr %s373, 22
      %s375 = smul.addr %s374, 4
      %s376 = scalar_lea.vmem %s0, %s375
      %s377 = smul.u32 4, %s25
      %s378 = smul.u32 8, %s26
      %p379 = scmp.lt.s32.totalorder %s25, 1
      %s380 = scalar_select %p379, %s25, 1
      %p381 = scmp.lt.s32.totalorder %s378, 7
      %s382 = scalar_select %p381, %s378, 7
      %s383 = smul.addr %s380, 8
      %s384 = sadd.s32 %s382, %s383
      %s385 = smul.addr %s384, 4
      %s386 = scalar_lea.vmem %s10, %s385
      %s387 = smul.u32 8, %s26
      %s389 = smul.u32 %s26, 8
      %s390 = smul.u32 %s389, 2
      %s391 = smul.addr %s390, 4
      %s392 = scalar_lea.vmem %s376, %s391
      %v393 = vld [vmem:[%s392] sm:$0xf]
      %v394 = vld [vmem:[%s392 + $0x8] sm:$0xf]
      %v395 = vld [vmem:[%s392 + $0x10] sm:$0xf]
      %v396 = vld [vmem:[%s392 + $0x18] sm:$0xf]
      %v397 = vld [vmem:[%s392 + $0x20] sm:$0xf]
      %v398 = vld [vmem:[%s392 + $0x28] sm:$0xf]
      %v399 = vld [vmem:[%s392 + $0x30] sm:$0xf]
      %v400 = vld [vmem:[%s392 + $0x38] sm:$0xf]
      %v401 = vld [vmem:[%s392 + $0x40] sm:$0xf]
      %v402 = vld [vmem:[%s392 + $0x48] sm:$0xf]
      %vm403 = vcmask 27648
      %404 = vst.msk [vmem:[#allocation2] sm:$0xf] %vm403, %v393
      %405 = vst.msk [vmem:[#allocation2 + $0x4] sm:$0xf] %vm403, %v394
      %406 = vst.msk [vmem:[#allocation2 + $0x8] sm:$0xf] %vm403, %v395
      %407 = vst.msk [vmem:[#allocation2 + $0xc] sm:$0xf] %vm403, %v396
      %408 = vst.msk [vmem:[#allocation2 + $0x10] sm:$0xf] %vm403, %v397
      %409 = vst.msk [vmem:[#allocation2 + $0x14] sm:$0xf] %vm403, %v398
      %410 = vst.msk [vmem:[#allocation2 + $0x18] sm:$0xf] %vm403, %v399
      %411 = vst.msk [vmem:[#allocation2 + $0x1c] sm:$0xf] %vm403, %v400
      %412 = vst.msk [vmem:[#allocation2 + $0x20] sm:$0xf] %vm403, %v401
      %413 = vst.msk [vmem:[#allocation2 + $0x24] sm:$0xf] %vm403, %v402
      %s414 = sadd.s32 %s390, 22
      %s415 = smul.addr %s414, 4
      %s416 = scalar_lea.vmem %s376, %s415
      %v417 = vld [vmem:[%s416] sm:$0xf]
      %v418 = vld [vmem:[%s416 + $0x8] sm:$0xf]
      %v419 = vld [vmem:[%s416 + $0x10] sm:$0xf]
      %v420 = vld [vmem:[%s416 + $0x18] sm:$0xf]
      %v421 = vld [vmem:[%s416 + $0x20] sm:$0xf]
      %v422 = vld [vmem:[%s416 + $0x28] sm:$0xf]
      %v423 = vld [vmem:[%s416 + $0x30] sm:$0xf]
      %v424 = vld [vmem:[%s416 + $0x38] sm:$0xf]
      %v425 = vld [vmem:[%s416 + $0x40] sm:$0xf]
      %v426 = vld [vmem:[%s416 + $0x48] sm:$0xf]
      %437 = vrot.lane.b32.xlu0 %v417, 4
      %v438 = vpop.permute.xlu0 %437
      %439 = vrot.lane.b32.xlu0 %v418, 4
      %v440 = vpop.permute.xlu0 %439
      %441 = vrot.lane.b32.xlu0 %v419, 4
      %v442 = vpop.permute.xlu0 %441
      %443 = vrot.lane.b32.xlu0 %v420, 4
      %v444 = vpop.permute.xlu0 %443
      %445 = vrot.lane.b32.xlu0 %v421, 4
      %v446 = vpop.permute.xlu0 %445
      %447 = vrot.lane.b32.xlu0 %v422, 4
      %v448 = vpop.permute.xlu0 %447
      %449 = vrot.lane.b32.xlu0 %v423, 4
      %v450 = vpop.permute.xlu0 %449
      %451 = vrot.lane.b32.xlu0 %v424, 4
      %v452 = vpop.permute.xlu0 %451
      %453 = vrot.lane.b32.xlu0 %v425, 4
      %v454 = vpop.permute.xlu0 %453
      %455 = vrot.lane.b32.xlu0 %v426, 4
      %v456 = vpop.permute.xlu0 %455
      %vm467 = vcmask 60448
      %468 = vst.msk [vmem:[#allocation2] sm:$0xf] %vm467, %v438
      %469 = vst.msk [vmem:[#allocation2 + $0x4] sm:$0xf] %vm467, %v440
      %470 = vst.msk [vmem:[#allocation2 + $0x8] sm:$0xf] %vm467, %v442
      %471 = vst.msk [vmem:[#allocation2 + $0xc] sm:$0xf] %vm467, %v444
      %472 = vst.msk [vmem:[#allocation2 + $0x10] sm:$0xf] %vm467, %v446
      %473 = vst.msk [vmem:[#allocation2 + $0x14] sm:$0xf] %vm467, %v448
      %474 = vst.msk [vmem:[#allocation2 + $0x18] sm:$0xf] %vm467, %v450
      %475 = vst.msk [vmem:[#allocation2 + $0x1c] sm:$0xf] %vm467, %v452
      %476 = vst.msk [vmem:[#allocation2 + $0x20] sm:$0xf] %vm467, %v454
      %477 = vst.msk [vmem:[#allocation2 + $0x24] sm:$0xf] %vm467, %v456
      %v478 = vld [vmem:[%s392] sm:$0xf]
      %v479 = vld [vmem:[%s392 + $0x4] sm:$0x1]
      %v480 = vld [vmem:[%s392 + $0x8] sm:$0xf]
      %v481 = vld [vmem:[%s392 + $0xc] sm:$0x1]
      %v482 = vld [vmem:[%s392 + $0x10] sm:$0xf]
      %v483 = vld [vmem:[%s392 + $0x14] sm:$0x1]
      %v484 = vld [vmem:[%s392 + $0x18] sm:$0xf]
      %v485 = vld [vmem:[%s392 + $0x1c] sm:$0x1]
      %v486 = vld [vmem:[%s392 + $0x20] sm:$0xf]
      %v487 = vld [vmem:[%s392 + $0x24] sm:$0x1]
      %v488 = vld [vmem:[%s392 + $0x28] sm:$0xf]
      %v489 = vld [vmem:[%s392 + $0x2c] sm:$0x1]
      %v490 = vld [vmem:[%s392 + $0x30] sm:$0xf]
      %v491 = vld [vmem:[%s392 + $0x34] sm:$0x1]
      %v492 = vld [vmem:[%s392 + $0x38] sm:$0xf]
      %v493 = vld [vmem:[%s392 + $0x3c] sm:$0x1]
      %v494 = vld [vmem:[%s392 + $0x40] sm:$0xf]
      %v495 = vld [vmem:[%s392 + $0x44] sm:$0x1]
      %v496 = vld [vmem:[%s392 + $0x48] sm:$0xf]
      %v497 = vld [vmem:[%s392 + $0x4c] sm:$0x1]
      %vm498 = vsmask.f32 3328
      %vm499 = vsmask.f32 7440
      %vm500 = vmor %vm498, %vm499
      %v502 = vshrl.u32 %v478, 16
      %v504 = vrot.slane %v502, 4
      %v505 = vshll.u32 %v478, 16
      %v507 = vrot.slane %v505, 5
      %v508 = vor.u32 %v504, %v507
      %v509 = vrot.slane %v508, 4
      %v511 = vshll.u32 %v479, 16
      %v513 = vrot.slane %v511, 5
      %v514 = vsel %vm500, %v509, %v513
      %v516 = vshrl.u32 %v480, 16
      %v518 = vrot.slane %v516, 4
      %v519 = vshll.u32 %v480, 16
      %v521 = vrot.slane %v519, 5
      %v522 = vor.u32 %v518, %v521
      %v523 = vrot.slane %v522, 4
      %v525 = vshll.u32 %v481, 16
      %v527 = vrot.slane %v525, 5
      %v528 = vsel %vm500, %v523, %v527
      %v530 = vshrl.u32 %v482, 16
      %v532 = vrot.slane %v530, 4
      %v533 = vshll.u32 %v482, 16
      %v535 = vrot.slane %v533, 5
      %v536 = vor.u32 %v532, %v535
      %v537 = vrot.slane %v536, 4
      %v539 = vshll.u32 %v483, 16
      %v541 = vrot.slane %v539, 5
      %v542 = vsel %vm500, %v537, %v541
      %v544 = vshrl.u32 %v484, 16
      %v546 = vrot.slane %v544, 4
      %v547 = vshll.u32 %v484, 16
      %v549 = vrot.slane %v547, 5
      %v550 = vor.u32 %v546, %v549
      %v551 = vrot.slane %v550, 4
      %v553 = vshll.u32 %v485, 16
      %v555 = vrot.slane %v553, 5
      %v556 = vsel %vm500, %v551, %v555
      %v558 = vshrl.u32 %v486, 16
      %v560 = vrot.slane %v558, 4
      %v561 = vshll.u32 %v486, 16
      %v563 = vrot.slane %v561, 5
      %v564 = vor.u32 %v560, %v563
      %v565 = vrot.slane %v564, 4
      %v567 = vshll.u32 %v487, 16
      %v569 = vrot.slane %v567, 5
      %v570 = vsel %vm500, %v565, %v569
      %v572 = vshrl.u32 %v488, 16
      %v574 = vrot.slane %v572, 4
      %v575 = vshll.u32 %v488, 16
      %v577 = vrot.slane %v575, 5
      %v578 = vor.u32 %v574, %v577
      %v579 = vrot.slane %v578, 4
      %v581 = vshll.u32 %v489, 16
      %v583 = vrot.slane %v581, 5
      %v584 = vsel %vm500, %v579, %v583
      %v586 = vshrl.u32 %v490, 16
      %v588 = vrot.slane %v586, 4
      %v589 = vshll.u32 %v490, 16
      %v591 = vrot.slane %v589, 5
      %v592 = vor.u32 %v588, %v591
      %v593 = vrot.slane %v592, 4
      %v595 = vshll.u32 %v491, 16
      %v597 = vrot.slane %v595, 5
      %v598 = vsel %vm500, %v593, %v597
      %v600 = vshrl.u32 %v492, 16
      %v602 = vrot.slane %v600, 4
      %v603 = vshll.u32 %v492, 16
      %v605 = vrot.slane %v603, 5
      %v606 = vor.u32 %v602, %v605
      %v607 = vrot.slane %v606, 4
      %v609 = vshll.u32 %v493, 16
      %v611 = vrot.slane %v609, 5
      %v612 = vsel %vm500, %v607, %v611
      %v614 = vshrl.u32 %v494, 16
      %v616 = vrot.slane %v614, 4
      %v617 = vshll.u32 %v494, 16
      %v619 = vrot.slane %v617, 5
      %v620 = vor.u32 %v616, %v619
      %v621 = vrot.slane %v620, 4
      %v623 = vshll.u32 %v495, 16
      %v625 = vrot.slane %v623, 5
      %v626 = vsel %vm500, %v621, %v625
      %v628 = vshrl.u32 %v496, 16
      %v630 = vrot.slane %v628, 4
      %v631 = vshll.u32 %v496, 16
      %v633 = vrot.slane %v631, 5
      %v634 = vor.u32 %v630, %v633
      %v635 = vrot.slane %v634, 4
      %v637 = vshll.u32 %v497, 16
      %v639 = vrot.slane %v637, 5
      %v640 = vsel %vm500, %v635, %v639
      %641 = vrot.lane.b32.xlu0 %v514, 8
      %v642 = vpop.permute.xlu0 %641
      %643 = vrot.lane.b32.xlu0 %v528, 8
      %v644 = vpop.permute.xlu0 %643
      %645 = vrot.lane.b32.xlu0 %v542, 8
      %v646 = vpop.permute.xlu0 %645
      %647 = vrot.lane.b32.xlu0 %v556, 8
      %v648 = vpop.permute.xlu0 %647
      %649 = vrot.lane.b32.xlu0 %v570, 8
      %v650 = vpop.permute.xlu0 %649
      %651 = vrot.lane.b32.xlu0 %v584, 8
      %v652 = vpop.permute.xlu0 %651
      %653 = vrot.lane.b32.xlu0 %v598, 8
      %v654 = vpop.permute.xlu0 %653
      %655 = vrot.lane.b32.xlu0 %v612, 8
      %v656 = vpop.permute.xlu0 %655
      %657 = vrot.lane.b32.xlu0 %v626, 8
      %v658 = vpop.permute.xlu0 %657
      %659 = vrot.lane.b32.xlu0 %v640, 8
      %v660 = vpop.permute.xlu0 %659
      %vm671 = vcmask 93248
      %672 = vst.msk [vmem:[#allocation2] sm:$0xf] %vm671, %v642
      %673 = vst.msk [vmem:[#allocation2 + $0x4] sm:$0xf] %vm671, %v644
      %674 = vst.msk [vmem:[#allocation2 + $0x8] sm:$0xf] %vm671, %v646
      %675 = vst.msk [vmem:[#allocation2 + $0xc] sm:$0xf] %vm671, %v648
      %676 = vst.msk [vmem:[#allocation2 + $0x10] sm:$0xf] %vm671, %v650
      %677 = vst.msk [vmem:[#allocation2 + $0x14] sm:$0xf] %vm671, %v652
      %678 = vst.msk [vmem:[#allocation2 + $0x18] sm:$0xf] %vm671, %v654
      %679 = vst.msk [vmem:[#allocation2 + $0x1c] sm:$0xf] %vm671, %v656
      %680 = vst.msk [vmem:[#allocation2 + $0x20] sm:$0xf] %vm671, %v658
      %681 = vst.msk [vmem:[#allocation2 + $0x24] sm:$0xf] %vm671, %v660
      %s682 = sadd.s32 %s390, 44
      %s683 = smul.addr %s682, 4
      %s684 = scalar_lea.vmem %s376, %s683
      %v685 = vld [vmem:[%s684] sm:$0xf]
      %v686 = vld [vmem:[%s684 + $0x8] sm:$0xf]
      %v687 = vld [vmem:[%s684 + $0x10] sm:$0xf]
      %v688 = vld [vmem:[%s684 + $0x18] sm:$0xf]
      %v689 = vld [vmem:[%s684 + $0x20] sm:$0xf]
      %v690 = vld [vmem:[%s684 + $0x28] sm:$0xf]
      %v691 = vld [vmem:[%s684 + $0x30] sm:$0xf]
      %v692 = vld [vmem:[%s684 + $0x38] sm:$0xf]
      %v693 = vld [vmem:[%s684 + $0x40] sm:$0xf]
      %v694 = vld [vmem:[%s684 + $0x48] sm:$0xf]
      %705 = vrot.lane.b32.xlu0 %v685, 12
      %v706 = vpop.permute.xlu0 %705
      %707 = vrot.lane.b32.xlu0 %v686, 12
      %v708 = vpop.permute.xlu0 %707
      %709 = vrot.lane.b32.xlu0 %v687, 12
      %v710 = vpop.permute.xlu0 %709
      %711 = vrot.lane.b32.xlu0 %v688, 12
      %v712 = vpop.permute.xlu0 %711
      %713 = vrot.lane.b32.xlu0 %v689, 12
      %v714 = vpop.permute.xlu0 %713
      %715 = vrot.lane.b32.xlu0 %v690, 12
      %v716 = vpop.permute.xlu0 %715
      %717 = vrot.lane.b32.xlu0 %v691, 12
      %v718 = vpop.permute.xlu0 %717
      %719 = vrot.lane.b32.xlu0 %v692, 12
      %v720 = vpop.permute.xlu0 %719
      %721 = vrot.lane.b32.xlu0 %v693, 12
      %v722 = vpop.permute.xlu0 %721
      %723 = vrot.lane.b32.xlu0 %v694, 12
      %v724 = vpop.permute.xlu0 %723
      %vm735 = vcmask 126048
      %736 = vst.msk [vmem:[#allocation2] sm:$0xf] %vm735, %v706
      %737 = vst.msk [vmem:[#allocation2 + $0x4] sm:$0xf] %vm735, %v708
      %738 = vst.msk [vmem:[#allocation2 + $0x8] sm:$0xf] %vm735, %v710
      %739 = vst.msk [vmem:[#allocation2 + $0xc] sm:$0xf] %vm735, %v712
      %740 = vst.msk [vmem:[#allocation2 + $0x10] sm:$0xf] %vm735, %v714
      %741 = vst.msk [vmem:[#allocation2 + $0x14] sm:$0xf] %vm735, %v716
      %742 = vst.msk [vmem:[#allocation2 + $0x18] sm:$0xf] %vm735, %v718
      %743 = vst.msk [vmem:[#allocation2 + $0x1c] sm:$0xf] %vm735, %v720
      %744 = vst.msk [vmem:[#allocation2 + $0x20] sm:$0xf] %vm735, %v722
      %745 = vst.msk [vmem:[#allocation2 + $0x24] sm:$0xf] %vm735, %v724
      %s746 = sadd.s32 %s390, 66
      %s747 = smul.addr %s746, 4
      %s748 = scalar_lea.vmem %s376, %s747
      %v749 = vld [vmem:[%s748] sm:$0xf]
      %v750 = vld [vmem:[%s748 + $0x8] sm:$0xf]
      %v751 = vld [vmem:[%s748 + $0x10] sm:$0xf]
      %v752 = vld [vmem:[%s748 + $0x18] sm:$0xf]
      %v753 = vld [vmem:[%s748 + $0x20] sm:$0xf]
      %v754 = vld [vmem:[%s748 + $0x28] sm:$0xf]
      %v755 = vld [vmem:[%s748 + $0x30] sm:$0xf]
      %v756 = vld [vmem:[%s748 + $0x38] sm:$0xf]
      %v757 = vld [vmem:[%s748 + $0x40] sm:$0xf]
      %v758 = vld [vmem:[%s748 + $0x48] sm:$0xf]
      %769 = vrot.lane.b32.xlu0 %v749, 16
      %v770 = vpop.permute.xlu0 %769
      %771 = vrot.lane.b32.xlu0 %v750, 16
      %v772 = vpop.permute.xlu0 %771
      %773 = vrot.lane.b32.xlu0 %v751, 16
      %v774 = vpop.permute.xlu0 %773
      %775 = vrot.lane.b32.xlu0 %v752, 16
      %v776 = vpop.permute.xlu0 %775
      %777 = vrot.lane.b32.xlu0 %v753, 16
      %v778 = vpop.permute.xlu0 %777
      %779 = vrot.lane.b32.xlu0 %v754, 16
      %v780 = vpop.permute.xlu0 %779
      %781 = vrot.lane.b32.xlu0 %v755, 16
      %v782 = vpop.permute.xlu0 %781
      %783 = vrot.lane.b32.xlu0 %v756, 16
      %v784 = vpop.permute.xlu0 %783
      %785 = vrot.lane.b32.xlu0 %v757, 16
      %v786 = vpop.permute.xlu0 %785
      %787 = vrot.lane.b32.xlu0 %v758, 16
      %v788 = vpop.permute.xlu0 %787
      %vm799 = vcmask 158848
      %800 = vst.msk [vmem:[#allocation2] sm:$0xf] %vm799, %v770
      %801 = vst.msk [vmem:[#allocation2 + $0x4] sm:$0xf] %vm799, %v772
      %802 = vst.msk [vmem:[#allocation2 + $0x8] sm:$0xf] %vm799, %v774
      %803 = vst.msk [vmem:[#allocation2 + $0xc] sm:$0xf] %vm799, %v776
      %804 = vst.msk [vmem:[#allocation2 + $0x10] sm:$0xf] %vm799, %v778
      %805 = vst.msk [vmem:[#allocation2 + $0x14] sm:$0xf] %vm799, %v780
      %806 = vst.msk [vmem:[#allocation2 + $0x18] sm:$0xf] %vm799, %v782
      %807 = vst.msk [vmem:[#allocation2 + $0x1c] sm:$0xf] %vm799, %v784
      %808 = vst.msk [vmem:[#allocation2 + $0x20] sm:$0xf] %vm799, %v786
      %809 = vst.msk [vmem:[#allocation2 + $0x24] sm:$0xf] %vm799, %v788
      %v810 = vld [vmem:[%s684] sm:$0xf]
      %v811 = vld [vmem:[%s684 + $0x4] sm:$0x1]
      %v812 = vld [vmem:[%s684 + $0x8] sm:$0xf]
      %v813 = vld [vmem:[%s684 + $0xc] sm:$0x1]
      %v814 = vld [vmem:[%s684 + $0x10] sm:$0xf]
      %v815 = vld [vmem:[%s684 + $0x14] sm:$0x1]
      %v816 = vld [vmem:[%s684 + $0x18] sm:$0xf]
      %v817 = vld [vmem:[%s684 + $0x1c] sm:$0x1]
      %v818 = vld [vmem:[%s684 + $0x20] sm:$0xf]
      %v819 = vld [vmem:[%s684 + $0x24] sm:$0x1]
      %v820 = vld [vmem:[%s684 + $0x28] sm:$0xf]
      %v821 = vld [vmem:[%s684 + $0x2c] sm:$0x1]
      %v822 = vld [vmem:[%s684 + $0x30] sm:$0xf]
      %v823 = vld [vmem:[%s684 + $0x34] sm:$0x1]
      %v824 = vld [vmem:[%s684 + $0x38] sm:$0xf]
      %v825 = vld [vmem:[%s684 + $0x3c] sm:$0x1]
      %v826 = vld [vmem:[%s684 + $0x40] sm:$0xf]
      %v827 = vld [vmem:[%s684 + $0x44] sm:$0x1]
      %v828 = vld [vmem:[%s684 + $0x48] sm:$0xf]
      %v829 = vld [vmem:[%s684 + $0x4c] sm:$0x1]
      %v831 = vshrl.u32 %v810, 16
      %v833 = vrot.slane %v831, 4
      %v834 = vshll.u32 %v810, 16
      %v836 = vrot.slane %v834, 5
      %v837 = vor.u32 %v833, %v836
      %v838 = vrot.slane %v837, 4
      %v840 = vshll.u32 %v811, 16
      %v842 = vrot.slane %v840, 5
      %v843 = vsel %vm500, %v838, %v842
      %v845 = vshrl.u32 %v812, 16
      %v847 = vrot.slane %v845, 4
      %v848 = vshll.u32 %v812, 16
      %v850 = vrot.slane %v848, 5
      %v851 = vor.u32 %v847, %v850
      %v852 = vrot.slane %v851, 4
      %v854 = vshll.u32 %v813, 16
      %v856 = vrot.slane %v854, 5
      %v857 = vsel %vm500, %v852, %v856
      %v859 = vshrl.u32 %v814, 16
      %v861 = vrot.slane %v859, 4
      %v862 = vshll.u32 %v814, 16
      %v864 = vrot.slane %v862, 5
      %v865 = vor.u32 %v861, %v864
      %v866 = vrot.slane %v865, 4
      %v868 = vshll.u32 %v815, 16
      %v870 = vrot.slane %v868, 5
      %v871 = vsel %vm500, %v866, %v870
      %v873 = vshrl.u32 %v816, 16
      %v875 = vrot.slane %v873, 4
      %v876 = vshll.u32 %v816, 16
      %v878 = vrot.slane %v876, 5
      %v879 = vor.u32 %v875, %v878
      %v880 = vrot.slane %v879, 4
      %v882 = vshll.u32 %v817, 16
      %v884 = vrot.slane %v882, 5
      %v885 = vsel %vm500, %v880, %v884
      %v887 = vshrl.u32 %v818, 16
      %v889 = vrot.slane %v887, 4
      %v890 = vshll.u32 %v818, 16
      %v892 = vrot.slane %v890, 5
      %v893 = vor.u32 %v889, %v892
      %v894 = vrot.slane %v893, 4
      %v896 = vshll.u32 %v819, 16
      %v898 = vrot.slane %v896, 5
      %v899 = vsel %vm500, %v894, %v898
      %v901 = vshrl.u32 %v820, 16
      %v903 = vrot.slane %v901, 4
      %v904 = vshll.u32 %v820, 16
      %v906 = vrot.slane %v904, 5
      %v907 = vor.u32 %v903, %v906
      %v908 = vrot.slane %v907, 4
      %v910 = vshll.u32 %v821, 16
      %v912 = vrot.slane %v910, 5
      %v913 = vsel %vm500, %v908, %v912
      %v915 = vshrl.u32 %v822, 16
      %v917 = vrot.slane %v915, 4
      %v918 = vshll.u32 %v822, 16
      %v920 = vrot.slane %v918, 5
      %v921 = vor.u32 %v917, %v920
      %v922 = vrot.slane %v921, 4
      %v924 = vshll.u32 %v823, 16
      %v926 = vrot.slane %v924, 5
      %v927 = vsel %vm500, %v922, %v926
      %v929 = vshrl.u32 %v824, 16
      %v931 = vrot.slane %v929, 4
      %v932 = vshll.u32 %v824, 16
      %v934 = vrot.slane %v932, 5
      %v935 = vor.u32 %v931, %v934
      %v936 = vrot.slane %v935, 4
      %v938 = vshll.u32 %v825, 16
      %v940 = vrot.slane %v938, 5
      %v941 = vsel %vm500, %v936, %v940
      %v943 = vshrl.u32 %v826, 16
      %v945 = vrot.slane %v943, 4
      %v946 = vshll.u32 %v826, 16
      %v948 = vrot.slane %v946, 5
      %v949 = vor.u32 %v945, %v948
      %v950 = vrot.slane %v949, 4
      %v952 = vshll.u32 %v827, 16
      %v954 = vrot.slane %v952, 5
      %v955 = vsel %vm500, %v950, %v954
      %v957 = vshrl.u32 %v828, 16
      %v959 = vrot.slane %v957, 4
      %v960 = vshll.u32 %v828, 16
      %v962 = vrot.slane %v960, 5
      %v963 = vor.u32 %v959, %v962
      %v964 = vrot.slane %v963, 4
      %v966 = vshll.u32 %v829, 16
      %v968 = vrot.slane %v966, 5
      %v969 = vsel %vm500, %v964, %v968
      %970 = vrot.lane.b32.xlu0 %v843, 20
      %v971 = vpop.permute.xlu0 %970
      %972 = vrot.lane.b32.xlu0 %v857, 20
      %v973 = vpop.permute.xlu0 %972
      %974 = vrot.lane.b32.xlu0 %v871, 20
      %v975 = vpop.permute.xlu0 %974
      %976 = vrot.lane.b32.xlu0 %v885, 20
      %v977 = vpop.permute.xlu0 %976
      %978 = vrot.lane.b32.xlu0 %v899, 20
      %v979 = vpop.permute.xlu0 %978
      %980 = vrot.lane.b32.xlu0 %v913, 20
      %v981 = vpop.permute.xlu0 %980
      %982 = vrot.lane.b32.xlu0 %v927, 20
      %v983 = vpop.permute.xlu0 %982
      %984 = vrot.lane.b32.xlu0 %v941, 20
      %v985 = vpop.permute.xlu0 %984
      %986 = vrot.lane.b32.xlu0 %v955, 20
      %v987 = vpop.permute.xlu0 %986
      %988 = vrot.lane.b32.xlu0 %v969, 20
      %v989 = vpop.permute.xlu0 %988
      %vm1000 = vcmask 191648
      %1001 = vst.msk [vmem:[#allocation2] sm:$0xf] %vm1000, %v971
      %1002 = vst.msk [vmem:[#allocation2 + $0x4] sm:$0xf] %vm1000, %v973
      %1003 = vst.msk [vmem:[#allocation2 + $0x8] sm:$0xf] %vm1000, %v975
      %1004 = vst.msk [vmem:[#allocation2 + $0xc] sm:$0xf] %vm1000, %v977
      %1005 = vst.msk [vmem:[#allocation2 + $0x10] sm:$0xf] %vm1000, %v979
      %1006 = vst.msk [vmem:[#allocation2 + $0x14] sm:$0xf] %vm1000, %v981
      %1007 = vst.msk [vmem:[#allocation2 + $0x18] sm:$0xf] %vm1000, %v983
      %1008 = vst.msk [vmem:[#allocation2 + $0x1c] sm:$0xf] %vm1000, %v985
      %1009 = vst.msk [vmem:[#allocation2 + $0x20] sm:$0xf] %vm1000, %v987
      %1010 = vst.msk [vmem:[#allocation2 + $0x24] sm:$0xf] %vm1000, %v989
      %s1011 = sadd.s32 %s389, 1
      %s1012 = smul.u32 %s1011, 2
      %s1013 = smul.addr %s1012, 4
      %s1014 = scalar_lea.vmem %s376, %s1013
      %v1015 = vld [vmem:[%s1014] sm:$0xf]
      %v1016 = vld [vmem:[%s1014 + $0x8] sm:$0xf]
      %v1017 = vld [vmem:[%s1014 + $0x10] sm:$0xf]
      %v1018 = vld [vmem:[%s1014 + $0x18] sm:$0xf]
      %v1019 = vld [vmem:[%s1014 + $0x20] sm:$0xf]
      %v1020 = vld [vmem:[%s1014 + $0x28] sm:$0xf]
      %v1021 = vld [vmem:[%s1014 + $0x30] sm:$0xf]
      %v1022 = vld [vmem:[%s1014 + $0x38] sm:$0xf]
      %v1023 = vld [vmem:[%s1014 + $0x40] sm:$0xf]
      %v1024 = vld [vmem:[%s1014 + $0x48] sm:$0xf]
      %1035 = vrot.lane.b32.xlu0 %v1015, 24
      %v1036 = vpop.permute.xlu0 %1035
      %1037 = vrot.lane.b32.xlu0 %v1016, 24
      %v1038 = vpop.permute.xlu0 %1037
      %1039 = vrot.lane.b32.xlu0 %v1017, 24
      %v1040 = vpop.permute.xlu0 %1039
      %1041 = vrot.lane.b32.xlu0 %v1018, 24
      %v1042 = vpop.permute.xlu0 %1041
      %1043 = vrot.lane.b32.xlu0 %v1019, 24
      %v1044 = vpop.permute.xlu0 %1043
      %1045 = vrot.lane.b32.xlu0 %v1020, 24
      %v1046 = vpop.permute.xlu0 %1045
      %1047 = vrot.lane.b32.xlu0 %v1021, 24
      %v1048 = vpop.permute.xlu0 %1047
      %1049 = vrot.lane.b32.xlu0 %v1022, 24
      %v1050 = vpop.permute.xlu0 %1049
      %1051 = vrot.lane.b32.xlu0 %v1023, 24
      %v1052 = vpop.permute.xlu0 %1051
      %1053 = vrot.lane.b32.xlu0 %v1024, 24
      %v1054 = vpop.permute.xlu0 %1053
      %vm1065 = vcmask 224448
      %1066 = vst.msk [vmem:[#allocation2] sm:$0xf] %vm1065, %v1036
      %1067 = vst.msk [vmem:[#allocation2 + $0x4] sm:$0xf] %vm1065, %v1038
      %1068 = vst.msk [vmem:[#allocation2 + $0x8] sm:$0xf] %vm1065, %v1040
      %1069 = vst.msk [vmem:[#allocation2 + $0xc] sm:$0xf] %vm1065, %v1042
      %1070 = vst.msk [vmem:[#allocation2 + $0x10] sm:$0xf] %vm1065, %v1044
      %1071 = vst.msk [vmem:[#allocation2 + $0x14] sm:$0xf] %vm1065, %v1046
      %1072 = vst.msk [vmem:[#allocation2 + $0x18] sm:$0xf] %vm1065, %v1048
      %1073 = vst.msk [vmem:[#allocation2 + $0x1c] sm:$0xf] %vm1065, %v1050
      %1074 = vst.msk [vmem:[#allocation2 + $0x20] sm:$0xf] %vm1065, %v1052
      %1075 = vst.msk [vmem:[#allocation2 + $0x24] sm:$0xf] %vm1065, %v1054
      %s1076 = sadd.s32 %s1012, 22
      %s1077 = smul.addr %s1076, 4
      %s1078 = scalar_lea.vmem %s376, %s1077
      %v1079 = vld [vmem:[%s1078] sm:$0xf]
      %v1080 = vld [vmem:[%s1078 + $0x8] sm:$0xf]
      %v1081 = vld [vmem:[%s1078 + $0x10] sm:$0xf]
      %v1082 = vld [vmem:[%s1078 + $0x18] sm:$0xf]
      %v1083 = vld [vmem:[%s1078 + $0x20] sm:$0xf]
      %v1084 = vld [vmem:[%s1078 + $0x28] sm:$0xf]
      %v1085 = vld [vmem:[%s1078 + $0x30] sm:$0xf]
      %v1086 = vld [vmem:[%s1078 + $0x38] sm:$0xf]
      %v1087 = vld [vmem:[%s1078 + $0x40] sm:$0xf]
      %v1088 = vld [vmem:[%s1078 + $0x48] sm:$0xf]
      %1099 = vrot.lane.b32.xlu0 %v1079, 28
      %v1100 = vpop.permute.xlu0 %1099
      %1101 = vrot.lane.b32.xlu0 %v1080, 28
      %v1102 = vpop.permute.xlu0 %1101
      %1103 = vrot.lane.b32.xlu0 %v1081, 28
      %v1104 = vpop.permute.xlu0 %1103
      %1105 = vrot.lane.b32.xlu0 %v1082, 28
      %v1106 = vpop.permute.xlu0 %1105
      %1107 = vrot.lane.b32.xlu0 %v1083, 28
      %v1108 = vpop.permute.xlu0 %1107
      %1109 = vrot.lane.b32.xlu0 %v1084, 28
      %v1110 = vpop.permute.xlu0 %1109
      %1111 = vrot.lane.b32.xlu0 %v1085, 28
      %v1112 = vpop.permute.xlu0 %1111
      %1113 = vrot.lane.b32.xlu0 %v1086, 28
      %v1114 = vpop.permute.xlu0 %1113
      %1115 = vrot.lane.b32.xlu0 %v1087, 28
      %v1116 = vpop.permute.xlu0 %1115
      %1117 = vrot.lane.b32.xlu0 %v1088, 28
      %v1118 = vpop.permute.xlu0 %1117
      %vm1129 = vcmask 257248
      %1130 = vst.msk [vmem:[#allocation2] sm:$0xf] %vm1129, %v1100
      %1131 = vst.msk [vmem:[#allocation2 + $0x4] sm:$0xf] %vm1129, %v1102
      %1132 = vst.msk [vmem:[#allocation2 + $0x8] sm:$0xf] %vm1129, %v1104
      %1133 = vst.msk [vmem:[#allocation2 + $0xc] sm:$0xf] %vm1129, %v1106
      %1134 = vst.msk [vmem:[#allocation2 + $0x10] sm:$0xf] %vm1129, %v1108
      %1135 = vst.msk [vmem:[#allocation2 + $0x14] sm:$0xf] %vm1129, %v1110
      %1136 = vst.msk [vmem:[#allocation2 + $0x18] sm:$0xf] %vm1129, %v1112
      %1137 = vst.msk [vmem:[#allocation2 + $0x1c] sm:$0xf] %vm1129, %v1114
      %1138 = vst.msk [vmem:[#allocation2 + $0x20] sm:$0xf] %vm1129, %v1116
      %1139 = vst.msk [vmem:[#allocation2 + $0x24] sm:$0xf] %vm1129, %v1118
      %v1140 = vld [vmem:[%s1014] sm:$0xf]
      %v1141 = vld [vmem:[%s1014 + $0x4] sm:$0x1]
      %v1142 = vld [vmem:[%s1014 + $0x8] sm:$0xf]
      %v1143 = vld [vmem:[%s1014 + $0xc] sm:$0x1]
      %v1144 = vld [vmem:[%s1014 + $0x10] sm:$0xf]
      %v1145 = vld [vmem:[%s1014 + $0x14] sm:$0x1]
      %v1146 = vld [vmem:[%s1014 + $0x18] sm:$0xf]
      %v1147 = vld [vmem:[%s1014 + $0x1c] sm:$0x1]
      %v1148 = vld [vmem:[%s1014 + $0x20] sm:$0xf]
      %v1149 = vld [vmem:[%s1014 + $0x24] sm:$0x1]
      %v1150 = vld [vmem:[%s1014 + $0x28] sm:$0xf]
      %v1151 = vld [vmem:[%s1014 + $0x2c] sm:$0x1]
      %v1152 = vld [vmem:[%s1014 + $0x30] sm:$0xf]
      %v1153 = vld [vmem:[%s1014 + $0x34] sm:$0x1]
      %v1154 = vld [vmem:[%s1014 + $0x38] sm:$0xf]
      %v1155 = vld [vmem:[%s1014 + $0x3c] sm:$0x1]
      %v1156 = vld [vmem:[%s1014 + $0x40] sm:$0xf]
      %v1157 = vld [vmem:[%s1014 + $0x44] sm:$0x1]
      %v1158 = vld [vmem:[%s1014 + $0x48] sm:$0xf]
      %v1159 = vld [vmem:[%s1014 + $0x4c] sm:$0x1]
      %v1161 = vshrl.u32 %v1140, 16
      %v1163 = vrot.slane %v1161, 4
      %v1164 = vshll.u32 %v1140, 16
      %v1166 = vrot.slane %v1164, 5
      %v1167 = vor.u32 %v1163, %v1166
      %v1168 = vrot.slane %v1167, 4
      %v1170 = vshll.u32 %v1141, 16
      %v1172 = vrot.slane %v1170, 5
      %v1173 = vsel %vm500, %v1168, %v1172
      %v1175 = vshrl.u32 %v1142, 16
      %v1177 = vrot.slane %v1175, 4
      %v1178 = vshll.u32 %v1142, 16
      %v1180 = vrot.slane %v1178, 5
      %v1181 = vor.u32 %v1177, %v1180
      %v1182 = vrot.slane %v1181, 4
      %v1184 = vshll.u32 %v1143, 16
      %v1186 = vrot.slane %v1184, 5
      %v1187 = vsel %vm500, %v1182, %v1186
      %v1189 = vshrl.u32 %v1144, 16
      %v1191 = vrot.slane %v1189, 4
      %v1192 = vshll.u32 %v1144, 16
      %v1194 = vrot.slane %v1192, 5
      %v1195 = vor.u32 %v1191, %v1194
      %v1196 = vrot.slane %v1195, 4
      %v1198 = vshll.u32 %v1145, 16
      %v1200 = vrot.slane %v1198, 5
      %v1201 = vsel %vm500, %v1196, %v1200
      %v1203 = vshrl.u32 %v1146, 16
      %v1205 = vrot.slane %v1203, 4
      %v1206 = vshll.u32 %v1146, 16
      %v1208 = vrot.slane %v1206, 5
      %v1209 = vor.u32 %v1205, %v1208
      %v1210 = vrot.slane %v1209, 4
      %v1212 = vshll.u32 %v1147, 16
      %v1214 = vrot.slane %v1212, 5
      %v1215 = vsel %vm500, %v1210, %v1214
      %v1217 = vshrl.u32 %v1148, 16
      %v1219 = vrot.slane %v1217, 4
      %v1220 = vshll.u32 %v1148, 16
      %v1222 = vrot.slane %v1220, 5
      %v1223 = vor.u32 %v1219, %v1222
      %v1224 = vrot.slane %v1223, 4
      %v1226 = vshll.u32 %v1149, 16
      %v1228 = vrot.slane %v1226, 5
      %v1229 = vsel %vm500, %v1224, %v1228
      %v1231 = vshrl.u32 %v1150, 16
      %v1233 = vrot.slane %v1231, 4
      %v1234 = vshll.u32 %v1150, 16
      %v1236 = vrot.slane %v1234, 5
      %v1237 = vor.u32 %v1233, %v1236
      %v1238 = vrot.slane %v1237, 4
      %v1240 = vshll.u32 %v1151, 16
      %v1242 = vrot.slane %v1240, 5
      %v1243 = vsel %vm500, %v1238, %v1242
      %v1245 = vshrl.u32 %v1152, 16
      %v1247 = vrot.slane %v1245, 4
      %v1248 = vshll.u32 %v1152, 16
      %v1250 = vrot.slane %v1248, 5
      %v1251 = vor.u32 %v1247, %v1250
      %v1252 = vrot.slane %v1251, 4
      %v1254 = vshll.u32 %v1153, 16
      %v1256 = vrot.slane %v1254, 5
      %v1257 = vsel %vm500, %v1252, %v1256
      %v1259 = vshrl.u32 %v1154, 16
      %v1261 = vrot.slane %v1259, 4
      %v1262 = vshll.u32 %v1154, 16
      %v1264 = vrot.slane %v1262, 5
      %v1265 = vor.u32 %v1261, %v1264
      %v1266 = vrot.slane %v1265, 4
      %v1268 = vshll.u32 %v1155, 16
      %v1270 = vrot.slane %v1268, 5
      %v1271 = vsel %vm500, %v1266, %v1270
      %v1273 = vshrl.u32 %v1156, 16
      %v1275 = vrot.slane %v1273, 4
      %v1276 = vshll.u32 %v1156, 16
      %v1278 = vrot.slane %v1276, 5
      %v1279 = vor.u32 %v1275, %v1278
      %v1280 = vrot.slane %v1279, 4
      %v1282 = vshll.u32 %v1157, 16
      %v1284 = vrot.slane %v1282, 5
      %v1285 = vsel %vm500, %v1280, %v1284
      %v1287 = vshrl.u32 %v1158, 16
      %v1289 = vrot.slane %v1287, 4
      %v1290 = vshll.u32 %v1158, 16
      %v1292 = vrot.slane %v1290, 5
      %v1293 = vor.u32 %v1289, %v1292
      %v1294 = vrot.slane %v1293, 4
      %v1296 = vshll.u32 %v1159, 16
      %v1298 = vrot.slane %v1296, 5
      %v1299 = vsel %vm500, %v1294, %v1298
      %1300 = vrot.lane.b32.xlu0 %v1173, 32
      %v1301 = vpop.permute.xlu0 %1300
      %1302 = vrot.lane.b32.xlu0 %v1187, 32
      %v1303 = vpop.permute.xlu0 %1302
      %1304 = vrot.lane.b32.xlu0 %v1201, 32
      %v1305 = vpop.permute.xlu0 %1304
      %1306 = vrot.lane.b32.xlu0 %v1215, 32
      %v1307 = vpop.permute.xlu0 %1306
      %1308 = vrot.lane.b32.xlu0 %v1229, 32
      %v1309 = vpop.permute.xlu0 %1308
      %1310 = vrot.lane.b32.xlu0 %v1243, 32
      %v1311 = vpop.permute.xlu0 %1310
      %1312 = vrot.lane.b32.xlu0 %v1257, 32
      %v1313 = vpop.permute.xlu0 %1312
      %1314 = vrot.lane.b32.xlu0 %v1271, 32
      %v1315 = vpop.permute.xlu0 %1314
      %1316 = vrot.lane.b32.xlu0 %v1285, 32
      %v1317 = vpop.permute.xlu0 %1316
      %1318 = vrot.lane.b32.xlu0 %v1299, 32
      %v1319 = vpop.permute.xlu0 %1318
      %vm1330 = vcmask 290048
      %1331 = vst.msk [vmem:[#allocation2] sm:$0xf] %vm1330, %v1301
      %1332 = vst.msk [vmem:[#allocation2 + $0x4] sm:$0xf] %vm1330, %v1303
      %1333 = vst.msk [vmem:[#allocation2 + $0x8] sm:$0xf] %vm1330, %v1305
      %1334 = vst.msk [vmem:[#allocation2 + $0xc] sm:$0xf] %vm1330, %v1307
      %1335 = vst.msk [vmem:[#allocation2 + $0x10] sm:$0xf] %vm1330, %v1309
      %1336 = vst.msk [vmem:[#allocation2 + $0x14] sm:$0xf] %vm1330, %v1311
      %1337 = vst.msk [vmem:[#allocation2 + $0x18] sm:$0xf] %vm1330, %v1313
      %1338 = vst.msk [vmem:[#allocation2 + $0x1c] sm:$0xf] %vm1330, %v1315
      %1339 = vst.msk [vmem:[#allocation2 + $0x20] sm:$0xf] %vm1330, %v1317
      %1340 = vst.msk [vmem:[#allocation2 + $0x24] sm:$0xf] %vm1330, %v1319
      %v1341 = vld [vmem:[#allocation2] sm:$0xf]
      %v1342 = vld [vmem:[#allocation2 + $0x4] sm:$0xf]
      %v1343 = vld [vmem:[#allocation2 + $0x8] sm:$0xf]
      %v1344 = vld [vmem:[#allocation2 + $0xc] sm:$0xf]
      %v1345 = vld [vmem:[#allocation2 + $0x10] sm:$0xf]
      %v1346 = vld [vmem:[#allocation2 + $0x14] sm:$0xf]
      %v1347 = vld [vmem:[#allocation2 + $0x18] sm:$0xf]
      %v1348 = vld [vmem:[#allocation2 + $0x1c] sm:$0xf]
      %v1349 = vld [vmem:[#allocation2 + $0x20] sm:$0xf]
      %v1350 = vld [vmem:[#allocation2 + $0x24] sm:$0xf]
      %v1351 = vld [vmem:[%s1] sm:$0xf]
      %v1352 = vld [vmem:[%s1 + $0x4] sm:$0xf]
      %v1353 = vld [vmem:[%s1 + $0x8] sm:$0xf]
      %v1354 = vld [vmem:[%s1 + $0xc] sm:$0xf]
      %v1355 = vld [vmem:[%s1 + $0x10] sm:$0x3]
      %v1366 = vunpack.c.l.b16 %v1341
      %v1367 = vunpack.c.l.b16 %v1342
      %v1368 = vunpack.c.l.b16 %v1343
      %v1369 = vunpack.c.l.b16 %v1344
      %v1370 = vunpack.c.l.b16 %v1345
      %v1371 = vunpack.c.l.b16 %v1346
      %v1372 = vunpack.c.l.b16 %v1347
      %v1373 = vunpack.c.l.b16 %v1348
      %v1374 = vunpack.c.l.b16 %v1349
      %v1375 = vunpack.c.l.b16 %v1350
      %v1376 = vpack.c.b16 %v1367, %v1366
      %v1377 = vpack.c.b16 %v1369, %v1368
      %v1378 = vpack.c.b16 %v1371, %v1370
      %v1379 = vpack.c.b16 %v1373, %v1372
      %v1380 = vpack.c.b16 %v1375, %v1374
      %v1386 = vunpack.c.l.b16 %v1351
      %v1387 = vunpack.c.l.b16 %v1352
      %v1388 = vunpack.c.l.b16 %v1353
      %v1389 = vunpack.c.l.b16 %v1354
      %v1390 = vunpack.c.l.b16 %v1355
      %v1391 = vpack.c.b16 %v1387, %v1386
      %v1392 = vpack.c.b16 %v1389, %v1388
      %v1393 = vpack.c.b16 %v1390, %v1390
      %vm1396 = vcmask 293888
      %v1398 = vsel %vm1396, %v1376, 0
      %v1401 = vsel %vm1396, %v1377, 0
      %v1404 = vsel %vm1396, %v1378, 0
      %v1407 = vsel %vm1396, %v1379, 0
      %v1410 = vsel %vm1396, %v1380, 0
      %vm1412 = vcmask 1041408
      %v1414 = vsel %vm1412, %v1393, 0
      %1416 = vmatprep.subr.bf16.mxu0 0
      %1417 = vmatpush1.bf16.msra.mxu0 %v1391
      %1418 = vmatprep.subr.bf16.mxu0 0
      %1419 = vmatpush1.bf16.msra.mxu0 %v1392
      %1420 = vmatprep.subr.bf16.mxu0 0
      %1421 = vmatpush1.bf16.msra.mxu0 %v1414
      %1422 = vmatprep.subr.bf16.mxu0 0
      %1423 = vmatpush1.bf16.msra.mxu0 0
      %1424 = vmatprep.subr.bf16.mxu0 0
      %1425 = vmatpush1.bf16.msra.mxu0 0
      %1426 = vmatprep.subr.bf16.mxu0 0
      %1427 = vmatpush1.bf16.msra.mxu0 0
      %1428 = vmatprep.subr.bf16.mxu0 0
      %1429 = vmatpush1.bf16.msra.mxu0 0
      %1430 = vmatprep.subr.bf16.mxu0 0
      %1431 = vmatpush1.bf16.msra.mxu0 0
      %1432 = vmatprep.subr.bf16.mxu0 0
      %1433 = vmatpush1.bf16.msra.mxu0 0
      %1434 = vmatprep.subr.bf16.mxu0 0
      %1435 = vmatpush1.bf16.msra.mxu0 0
      %1436 = vmatprep.subr.bf16.mxu0 0
      %1437 = vmatpush1.bf16.msra.mxu0 0
      %1438 = vmatprep.subr.bf16.mxu0 0
      %1439 = vmatpush1.bf16.msra.mxu0 0
      %1440 = vmatprep.subr.bf16.mxu0 0
      %1441 = vmatpush1.bf16.msra.mxu0 0
      %1442 = vmatprep.subr.bf16.mxu0 0
      %1443 = vmatpush1.bf16.msra.mxu0 0
      %1444 = vmatprep.subr.bf16.mxu0 0
      %1445 = vmatpush1.bf16.msra.mxu0 0
      %1446 = vmatprep.subr.bf16.mxu0 0
      %1447 = vmatpush1.bf16.msra.mxu0 0
      %1448 = vmatprep.mubr.bf16.mxu0 0
      %1449 = vmatmul.mubr.bf16.gmra.mrb[0].mxu0 %v1398
      %v1450 = vpop.f32.mrb[0].mxu0
      %v1451 = vadd.f32 0.0, %v1450
      %v1452 = vpop.f32.mrb[0].mxu0
      %v1453 = vpop.f32.mrb[0].mxu0
      %v1454 = vadd.f32 0.0, %v1453
      %v1455 = vpop.f32.mrb[0].mxu0
      %1456 = vmatprep.mubr.bf16.mxu0 0
      %1457 = vmatmul.mubr.bf16.gmra.mrb[0].mxu0 %v1401
      %v1458 = vpop.f32.mrb[0].mxu0
      %v1459 = vadd.f32 0.0, %v1458
      %v1460 = vpop.f32.mrb[0].mxu0
      %v1461 = vpop.f32.mrb[0].mxu0
      %v1462 = vadd.f32 0.0, %v1461
      %v1463 = vpop.f32.mrb[0].mxu0
      %1464 = vmatprep.mubr.bf16.mxu0 0
      %1465 = vmatmul.mubr.bf16.gmra.mrb[0].mxu0 %v1404
      %v1466 = vpop.f32.mrb[0].mxu0
      %v1467 = vadd.f32 0.0, %v1466
      %v1468 = vpop.f32.mrb[0].mxu0
      %v1469 = vpop.f32.mrb[0].mxu0
      %v1470 = vadd.f32 0.0, %v1469
      %v1471 = vpop.f32.mrb[0].mxu0
      %1472 = vmatprep.mubr.bf16.mxu0 0
      %1473 = vmatmul.mubr.bf16.gmra.mrb[0].mxu0 %v1407
      %v1474 = vpop.f32.mrb[0].mxu0
      %v1475 = vadd.f32 0.0, %v1474
      %v1476 = vpop.f32.mrb[0].mxu0
      %v1477 = vpop.f32.mrb[0].mxu0
      %v1478 = vadd.f32 0.0, %v1477
      %v1479 = vpop.f32.mrb[0].mxu0
      %1480 = vmatprep.mubr.bf16.mxu0 0
      %1481 = vmatmul.mubr.bf16.gmra.mrb[0].mxu0 %v1410
      %v1482 = vpop.f32.mrb[0].mxu0
      %v1483 = vadd.f32 0.0, %v1482
      %v1484 = vpop.f32.mrb[0].mxu0
      %v1485 = vpop.f32.mrb[0].mxu0
      %v1486 = vadd.f32 0.0, %v1485
      %v1487 = vpop.f32.mrb[0].mxu0
      %1488 = vdwg.mxu0
      %v1489 = vld [vmem:[%s2] sm:$0x1]
      %v1491 = vlaneseq
      %v1492 = vshrl.u32 %v1491, 7
      %v1493 = vsub.s32 0, %v1492
      %v1494 = vrot.slane %v1489, %v1493
      %v1496 = vmul.f32 %v1451, %v1494
      %v1497 = vmul.f32 %v1454, %v1494
      %v1498 = vmul.f32 %v1459, %v1494
      %v1499 = vmul.f32 %v1462, %v1494
      %v1500 = vmul.f32 %v1467, %v1494
      %v1501 = vmul.f32 %v1470, %v1494
      %v1502 = vmul.f32 %v1475, %v1494
      %v1503 = vmul.f32 %v1478, %v1494
      %v1504 = vmul.f32 %v1483, %v1494
      %v1505 = vmul.f32 %v1486, %v1494
      %v1506 = vld [vmem:[%s3] sm:$0x1]
      %v1508 = vlaneseq
      %v1509 = vshrl.u32 %v1508, 7
      %v1510 = vsub.s32 0, %v1509
      %v1511 = vrot.slane %v1506, %v1510
      %v1513 = vadd.f32 %v1496, %v1511
      %v1514 = vadd.f32 %v1497, %v1511
      %v1515 = vadd.f32 %v1498, %v1511
      %v1516 = vadd.f32 %v1499, %v1511
      %v1517 = vadd.f32 %v1500, %v1511
      %v1518 = vadd.f32 %v1501, %v1511
      %v1519 = vadd.f32 %v1502, %v1511
      %v1520 = vadd.f32 %v1503, %v1511
      %v1521 = vadd.f32 %v1504, %v1511
      %v1522 = vadd.f32 %v1505, %v1511
      %v1523 = vmax.f32 %v1513, 0.0
      %v1524 = vmax.f32 %v1514, 0.0
      %v1525 = vmax.f32 %v1515, 0.0
      %v1526 = vmax.f32 %v1516, 0.0
      %v1527 = vmax.f32 %v1517, 0.0
      %v1528 = vmax.f32 %v1518, 0.0
      %v1529 = vmax.f32 %v1519, 0.0
      %v1530 = vmax.f32 %v1520, 0.0
      %v1531 = vmax.f32 %v1521, 0.0
      %v1532 = vmax.f32 %v1522, 0.0
      %v1533 = vpack.c.bf16 %v1523, %v1523
      %v1534 = vpack.c.bf16 %v1524, %v1524
      %v1535 = vpack.c.bf16 %v1525, %v1525
      %v1536 = vpack.c.bf16 %v1526, %v1526
      %v1537 = vpack.c.bf16 %v1527, %v1527
      %v1538 = vpack.c.bf16 %v1528, %v1528
      %v1539 = vpack.c.bf16 %v1529, %v1529
      %v1540 = vpack.c.bf16 %v1530, %v1530
      %v1541 = vpack.c.bf16 %v1531, %v1531
      %v1542 = vpack.c.bf16 %v1532, %v1532
      %v1553 = vunpack.c.l.b16 %v1533
      %v1554 = vunpack.c.l.b16 %v1534
      %v1555 = vunpack.c.l.b16 %v1535
      %v1556 = vunpack.c.l.b16 %v1536
      %v1557 = vunpack.c.l.b16 %v1537
      %v1558 = vunpack.c.l.b16 %v1538
      %v1559 = vunpack.c.l.b16 %v1539
      %v1560 = vunpack.c.l.b16 %v1540
      %v1561 = vunpack.c.l.b16 %v1541
      %v1562 = vunpack.c.l.b16 %v1542
      %v1563 = vpack.c.b16 %v1553, %v1553
      %v1564 = vpack.c.b16 %v1554, %v1554
      %v1565 = vpack.c.b16 %v1555, %v1555
      %v1566 = vpack.c.b16 %v1556, %v1556
      %v1567 = vpack.c.b16 %v1557, %v1557
      %v1568 = vpack.c.b16 %v1558, %v1558
      %v1569 = vpack.c.b16 %v1559, %v1559
      %v1570 = vpack.c.b16 %v1560, %v1560
      %v1571 = vpack.c.b16 %v1561, %v1561
      %v1572 = vpack.c.b16 %v1562, %v1562
      %v1574 = vshrl.u32 %v1563, 16
      %v1576 = vrot.slane %v1574, 7
      %v1577 = vshll.u32 %v1563, 16
      %v1579 = vor.u32 %v1576, %v1577
      %v1580 = vrot.slane %v1576, 4
      %v1582 = vshrl.u32 %v1564, 16
      %v1584 = vrot.slane %v1582, 7
      %v1585 = vshll.u32 %v1564, 16
      %v1587 = vor.u32 %v1584, %v1585
      %v1588 = vrot.slane %v1584, 4
      %v1590 = vshrl.u32 %v1565, 16
      %v1592 = vrot.slane %v1590, 7
      %v1593 = vshll.u32 %v1565, 16
      %v1595 = vor.u32 %v1592, %v1593
      %v1596 = vrot.slane %v1592, 4
      %v1598 = vshrl.u32 %v1566, 16
      %v1600 = vrot.slane %v1598, 7
      %v1601 = vshll.u32 %v1566, 16
      %v1603 = vor.u32 %v1600, %v1601
      %v1604 = vrot.slane %v1600, 4
      %v1606 = vshrl.u32 %v1567, 16
      %v1608 = vrot.slane %v1606, 7
      %v1609 = vshll.u32 %v1567, 16
      %v1611 = vor.u32 %v1608, %v1609
      %v1612 = vrot.slane %v1608, 4
      %v1614 = vshrl.u32 %v1568, 16
      %v1616 = vrot.slane %v1614, 7
      %v1617 = vshll.u32 %v1568, 16
      %v1619 = vor.u32 %v1616, %v1617
      %v1620 = vrot.slane %v1616, 4
      %v1622 = vshrl.u32 %v1569, 16
      %v1624 = vrot.slane %v1622, 7
      %v1625 = vshll.u32 %v1569, 16
      %v1627 = vor.u32 %v1624, %v1625
      %v1628 = vrot.slane %v1624, 4
      %v1630 = vshrl.u32 %v1570, 16
      %v1632 = vrot.slane %v1630, 7
      %v1633 = vshll.u32 %v1570, 16
      %v1635 = vor.u32 %v1632, %v1633
      %v1636 = vrot.slane %v1632, 4
      %v1638 = vshrl.u32 %v1571, 16
      %v1640 = vrot.slane %v1638, 7
      %v1641 = vshll.u32 %v1571, 16
      %v1643 = vor.u32 %v1640, %v1641
      %v1644 = vrot.slane %v1640, 4
      %v1646 = vshrl.u32 %v1572, 16
      %v1648 = vrot.slane %v1646, 7
      %v1649 = vshll.u32 %v1572, 16
      %v1651 = vor.u32 %v1648, %v1649
      %v1652 = vrot.slane %v1648, 4
      %vm1673 = vcmask 60416
      %vm1674 = vsmask.f32 7938
      %vm1675 = vmand %vm1673, %vm1674
      %v1676 = vld [vmem:[#allocation4] sm:$0xf]
      %v1677 = vsel %vm1675, %v1579, %v1676
      %1678 = vst [vmem:[#allocation4] sm:$0xf] %v1677
      %vm1679 = vcmask 57344
      %vm1680 = vsmask.f32 256
      %vm1681 = vmand %vm1679, %vm1680
      %v1682 = vld [vmem:[#allocation4 + $0x4] sm:$0x1]
      %v1683 = vsel %vm1681, %v1580, %v1682
      %1684 = vst [vmem:[#allocation4 + $0x4] sm:$0x1] %v1683
      %v1685 = vld [vmem:[#allocation4 + $0x8] sm:$0xf]
      %v1686 = vsel %vm1675, %v1587, %v1685
      %1687 = vst [vmem:[#allocation4 + $0x8] sm:$0xf] %v1686
      %v1688 = vld [vmem:[#allocation4 + $0xc] sm:$0x1]
      %v1689 = vsel %vm1681, %v1588, %v1688
      %1690 = vst [vmem:[#allocation4 + $0xc] sm:$0x1] %v1689
      %v1691 = vld [vmem:[#allocation4 + $0x10] sm:$0xf]
      %v1692 = vsel %vm1675, %v1595, %v1691
      %1693 = vst [vmem:[#allocation4 + $0x10] sm:$0xf] %v1692
      %v1694 = vld [vmem:[#allocation4 + $0x14] sm:$0x1]
      %v1695 = vsel %vm1681, %v1596, %v1694
      %1696 = vst [vmem:[#allocation4 + $0x14] sm:$0x1] %v1695
      %v1697 = vld [vmem:[#allocation4 + $0x18] sm:$0xf]
      %v1698 = vsel %vm1675, %v1603, %v1697
      %1699 = vst [vmem:[#allocation4 + $0x18] sm:$0xf] %v1698
      %v1700 = vld [vmem:[#allocation4 + $0x1c] sm:$0x1]
      %v1701 = vsel %vm1681, %v1604, %v1700
      %1702 = vst [vmem:[#allocation4 + $0x1c] sm:$0x1] %v1701
      %v1703 = vld [vmem:[#allocation4 + $0x20] sm:$0xf]
      %v1704 = vsel %vm1675, %v1611, %v1703
      %1705 = vst [vmem:[#allocation4 + $0x20] sm:$0xf] %v1704
      %v1706 = vld [vmem:[#allocation4 + $0x24] sm:$0x1]
      %v1707 = vsel %vm1681, %v1612, %v1706
      %1708 = vst [vmem:[#allocation4 + $0x24] sm:$0x1] %v1707
      %v1709 = vld [vmem:[#allocation4 + $0x28] sm:$0xf]
      %v1710 = vsel %vm1675, %v1619, %v1709
      %1711 = vst [vmem:[#allocation4 + $0x28] sm:$0xf] %v1710
      %v1712 = vld [vmem:[#allocation4 + $0x2c] sm:$0x1]
      %v1713 = vsel %vm1681, %v1620, %v1712
      %1714 = vst [vmem:[#allocation4 + $0x2c] sm:$0x1] %v1713
      %v1715 = vld [vmem:[#allocation4 + $0x30] sm:$0xf]
      %v1716 = vsel %vm1675, %v1627, %v1715
      %1717 = vst [vmem:[#allocation4 + $0x30] sm:$0xf] %v1716
      %v1718 = vld [vmem:[#allocation4 + $0x34] sm:$0x1]
      %v1719 = vsel %vm1681, %v1628, %v1718
      %1720 = vst [vmem:[#allocation4 + $0x34] sm:$0x1] %v1719
      %v1721 = vld [vmem:[#allocation4 + $0x38] sm:$0xf]
      %v1722 = vsel %vm1675, %v1635, %v1721
      %1723 = vst [vmem:[#allocation4 + $0x38] sm:$0xf] %v1722
      %v1724 = vld [vmem:[#allocation4 + $0x3c] sm:$0x1]
      %v1725 = vsel %vm1681, %v1636, %v1724
      %1726 = vst [vmem:[#allocation4 + $0x3c] sm:$0x1] %v1725
      %v1727 = vld [vmem:[#allocation4 + $0x40] sm:$0xf]
      %v1728 = vsel %vm1675, %v1643, %v1727
      %1729 = vst [vmem:[#allocation4 + $0x40] sm:$0xf] %v1728
      %v1730 = vld [vmem:[#allocation4 + $0x44] sm:$0x1]
      %v1731 = vsel %vm1681, %v1644, %v1730
      %1732 = vst [vmem:[#allocation4 + $0x44] sm:$0x1] %v1731
      %v1733 = vld [vmem:[#allocation4 + $0x48] sm:$0xf]
      %v1734 = vsel %vm1675, %v1651, %v1733
      %1735 = vst [vmem:[#allocation4 + $0x48] sm:$0xf] %v1734
      %v1736 = vld [vmem:[#allocation4 + $0x4c] sm:$0x1]
      %v1737 = vsel %vm1681, %v1652, %v1736
      %1738 = vst [vmem:[#allocation4 + $0x4c] sm:$0x1] %v1737
      %v1739 = vld [vmem:[#allocation4] sm:$0x1]
      %v1740 = vsel %vm1681, 0, %v1739
      %1741 = vst [vmem:[#allocation4] sm:$0x1] %v1740
      %v1742 = vld [vmem:[#allocation4 + $0x8] sm:$0x1]
      %v1743 = vsel %vm1681, 0, %v1742
      %1744 = vst [vmem:[#allocation4 + $0x8] sm:$0x1] %v1743
      %v1745 = vld [vmem:[#allocation4 + $0x10] sm:$0x1]
      %v1746 = vsel %vm1681, 0, %v1745
      %1747 = vst [vmem:[#allocation4 + $0x10] sm:$0x1] %v1746
      %v1748 = vld [vmem:[#allocation4 + $0x18] sm:$0x1]
      %v1749 = vsel %vm1681, 0, %v1748
      %1750 = vst [vmem:[#allocation4 + $0x18] sm:$0x1] %v1749
      %v1751 = vld [vmem:[#allocation4 + $0x20] sm:$0x1]
      %v1752 = vsel %vm1681, 0, %v1751
      %1753 = vst [vmem:[#allocation4 + $0x20] sm:$0x1] %v1752
      %v1754 = vld [vmem:[#allocation4 + $0x28] sm:$0x1]
      %v1755 = vsel %vm1681, 0, %v1754
      %1756 = vst [vmem:[#allocation4 + $0x28] sm:$0x1] %v1755
      %v1757 = vld [vmem:[#allocation4 + $0x30] sm:$0x1]
      %v1758 = vsel %vm1681, 0, %v1757
      %1759 = vst [vmem:[#allocation4 + $0x30] sm:$0x1] %v1758
      %v1760 = vld [vmem:[#allocation4 + $0x38] sm:$0x1]
      %v1761 = vsel %vm1681, 0, %v1760
      %1762 = vst [vmem:[#allocation4 + $0x38] sm:$0x1] %v1761
      %v1763 = vld [vmem:[#allocation4 + $0x40] sm:$0x1]
      %v1764 = vsel %vm1681, 0, %v1763
      %1765 = vst [vmem:[#allocation4 + $0x40] sm:$0x1] %v1764
      %v1766 = vld [vmem:[#allocation4 + $0x48] sm:$0x1]
      %v1767 = vsel %vm1681, 0, %v1766
      %1768 = vst [vmem:[#allocation4 + $0x48] sm:$0x1] %v1767
      %vm1769 = vmand %vm1679, %vm1674
      %v1770 = vld [vmem:[#allocation4 + $0x4] sm:$0x1]
      %v1771 = vsel %vm1769, 0, %v1770
      %1772 = vst [vmem:[#allocation4 + $0x4] sm:$0x1] %v1771
      %v1773 = vld [vmem:[#allocation4 + $0xc] sm:$0x1]
      %v1774 = vsel %vm1769, 0, %v1773
      %1775 = vst [vmem:[#allocation4 + $0xc] sm:$0x1] %v1774
      %v1776 = vld [vmem:[#allocation4 + $0x14] sm:$0x1]
      %v1777 = vsel %vm1769, 0, %v1776
      %1778 = vst [vmem:[#allocation4 + $0x14] sm:$0x1] %v1777
      %v1779 = vld [vmem:[#allocation4 + $0x1c] sm:$0x1]
      %v1780 = vsel %vm1769, 0, %v1779
      %1781 = vst [vmem:[#allocation4 + $0x1c] sm:$0x1] %v1780
      %v1782 = vld [vmem:[#allocation4 + $0x24] sm:$0x1]
      %v1783 = vsel %vm1769, 0, %v1782
      %1784 = vst [vmem:[#allocation4 + $0x24] sm:$0x1] %v1783
      %v1785 = vld [vmem:[#allocation4 + $0x2c] sm:$0x1]
      %v1786 = vsel %vm1769, 0, %v1785
      %1787 = vst [vmem:[#allocation4 + $0x2c] sm:$0x1] %v1786
      %v1788 = vld [vmem:[#allocation4 + $0x34] sm:$0x1]
      %v1789 = vsel %vm1769, 0, %v1788
      %1790 = vst [vmem:[#allocation4 + $0x34] sm:$0x1] %v1789
      %v1791 = vld [vmem:[#allocation4 + $0x3c] sm:$0x1]
      %v1792 = vsel %vm1769, 0, %v1791
      %1793 = vst [vmem:[#allocation4 + $0x3c] sm:$0x1] %v1792
      %v1794 = vld [vmem:[#allocation4 + $0x44] sm:$0x1]
      %v1795 = vsel %vm1769, 0, %v1794
      %1796 = vst [vmem:[#allocation4 + $0x44] sm:$0x1] %v1795
      %v1797 = vld [vmem:[#allocation4 + $0x4c] sm:$0x1]
      %v1798 = vsel %vm1769, 0, %v1797
      %1799 = vst [vmem:[#allocation4 + $0x4c] sm:$0x1] %v1798
      %p1800 = scmp.eq.s32.totalorder %s26, 0
      // Predicated region
      $region61: #{res_block_forward.1} parent=59 // pred_check
        %p1801 = pneg %p1800
      $region62: #{res_block_forward.1} parent=59 // pred_check_branch
        %1803 = sbr.rel (%p1801) target = $region64
      $region63: #{res_block_forward.1} parent=59 // pred_region
        %vm1804 = vcmask 60416
        %1805 = vst.msk [vmem:[#allocation4] sm:$0xf] %vm1804, 0
        %vm1806 = vcmask 57344
        %1807 = vst.msk [vmem:[#allocation4 + $0x4] sm:$0x1] %vm1806, 0
        %s1808 = scalar_lea.vmem [#allocation4], 72
        %1809 = vst.msk [vmem:[%s1808] sm:$0xf] %vm1804, 0
        %1810 = vst.msk [vmem:[%s1808 + $0x4] sm:$0x1] %vm1806, 0
      $region64: #{res_block_forward.1} parent=59 // pred_fallthru
        _
      %s1811 = scalar_lea.vmem [#allocation2], 4
      %v1812 = vld [vmem:[%s1811] sm:$0xf]
      %v1813 = vld [vmem:[%s1811 + $0x4] sm:$0xf]
      %v1814 = vld [vmem:[%s1811 + $0x8] sm:$0xf]
      %v1815 = vld [vmem:[%s1811 + $0xc] sm:$0xf]
      %v1816 = vld [vmem:[%s1811 + $0x10] sm:$0xf]
      %v1817 = vld [vmem:[%s1811 + $0x14] sm:$0xf]
      %v1818 = vld [vmem:[%s1811 + $0x18] sm:$0xf]
      %v1819 = vld [vmem:[%s1811 + $0x1c] sm:$0xf]
      %v1820 = vld [vmem:[%s4] sm:$0xf]
      %v1821 = vld [vmem:[%s4 + $0x4] sm:$0xf]
      %v1822 = vld [vmem:[%s4 + $0x8] sm:$0xf]
      %v1823 = vld [vmem:[%s4 + $0xc] sm:$0xf]
      %v1824 = vld [vmem:[%s4 + $0x10] sm:$0x3]
      %v1833 = vunpack.c.l.b16 %v1812
      %v1834 = vunpack.c.l.b16 %v1813
      %v1835 = vunpack.c.l.b16 %v1814
      %v1836 = vunpack.c.l.b16 %v1815
      %v1837 = vunpack.c.l.b16 %v1816
      %v1838 = vunpack.c.l.b16 %v1817
      %v1839 = vunpack.c.l.b16 %v1818
      %v1840 = vunpack.c.l.b16 %v1819
      %v1841 = vpack.c.b16 %v1834, %v1833
      %v1842 = vpack.c.b16 %v1836, %v1835
      %v1843 = vpack.c.b16 %v1838, %v1837
      %v1844 = vpack.c.b16 %v1840, %v1839
      %v1850 = vunpack.c.l.b16 %v1820
      %v1851 = vunpack.c.l.b16 %v1821
      %v1852 = vunpack.c.l.b16 %v1822
      %v1853 = vunpack.c.l.b16 %v1823
      %v1854 = vunpack.c.l.b16 %v1824
      %v1855 = vpack.c.b16 %v1851, %v1850
      %v1856 = vpack.c.b16 %v1853, %v1852
      %v1857 = vpack.c.b16 %v1854, %v1854
      %v1861 = vsel %vm1396, %v1841, 0
      %v1864 = vsel %vm1396, %v1842, 0
      %v1867 = vsel %vm1396, %v1843, 0
      %v1870 = vsel %vm1396, %v1844, 0
      %v1873 = vsel %vm1412, %v1857, 0
      %1875 = vmatprep.subr.bf16.mxu0 0
      %1876 = vmatpush1.bf16.msra.mxu0 %v1855
      %1877 = vmatprep.subr.bf16.mxu0 0
      %1878 = vmatpush1.bf16.msra.mxu0 %v1856
      %1879 = vmatprep.subr.bf16.mxu0 0
      %1880 = vmatpush1.bf16.msra.mxu0 %v1873
      %1881 = vmatprep.subr.bf16.mxu0 0
      %1882 = vmatpush1.bf16.msra.mxu0 0
      %1883 = vmatprep.subr.bf16.mxu0 0
      %1884 = vmatpush1.bf16.msra.mxu0 0
      %1885 = vmatprep.subr.bf16.mxu0 0
      %1886 = vmatpush1.bf16.msra.mxu0 0
      %1887 = vmatprep.subr.bf16.mxu0 0
      %1888 = vmatpush1.bf16.msra.mxu0 0
      %1889 = vmatprep.subr.bf16.mxu0 0
      %1890 = vmatpush1.bf16.msra.mxu0 0
      %1891 = vmatprep.subr.bf16.mxu0 0
      %1892 = vmatpush1.bf16.msra.mxu0 0
      %1893 = vmatprep.subr.bf16.mxu0 0
      %1894 = vmatpush1.bf16.msra.mxu0 0
      %1895 = vmatprep.subr.bf16.mxu0 0
      %1896 = vmatpush1.bf16.msra.mxu0 0
      %1897 = vmatprep.subr.bf16.mxu0 0
      %1898 = vmatpush1.bf16.msra.mxu0 0
      %1899 = vmatprep.subr.bf16.mxu0 0
      %1900 = vmatpush1.bf16.msra.mxu0 0
      %1901 = vmatprep.subr.bf16.mxu0 0
      %1902 = vmatpush1.bf16.msra.mxu0 0
      %1903 = vmatprep.subr.bf16.mxu0 0
      %1904 = vmatpush1.bf16.msra.mxu0 0
      %1905 = vmatprep.subr.bf16.mxu0 0
      %1906 = vmatpush1.bf16.msra.mxu0 0
      %1907 = vmatprep.mubr.bf16.mxu0 0
      %1908 = vmatmul.mubr.bf16.gmra.mrb[0].mxu0 %v1861
      %v1909 = vpop.f32.mrb[0].mxu0
      %v1910 = vadd.f32 0.0, %v1909
      %v1911 = vpop.f32.mrb[0].mxu0
      %v1912 = vpop.f32.mrb[0].mxu0
      %v1913 = vadd.f32 0.0, %v1912
      %v1914 = vpop.f32.mrb[0].mxu0
      %1915 = vmatprep.mubr.bf16.mxu0 0
      %1916 = vmatmul.mubr.bf16.gmra.mrb[0].mxu0 %v1864
      %v1917 = vpop.f32.mrb[0].mxu0
      %v1918 = vadd.f32 0.0, %v1917
      %v1919 = vpop.f32.mrb[0].mxu0
      %v1920 = vpop.f32.mrb[0].mxu0
      %v1921 = vadd.f32 0.0, %v1920
      %v1922 = vpop.f32.mrb[0].mxu0
      %1923 = vmatprep.mubr.bf16.mxu0 0
      %1924 = vmatmul.mubr.bf16.gmra.mrb[0].mxu0 %v1867
      %v1925 = vpop.f32.mrb[0].mxu0
      %v1926 = vadd.f32 0.0, %v1925
      %v1927 = vpop.f32.mrb[0].mxu0
      %v1928 = vpop.f32.mrb[0].mxu0
      %v1929 = vadd.f32 0.0, %v1928
      %v1930 = vpop.f32.mrb[0].mxu0
      %1931 = vmatprep.mubr.bf16.mxu0 0
      %1932 = vmatmul.mubr.bf16.gmra.mrb[0].mxu0 %v1870
      %v1933 = vpop.f32.mrb[0].mxu0
      %v1934 = vadd.f32 0.0, %v1933
      %v1935 = vpop.f32.mrb[0].mxu0
      %v1936 = vpop.f32.mrb[0].mxu0
      %v1937 = vadd.f32 0.0, %v1936
      %v1938 = vpop.f32.mrb[0].mxu0
      %1939 = vdwg.mxu0
      %v1940 = vld [vmem:[%s5] sm:$0x1]
      %v1942 = vlaneseq
      %v1943 = vshrl.u32 %v1942, 7
      %v1944 = vsub.s32 0, %v1943
      %v1945 = vrot.slane %v1940, %v1944
      %v1947 = vmul.f32 %v1910, %v1945
      %v1948 = vmul.f32 %v1913, %v1945
      %v1949 = vmul.f32 %v1918, %v1945
      %v1950 = vmul.f32 %v1921, %v1945
      %v1951 = vmul.f32 %v1926, %v1945
      %v1952 = vmul.f32 %v1929, %v1945
      %v1953 = vmul.f32 %v1934, %v1945
      %v1954 = vmul.f32 %v1937, %v1945
      %v1955 = vld [vmem:[%s6] sm:$0x1]
      %v1957 = vlaneseq
      %v1958 = vshrl.u32 %v1957, 7
      %v1959 = vsub.s32 0, %v1958
      %v1960 = vrot.slane %v1955, %v1959
      %v1962 = vadd.f32 %v1947, %v1960
      %v1963 = vadd.f32 %v1948, %v1960
      %v1964 = vadd.f32 %v1949, %v1960
      %v1965 = vadd.f32 %v1950, %v1960
      %v1966 = vadd.f32 %v1951, %v1960
      %v1967 = vadd.f32 %v1952, %v1960
      %v1968 = vadd.f32 %v1953, %v1960
      %v1969 = vadd.f32 %v1954, %v1960
      %v1970 = vld [vmem:[#allocation4] sm:$0xf]
      %v1971 = vld [vmem:[#allocation4 + $0x8] sm:$0xf]
      %v1972 = vld [vmem:[#allocation4 + $0x10] sm:$0xf]
      %v1973 = vld [vmem:[#allocation4 + $0x18] sm:$0xf]
      %v1974 = vld [vmem:[#allocation4 + $0x20] sm:$0xf]
      %v1975 = vld [vmem:[#allocation4 + $0x28] sm:$0xf]
      %v1976 = vld [vmem:[#allocation4 + $0x30] sm:$0xf]
      %v1977 = vld [vmem:[#allocation4 + $0x38] sm:$0xf]
      %vm1978 = vcmask 60416
      %1979 = vst.msk [vmem:[#allocation3] sm:$0xf] %vm1978, %v1970
      %1980 = vst.msk [vmem:[#allocation3 + $0x4] sm:$0xf] %vm1978, %v1971
      %1981 = vst.msk [vmem:[#allocation3 + $0x8] sm:$0xf] %vm1978, %v1972
      %1982 = vst.msk [vmem:[#allocation3 + $0xc] sm:$0xf] %vm1978, %v1973
      %1983 = vst.msk [vmem:[#allocation3 + $0x10] sm:$0xf] %vm1978, %v1974
      %1984 = vst.msk [vmem:[#allocation3 + $0x14] sm:$0xf] %vm1978, %v1975
      %1985 = vst.msk [vmem:[#allocation3 + $0x18] sm:$0xf] %vm1978, %v1976
      %1986 = vst.msk [vmem:[#allocation3 + $0x1c] sm:$0xf] %vm1978, %v1977
      %v1987 = vld [vmem:[#allocation4] sm:$0xf]
      %v1988 = vld [vmem:[#allocation4 + $0x4] sm:$0x1]
      %v1989 = vld [vmem:[#allocation4 + $0x8] sm:$0xf]
      %v1990 = vld [vmem:[#allocation4 + $0xc] sm:$0x1]
      %v1991 = vld [vmem:[#allocation4 + $0x10] sm:$0xf]
      %v1992 = vld [vmem:[#allocation4 + $0x14] sm:$0x1]
      %v1993 = vld [vmem:[#allocation4 + $0x18] sm:$0xf]
      %v1994 = vld [vmem:[#allocation4 + $0x1c] sm:$0x1]
      %v1995 = vld [vmem:[#allocation4 + $0x20] sm:$0xf]
      %v1996 = vld [vmem:[#allocation4 + $0x24] sm:$0x1]
      %v1997 = vld [vmem:[#allocation4 + $0x28] sm:$0xf]
      %v1998 = vld [vmem:[#allocation4 + $0x2c] sm:$0x1]
      %v1999 = vld [vmem:[#allocation4 + $0x30] sm:$0xf]
      %v2000 = vld [vmem:[#allocation4 + $0x34] sm:$0x1]
      %v2001 = vld [vmem:[#allocation4 + $0x38] sm:$0xf]
      %v2002 = vld [vmem:[#allocation4 + $0x3c] sm:$0x1]
      %v2004 = vshrl.u32 %v1987, 16
      %v2006 = vrot.slane %v2004, 4
      %v2007 = vshll.u32 %v1987, 16
      %v2009 = vrot.slane %v2007, 5
      %v2010 = vor.u32 %v2006, %v2009
      %v2011 = vrot.slane %v2010, 4
      %v2013 = vshll.u32 %v1988, 16
      %v2015 = vrot.slane %v2013, 5
      %v2016 = vsel %vm500, %v2011, %v2015
      %v2018 = vshrl.u32 %v1989, 16
      %v2020 = vrot.slane %v2018, 4
      %v2021 = vshll.u32 %v1989, 16
      %v2023 = vrot.slane %v2021, 5
      %v2024 = vor.u32 %v2020, %v2023
      %v2025 = vrot.slane %v2024, 4
      %v2027 = vshll.u32 %v1990, 16
      %v2029 = vrot.slane %v2027, 5
      %v2030 = vsel %vm500, %v2025, %v2029
      %v2032 = vshrl.u32 %v1991, 16
      %v2034 = vrot.slane %v2032, 4
      %v2035 = vshll.u32 %v1991, 16
      %v2037 = vrot.slane %v2035, 5
      %v2038 = vor.u32 %v2034, %v2037
      %v2039 = vrot.slane %v2038, 4
      %v2041 = vshll.u32 %v1992, 16
      %v2043 = vrot.slane %v2041, 5
      %v2044 = vsel %vm500, %v2039, %v2043
      %v2046 = vshrl.u32 %v1993, 16
      %v2048 = vrot.slane %v2046, 4
      %v2049 = vshll.u32 %v1993, 16
      %v2051 = vrot.slane %v2049, 5
      %v2052 = vor.u32 %v2048, %v2051
      %v2053 = vrot.slane %v2052, 4
      %v2055 = vshll.u32 %v1994, 16
      %v2057 = vrot.slane %v2055, 5
      %v2058 = vsel %vm500, %v2053, %v2057
      %v2060 = vshrl.u32 %v1995, 16
      %v2062 = vrot.slane %v2060, 4
      %v2063 = vshll.u32 %v1995, 16
      %v2065 = vrot.slane %v2063, 5
      %v2066 = vor.u32 %v2062, %v2065
      %v2067 = vrot.slane %v2066, 4
      %v2069 = vshll.u32 %v1996, 16
      %v2071 = vrot.slane %v2069, 5
      %v2072 = vsel %vm500, %v2067, %v2071
      %v2074 = vshrl.u32 %v1997, 16
      %v2076 = vrot.slane %v2074, 4
      %v2077 = vshll.u32 %v1997, 16
      %v2079 = vrot.slane %v2077, 5
      %v2080 = vor.u32 %v2076, %v2079
      %v2081 = vrot.slane %v2080, 4
      %v2083 = vshll.u32 %v1998, 16
      %v2085 = vrot.slane %v2083, 5
      %v2086 = vsel %vm500, %v2081, %v2085
      %v2088 = vshrl.u32 %v1999, 16
      %v2090 = vrot.slane %v2088, 4
      %v2091 = vshll.u32 %v1999, 16
      %v2093 = vrot.slane %v2091, 5
      %v2094 = vor.u32 %v2090, %v2093
      %v2095 = vrot.slane %v2094, 4
      %v2097 = vshll.u32 %v2000, 16
      %v2099 = vrot.slane %v2097, 5
      %v2100 = vsel %vm500, %v2095, %v2099
      %v2102 = vshrl.u32 %v2001, 16
      %v2104 = vrot.slane %v2102, 4
      %v2105 = vshll.u32 %v2001, 16
      %v2107 = vrot.slane %v2105, 5
      %v2108 = vor.u32 %v2104, %v2107
      %v2109 = vrot.slane %v2108, 4
      %v2111 = vshll.u32 %v2002, 16
      %v2113 = vrot.slane %v2111, 5
      %v2114 = vsel %vm500, %v2109, %v2113
      %2115 = vrot.lane.b32.xlu0 %v2016, 8
      %v2116 = vpop.permute.xlu0 %2115
      %2117 = vrot.lane.b32.xlu0 %v2030, 8
      %v2118 = vpop.permute.xlu0 %2117
      %2119 = vrot.lane.b32.xlu0 %v2044, 8
      %v2120 = vpop.permute.xlu0 %2119
      %2121 = vrot.lane.b32.xlu0 %v2058, 8
      %v2122 = vpop.permute.xlu0 %2121
      %2123 = vrot.lane.b32.xlu0 %v2072, 8
      %v2124 = vpop.permute.xlu0 %2123
      %2125 = vrot.lane.b32.xlu0 %v2086, 8
      %v2126 = vpop.permute.xlu0 %2125
      %2127 = vrot.lane.b32.xlu0 %v2100, 8
      %v2128 = vpop.permute.xlu0 %2127
      %2129 = vrot.lane.b32.xlu0 %v2114, 8
      %v2130 = vpop.permute.xlu0 %2129
      %vm2139 = vcmask 126016
      %2140 = vst.msk [vmem:[#allocation3] sm:$0xf] %vm2139, %v2116
      %2141 = vst.msk [vmem:[#allocation3 + $0x4] sm:$0xf] %vm2139, %v2118
      %2142 = vst.msk [vmem:[#allocation3 + $0x8] sm:$0xf] %vm2139, %v2120
      %2143 = vst.msk [vmem:[#allocation3 + $0xc] sm:$0xf] %vm2139, %v2122
      %2144 = vst.msk [vmem:[#allocation3 + $0x10] sm:$0xf] %vm2139, %v2124
      %2145 = vst.msk [vmem:[#allocation3 + $0x14] sm:$0xf] %vm2139, %v2126
      %2146 = vst.msk [vmem:[#allocation3 + $0x18] sm:$0xf] %vm2139, %v2128
      %2147 = vst.msk [vmem:[#allocation3 + $0x1c] sm:$0xf] %vm2139, %v2130
      %v2148 = vld [vmem:[#allocation4] sm:$0xe]
      %v2149 = vld [vmem:[#allocation4 + $0x4] sm:$0x1]
      %v2150 = vld [vmem:[#allocation4 + $0x8] sm:$0xe]
      %v2151 = vld [vmem:[#allocation4 + $0xc] sm:$0x1]
      %v2152 = vld [vmem:[#allocation4 + $0x10] sm:$0xe]
      %v2153 = vld [vmem:[#allocation4 + $0x14] sm:$0x1]
      %v2154 = vld [vmem:[#allocation4 + $0x18] sm:$0xe]
      %v2155 = vld [vmem:[#allocation4 + $0x1c] sm:$0x1]
      %v2156 = vld [vmem:[#allocation4 + $0x20] sm:$0xe]
      %v2157 = vld [vmem:[#allocation4 + $0x24] sm:$0x1]
      %v2158 = vld [vmem:[#allocation4 + $0x28] sm:$0xe]
      %v2159 = vld [vmem:[#allocation4 + $0x2c] sm:$0x1]
      %v2160 = vld [vmem:[#allocation4 + $0x30] sm:$0xe]
      %v2161 = vld [vmem:[#allocation4 + $0x34] sm:$0x1]
      %v2162 = vld [vmem:[#allocation4 + $0x38] sm:$0xe]
      %v2163 = vld [vmem:[#allocation4 + $0x3c] sm:$0x1]
      %vm2180 = vcmask 1042432
      %vm2181 = vcmask 1046532
      %vm2182 = vmor %vm2180, %vm2181
      %v2183 = vrot.slane %v2148, 5
      %v2184 = vrot.slane %v2183, 4
      %v2185 = vrot.slane %v2149, 5
      %v2186 = vsel %vm2182, %v2184, %v2185
      %v2187 = vrot.slane %v2150, 5
      %v2188 = vrot.slane %v2187, 4
      %v2189 = vrot.slane %v2151, 5
      %v2190 = vsel %vm2182, %v2188, %v2189
      %v2191 = vrot.slane %v2152, 5
      %v2192 = vrot.slane %v2191, 4
      %v2193 = vrot.slane %v2153, 5
      %v2194 = vsel %vm2182, %v2192, %v2193
      %v2195 = vrot.slane %v2154, 5
      %v2196 = vrot.slane %v2195, 4
      %v2197 = vrot.slane %v2155, 5
      %v2198 = vsel %vm2182, %v2196, %v2197
      %v2199 = vrot.slane %v2156, 5
      %v2200 = vrot.slane %v2199, 4
      %v2201 = vrot.slane %v2157, 5
      %v2202 = vsel %vm2182, %v2200, %v2201
      %v2203 = vrot.slane %v2158, 5
      %v2204 = vrot.slane %v2203, 4
      %v2205 = vrot.slane %v2159, 5
      %v2206 = vsel %vm2182, %v2204, %v2205
      %v2207 = vrot.slane %v2160, 5
      %v2208 = vrot.slane %v2207, 4
      %v2209 = vrot.slane %v2161, 5
      %v2210 = vsel %vm2182, %v2208, %v2209
      %v2211 = vrot.slane %v2162, 5
      %v2212 = vrot.slane %v2211, 4
      %v2213 = vrot.slane %v2163, 5
      %v2214 = vsel %vm2182, %v2212, %v2213
      %2215 = vrot.lane.b32.xlu0 %v2186, 16
      %v2216 = vpop.permute.xlu0 %2215
      %2217 = vrot.lane.b32.xlu0 %v2190, 16
      %v2218 = vpop.permute.xlu0 %2217
      %2219 = vrot.lane.b32.xlu0 %v2194, 16
      %v2220 = vpop.permute.xlu0 %2219
      %2221 = vrot.lane.b32.xlu0 %v2198, 16
      %v2222 = vpop.permute.xlu0 %2221
      %2223 = vrot.lane.b32.xlu0 %v2202, 16
      %v2224 = vpop.permute.xlu0 %2223
      %2225 = vrot.lane.b32.xlu0 %v2206, 16
      %v2226 = vpop.permute.xlu0 %2225
      %2227 = vrot.lane.b32.xlu0 %v2210, 16
      %v2228 = vpop.permute.xlu0 %2227
      %2229 = vrot.lane.b32.xlu0 %v2214, 16
      %v2230 = vpop.permute.xlu0 %2229
      %vm2239 = vcmask 191616
      %2240 = vst.msk [vmem:[#allocation3] sm:$0xf] %vm2239, %v2216
      %2241 = vst.msk [vmem:[#allocation3 + $0x4] sm:$0xf] %vm2239, %v2218
      %2242 = vst.msk [vmem:[#allocation3 + $0x8] sm:$0xf] %vm2239, %v2220
      %2243 = vst.msk [vmem:[#allocation3 + $0xc] sm:$0xf] %vm2239, %v2222
      %2244 = vst.msk [vmem:[#allocation3 + $0x10] sm:$0xf] %vm2239, %v2224
      %2245 = vst.msk [vmem:[#allocation3 + $0x14] sm:$0xf] %vm2239, %v2226
      %2246 = vst.msk [vmem:[#allocation3 + $0x18] sm:$0xf] %vm2239, %v2228
      %2247 = vst.msk [vmem:[#allocation3 + $0x1c] sm:$0xf] %vm2239, %v2230
      %s2248 = scalar_lea.vmem [#allocation4], 8
      %v2249 = vld [vmem:[%s2248] sm:$0xf]
      %v2250 = vld [vmem:[%s2248 + $0x8] sm:$0xf]
      %v2251 = vld [vmem:[%s2248 + $0x10] sm:$0xf]
      %v2252 = vld [vmem:[%s2248 + $0x18] sm:$0xf]
      %v2253 = vld [vmem:[%s2248 + $0x20] sm:$0xf]
      %v2254 = vld [vmem:[%s2248 + $0x28] sm:$0xf]
      %v2255 = vld [vmem:[%s2248 + $0x30] sm:$0xf]
      %v2256 = vld [vmem:[%s2248 + $0x38] sm:$0xf]
      %2265 = vrot.lane.b32.xlu0 %v2249, 24
      %v2266 = vpop.permute.xlu0 %2265
      %2267 = vrot.lane.b32.xlu0 %v2250, 24
      %v2268 = vpop.permute.xlu0 %2267
      %2269 = vrot.lane.b32.xlu0 %v2251, 24
      %v2270 = vpop.permute.xlu0 %2269
      %2271 = vrot.lane.b32.xlu0 %v2252, 24
      %v2272 = vpop.permute.xlu0 %2271
      %2273 = vrot.lane.b32.xlu0 %v2253, 24
      %v2274 = vpop.permute.xlu0 %2273
      %2275 = vrot.lane.b32.xlu0 %v2254, 24
      %v2276 = vpop.permute.xlu0 %2275
      %2277 = vrot.lane.b32.xlu0 %v2255, 24
      %v2278 = vpop.permute.xlu0 %2277
      %2279 = vrot.lane.b32.xlu0 %v2256, 24
      %v2280 = vpop.permute.xlu0 %2279
      %vm2289 = vcmask 257216
      %2290 = vst.msk [vmem:[#allocation3] sm:$0xf] %vm2289, %v2266
      %2291 = vst.msk [vmem:[#allocation3 + $0x4] sm:$0xf] %vm2289, %v2268
      %2292 = vst.msk [vmem:[#allocation3 + $0x8] sm:$0xf] %vm2289, %v2270
      %2293 = vst.msk [vmem:[#allocation3 + $0xc] sm:$0xf] %vm2289, %v2272
      %2294 = vst.msk [vmem:[#allocation3 + $0x10] sm:$0xf] %vm2289, %v2274
      %2295 = vst.msk [vmem:[#allocation3 + $0x14] sm:$0xf] %vm2289, %v2276
      %2296 = vst.msk [vmem:[#allocation3 + $0x18] sm:$0xf] %vm2289, %v2278
      %2297 = vst.msk [vmem:[#allocation3 + $0x1c] sm:$0xf] %vm2289, %v2280
      %v2298 = vld [vmem:[%s2248] sm:$0xf]
      %v2299 = vld [vmem:[%s2248 + $0x4] sm:$0x1]
      %v2300 = vld [vmem:[%s2248 + $0x8] sm:$0xf]
      %v2301 = vld [vmem:[%s2248 + $0xc] sm:$0x1]
      %v2302 = vld [vmem:[%s2248 + $0x10] sm:$0xf]
      %v2303 = vld [vmem:[%s2248 + $0x14] sm:$0x1]
      %v2304 = vld [vmem:[%s2248 + $0x18] sm:$0xf]
      %v2305 = vld [vmem:[%s2248 + $0x1c] sm:$0x1]
      %v2306 = vld [vmem:[%s2248 + $0x20] sm:$0xf]
      %v2307 = vld [vmem:[%s2248 + $0x24] sm:$0x1]
      %v2308 = vld [vmem:[%s2248 + $0x28] sm:$0xf]
      %v2309 = vld [vmem:[%s2248 + $0x2c] sm:$0x1]
      %v2310 = vld [vmem:[%s2248 + $0x30] sm:$0xf]
      %v2311 = vld [vmem:[%s2248 + $0x34] sm:$0x1]
      %v2312 = vld [vmem:[%s2248 + $0x38] sm:$0xf]
      %v2313 = vld [vmem:[%s2248 + $0x3c] sm:$0x1]
      %v2315 = vshrl.u32 %v2298, 16
      %v2317 = vrot.slane %v2315, 4
      %v2318 = vshll.u32 %v2298, 16
      %v2320 = vrot.slane %v2318, 5
      %v2321 = vor.u32 %v2317, %v2320
      %v2322 = vrot.slane %v2321, 4
      %v2324 = vshll.u32 %v2299, 16
      %v2326 = vrot.slane %v2324, 5
      %v2327 = vsel %vm500, %v2322, %v2326
      %v2329 = vshrl.u32 %v2300, 16
      %v2331 = vrot.slane %v2329, 4
      %v2332 = vshll.u32 %v2300, 16
      %v2334 = vrot.slane %v2332, 5
      %v2335 = vor.u32 %v2331, %v2334
      %v2336 = vrot.slane %v2335, 4
      %v2338 = vshll.u32 %v2301, 16
      %v2340 = vrot.slane %v2338, 5
      %v2341 = vsel %vm500, %v2336, %v2340
      %v2343 = vshrl.u32 %v2302, 16
      %v2345 = vrot.slane %v2343, 4
      %v2346 = vshll.u32 %v2302, 16
      %v2348 = vrot.slane %v2346, 5
      %v2349 = vor.u32 %v2345, %v2348
      %v2350 = vrot.slane %v2349, 4
      %v2352 = vshll.u32 %v2303, 16
      %v2354 = vrot.slane %v2352, 5
      %v2355 = vsel %vm500, %v2350, %v2354
      %v2357 = vshrl.u32 %v2304, 16
      %v2359 = vrot.slane %v2357, 4
      %v2360 = vshll.u32 %v2304, 16
      %v2362 = vrot.slane %v2360, 5
      %v2363 = vor.u32 %v2359, %v2362
      %v2364 = vrot.slane %v2363, 4
      %v2366 = vshll.u32 %v2305, 16
      %v2368 = vrot.slane %v2366, 5
      %v2369 = vsel %vm500, %v2364, %v2368
      %v2371 = vshrl.u32 %v2306, 16
      %v2373 = vrot.slane %v2371, 4
      %v2374 = vshll.u32 %v2306, 16
      %v2376 = vrot.slane %v2374, 5
      %v2377 = vor.u32 %v2373, %v2376
      %v2378 = vrot.slane %v2377, 4
      %v2380 = vshll.u32 %v2307, 16
      %v2382 = vrot.slane %v2380, 5
      %v2383 = vsel %vm500, %v2378, %v2382
      %v2385 = vshrl.u32 %v2308, 16
      %v2387 = vrot.slane %v2385, 4
      %v2388 = vshll.u32 %v2308, 16
      %v2390 = vrot.slane %v2388, 5
      %v2391 = vor.u32 %v2387, %v2390
      %v2392 = vrot.slane %v2391, 4
      %v2394 = vshll.u32 %v2309, 16
      %v2396 = vrot.slane %v2394, 5
      %v2397 = vsel %vm500, %v2392, %v2396
      %v2399 = vshrl.u32 %v2310, 16
      %v2401 = vrot.slane %v2399, 4
      %v2402 = vshll.u32 %v2310, 16
      %v2404 = vrot.slane %v2402, 5
      %v2405 = vor.u32 %v2401, %v2404
      %v2406 = vrot.slane %v2405, 4
      %v2408 = vshll.u32 %v2311, 16
      %v2410 = vrot.slane %v2408, 5
      %v2411 = vsel %vm500, %v2406, %v2410
      %v2413 = vshrl.u32 %v2312, 16
      %v2415 = vrot.slane %v2413, 4
      %v2416 = vshll.u32 %v2312, 16
      %v2418 = vrot.slane %v2416, 5
      %v2419 = vor.u32 %v2415, %v2418
      %v2420 = vrot.slane %v2419, 4
      %v2422 = vshll.u32 %v2313, 16
      %v2424 = vrot.slane %v2422, 5
      %v2425 = vsel %vm500, %v2420, %v2424
      %2426 = vrot.lane.b32.xlu0 %v2327, 32
      %v2427 = vpop.permute.xlu0 %2426
      %2428 = vrot.lane.b32.xlu0 %v2341, 32
      %v2429 = vpop.permute.xlu0 %2428
      %2430 = vrot.lane.b32.xlu0 %v2355, 32
      %v2431 = vpop.permute.xlu0 %2430
      %2432 = vrot.lane.b32.xlu0 %v2369, 32
      %v2433 = vpop.permute.xlu0 %2432
      %2434 = vrot.lane.b32.xlu0 %v2383, 32
      %v2435 = vpop.permute.xlu0 %2434
      %2436 = vrot.lane.b32.xlu0 %v2397, 32
      %v2437 = vpop.permute.xlu0 %2436
      %2438 = vrot.lane.b32.xlu0 %v2411, 32
      %v2439 = vpop.permute.xlu0 %2438
      %2440 = vrot.lane.b32.xlu0 %v2425, 32
      %v2441 = vpop.permute.xlu0 %2440
      %vm2450 = vcmask 322816
      %2451 = vst.msk [vmem:[#allocation3] sm:$0xf] %vm2450, %v2427
      %2452 = vst.msk [vmem:[#allocation3 + $0x4] sm:$0xf] %vm2450, %v2429
      %2453 = vst.msk [vmem:[#allocation3 + $0x8] sm:$0xf] %vm2450, %v2431
      %2454 = vst.msk [vmem:[#allocation3 + $0xc] sm:$0xf] %vm2450, %v2433
      %2455 = vst.msk [vmem:[#allocation3 + $0x10] sm:$0xf] %vm2450, %v2435
      %2456 = vst.msk [vmem:[#allocation3 + $0x14] sm:$0xf] %vm2450, %v2437
      %2457 = vst.msk [vmem:[#allocation3 + $0x18] sm:$0xf] %vm2450, %v2439
      %2458 = vst.msk [vmem:[#allocation3 + $0x1c] sm:$0xf] %vm2450, %v2441
      %v2459 = vld [vmem:[%s2248] sm:$0xe]
      %v2460 = vld [vmem:[%s2248 + $0x4] sm:$0x1]
      %v2461 = vld [vmem:[%s2248 + $0x8] sm:$0xe]
      %v2462 = vld [vmem:[%s2248 + $0xc] sm:$0x1]
      %v2463 = vld [vmem:[%s2248 + $0x10] sm:$0xe]
      %v2464 = vld [vmem:[%s2248 + $0x14] sm:$0x1]
      %v2465 = vld [vmem:[%s2248 + $0x18] sm:$0xe]
      %v2466 = vld [vmem:[%s2248 + $0x1c] sm:$0x1]
      %v2467 = vld [vmem:[%s2248 + $0x20] sm:$0xe]
      %v2468 = vld [vmem:[%s2248 + $0x24] sm:$0x1]
      %v2469 = vld [vmem:[%s2248 + $0x28] sm:$0xe]
      %v2470 = vld [vmem:[%s2248 + $0x2c] sm:$0x1]
      %v2471 = vld [vmem:[%s2248 + $0x30] sm:$0xe]
      %v2472 = vld [vmem:[%s2248 + $0x34] sm:$0x1]
      %v2473 = vld [vmem:[%s2248 + $0x38] sm:$0xe]
      %v2474 = vld [vmem:[%s2248 + $0x3c] sm:$0x1]
      %v2491 = vrot.slane %v2459, 5
      %v2492 = vrot.slane %v2491, 4
      %v2493 = vrot.slane %v2460, 5
      %v2494 = vsel %vm2182, %v2492, %v2493
      %v2495 = vrot.slane %v2461, 5
      %v2496 = vrot.slane %v2495, 4
      %v2497 = vrot.slane %v2462, 5
      %v2498 = vsel %vm2182, %v2496, %v2497
      %v2499 = vrot.slane %v2463, 5
      %v2500 = vrot.slane %v2499, 4
      %v2501 = vrot.slane %v2464, 5
      %v2502 = vsel %vm2182, %v2500, %v2501
      %v2503 = vrot.slane %v2465, 5
      %v2504 = vrot.slane %v2503, 4
      %v2505 = vrot.slane %v2466, 5
      %v2506 = vsel %vm2182, %v2504, %v2505
      %v2507 = vrot.slane %v2467, 5
      %v2508 = vrot.slane %v2507, 4
      %v2509 = vrot.slane %v2468, 5
      %v2510 = vsel %vm2182, %v2508, %v2509
      %v2511 = vrot.slane %v2469, 5
      %v2512 = vrot.slane %v2511, 4
      %v2513 = vrot.slane %v2470, 5
      %v2514 = vsel %vm2182, %v2512, %v2513
      %v2515 = vrot.slane %v2471, 5
      %v2516 = vrot.slane %v2515, 4
      %v2517 = vrot.slane %v2472, 5
      %v2518 = vsel %vm2182, %v2516, %v2517
      %v2519 = vrot.slane %v2473, 5
      %v2520 = vrot.slane %v2519, 4
      %v2521 = vrot.slane %v2474, 5
      %v2522 = vsel %vm2182, %v2520, %v2521
      %2523 = vrot.lane.b32.xlu0 %v2494, 40
      %v2524 = vpop.permute.xlu0 %2523
      %2525 = vrot.lane.b32.xlu0 %v2498, 40
      %v2526 = vpop.permute.xlu0 %2525
      %2527 = vrot.lane.b32.xlu0 %v2502, 40
      %v2528 = vpop.permute.xlu0 %2527
      %2529 = vrot.lane.b32.xlu0 %v2506, 40
      %v2530 = vpop.permute.xlu0 %2529
      %2531 = vrot.lane.b32.xlu0 %v2510, 40
      %v2532 = vpop.permute.xlu0 %2531
      %2533 = vrot.lane.b32.xlu0 %v2514, 40
      %v2534 = vpop.permute.xlu0 %2533
      %2535 = vrot.lane.b32.xlu0 %v2518, 40
      %v2536 = vpop.permute.xlu0 %2535
      %2537 = vrot.lane.b32.xlu0 %v2522, 40
      %v2538 = vpop.permute.xlu0 %2537
      %vm2547 = vcmask 388416
      %2548 = vst.msk [vmem:[#allocation3] sm:$0xf] %vm2547, %v2524
      %2549 = vst.msk [vmem:[#allocation3 + $0x4] sm:$0xf] %vm2547, %v2526
      %2550 = vst.msk [vmem:[#allocation3 + $0x8] sm:$0xf] %vm2547, %v2528
      %2551 = vst.msk [vmem:[#allocation3 + $0xc] sm:$0xf] %vm2547, %v2530
      %2552 = vst.msk [vmem:[#allocation3 + $0x10] sm:$0xf] %vm2547, %v2532
      %2553 = vst.msk [vmem:[#allocation3 + $0x14] sm:$0xf] %vm2547, %v2534
      %2554 = vst.msk [vmem:[#allocation3 + $0x18] sm:$0xf] %vm2547, %v2536
      %2555 = vst.msk [vmem:[#allocation3 + $0x1c] sm:$0xf] %vm2547, %v2538
      %s2556 = scalar_lea.vmem [#allocation4], 16
      %v2557 = vld [vmem:[%s2556] sm:$0xf]
      %v2558 = vld [vmem:[%s2556 + $0x8] sm:$0xf]
      %v2559 = vld [vmem:[%s2556 + $0x10] sm:$0xf]
      %v2560 = vld [vmem:[%s2556 + $0x18] sm:$0xf]
      %v2561 = vld [vmem:[%s2556 + $0x20] sm:$0xf]
      %v2562 = vld [vmem:[%s2556 + $0x28] sm:$0xf]
      %v2563 = vld [vmem:[%s2556 + $0x30] sm:$0xf]
      %v2564 = vld [vmem:[%s2556 + $0x38] sm:$0xf]
      %2573 = vrot.lane.b32.xlu0 %v2557, 48
      %v2574 = vpop.permute.xlu0 %2573
      %2575 = vrot.lane.b32.xlu0 %v2558, 48
      %v2576 = vpop.permute.xlu0 %2575
      %2577 = vrot.lane.b32.xlu0 %v2559, 48
      %v2578 = vpop.permute.xlu0 %2577
      %2579 = vrot.lane.b32.xlu0 %v2560, 48
      %v2580 = vpop.permute.xlu0 %2579
      %2581 = vrot.lane.b32.xlu0 %v2561, 48
      %v2582 = vpop.permute.xlu0 %2581
      %2583 = vrot.lane.b32.xlu0 %v2562, 48
      %v2584 = vpop.permute.xlu0 %2583
      %2585 = vrot.lane.b32.xlu0 %v2563, 48
      %v2586 = vpop.permute.xlu0 %2585
      %2587 = vrot.lane.b32.xlu0 %v2564, 48
      %v2588 = vpop.permute.xlu0 %2587
      %vm2597 = vcmask 454016
      %2598 = vst.msk [vmem:[#allocation3] sm:$0xf] %vm2597, %v2574
      %2599 = vst.msk [vmem:[#allocation3 + $0x4] sm:$0xf] %vm2597, %v2576
      %2600 = vst.msk [vmem:[#allocation3 + $0x8] sm:$0xf] %vm2597, %v2578
      %2601 = vst.msk [vmem:[#allocation3 + $0xc] sm:$0xf] %vm2597, %v2580
      %2602 = vst.msk [vmem:[#allocation3 + $0x10] sm:$0xf] %vm2597, %v2582
      %2603 = vst.msk [vmem:[#allocation3 + $0x14] sm:$0xf] %vm2597, %v2584
      %2604 = vst.msk [vmem:[#allocation3 + $0x18] sm:$0xf] %vm2597, %v2586
      %2605 = vst.msk [vmem:[#allocation3 + $0x1c] sm:$0xf] %vm2597, %v2588
      %v2606 = vld [vmem:[%s2556] sm:$0xf]
      %v2607 = vld [vmem:[%s2556 + $0x4] sm:$0x1]
      %v2608 = vld [vmem:[%s2556 + $0x8] sm:$0xf]
      %v2609 = vld [vmem:[%s2556 + $0xc] sm:$0x1]
      %v2610 = vld [vmem:[%s2556 + $0x10] sm:$0xf]
      %v2611 = vld [vmem:[%s2556 + $0x14] sm:$0x1]
      %v2612 = vld [vmem:[%s2556 + $0x18] sm:$0xf]
      %v2613 = vld [vmem:[%s2556 + $0x1c] sm:$0x1]
      %v2614 = vld [vmem:[%s2556 + $0x20] sm:$0xf]
      %v2615 = vld [vmem:[%s2556 + $0x24] sm:$0x1]
      %v2616 = vld [vmem:[%s2556 + $0x28] sm:$0xf]
      %v2617 = vld [vmem:[%s2556 + $0x2c] sm:$0x1]
      %v2618 = vld [vmem:[%s2556 + $0x30] sm:$0xf]
      %v2619 = vld [vmem:[%s2556 + $0x34] sm:$0x1]
      %v2620 = vld [vmem:[%s2556 + $0x38] sm:$0xf]
      %v2621 = vld [vmem:[%s2556 + $0x3c] sm:$0x1]
      %v2623 = vshrl.u32 %v2606, 16
      %v2625 = vrot.slane %v2623, 4
      %v2626 = vshll.u32 %v2606, 16
      %v2628 = vrot.slane %v2626, 5
      %v2629 = vor.u32 %v2625, %v2628
      %v2630 = vrot.slane %v2629, 4
      %v2632 = vshll.u32 %v2607, 16
      %v2634 = vrot.slane %v2632, 5
      %v2635 = vsel %vm500, %v2630, %v2634
      %v2637 = vshrl.u32 %v2608, 16
      %v2639 = vrot.slane %v2637, 4
      %v2640 = vshll.u32 %v2608, 16
      %v2642 = vrot.slane %v2640, 5
      %v2643 = vor.u32 %v2639, %v2642
      %v2644 = vrot.slane %v2643, 4
      %v2646 = vshll.u32 %v2609, 16
      %v2648 = vrot.slane %v2646, 5
      %v2649 = vsel %vm500, %v2644, %v2648
      %v2651 = vshrl.u32 %v2610, 16
      %v2653 = vrot.slane %v2651, 4
      %v2654 = vshll.u32 %v2610, 16
      %v2656 = vrot.slane %v2654, 5
      %v2657 = vor.u32 %v2653, %v2656
      %v2658 = vrot.slane %v2657, 4
      %v2660 = vshll.u32 %v2611, 16
      %v2662 = vrot.slane %v2660, 5
      %v2663 = vsel %vm500, %v2658, %v2662
      %v2665 = vshrl.u32 %v2612, 16
      %v2667 = vrot.slane %v2665, 4
      %v2668 = vshll.u32 %v2612, 16
      %v2670 = vrot.slane %v2668, 5
      %v2671 = vor.u32 %v2667, %v2670
      %v2672 = vrot.slane %v2671, 4
      %v2674 = vshll.u32 %v2613, 16
      %v2676 = vrot.slane %v2674, 5
      %v2677 = vsel %vm500, %v2672, %v2676
      %v2679 = vshrl.u32 %v2614, 16
      %v2681 = vrot.slane %v2679, 4
      %v2682 = vshll.u32 %v2614, 16
      %v2684 = vrot.slane %v2682, 5
      %v2685 = vor.u32 %v2681, %v2684
      %v2686 = vrot.slane %v2685, 4
      %v2688 = vshll.u32 %v2615, 16
      %v2690 = vrot.slane %v2688, 5
      %v2691 = vsel %vm500, %v2686, %v2690
      %v2693 = vshrl.u32 %v2616, 16
      %v2695 = vrot.slane %v2693, 4
      %v2696 = vshll.u32 %v2616, 16
      %v2698 = vrot.slane %v2696, 5
      %v2699 = vor.u32 %v2695, %v2698
      %v2700 = vrot.slane %v2699, 4
      %v2702 = vshll.u32 %v2617, 16
      %v2704 = vrot.slane %v2702, 5
      %v2705 = vsel %vm500, %v2700, %v2704
      %v2707 = vshrl.u32 %v2618, 16
      %v2709 = vrot.slane %v2707, 4
      %v2710 = vshll.u32 %v2618, 16
      %v2712 = vrot.slane %v2710, 5
      %v2713 = vor.u32 %v2709, %v2712
      %v2714 = vrot.slane %v2713, 4
      %v2716 = vshll.u32 %v2619, 16
      %v2718 = vrot.slane %v2716, 5
      %v2719 = vsel %vm500, %v2714, %v2718
      %v2721 = vshrl.u32 %v2620, 16
      %v2723 = vrot.slane %v2721, 4
      %v2724 = vshll.u32 %v2620, 16
      %v2726 = vrot.slane %v2724, 5
      %v2727 = vor.u32 %v2723, %v2726
      %v2728 = vrot.slane %v2727, 4
      %v2730 = vshll.u32 %v2621, 16
      %v2732 = vrot.slane %v2730, 5
      %v2733 = vsel %vm500, %v2728, %v2732
      %2734 = vrot.lane.b32.xlu0 %v2635, 56
      %v2735 = vpop.permute.xlu0 %2734
      %2736 = vrot.lane.b32.xlu0 %v2649, 56
      %v2737 = vpop.permute.xlu0 %2736
      %2738 = vrot.lane.b32.xlu0 %v2663, 56
      %v2739 = vpop.permute.xlu0 %2738
      %2740 = vrot.lane.b32.xlu0 %v2677, 56
      %v2741 = vpop.permute.xlu0 %2740
      %2742 = vrot.lane.b32.xlu0 %v2691, 56
      %v2743 = vpop.permute.xlu0 %2742
      %2744 = vrot.lane.b32.xlu0 %v2705, 56
      %v2745 = vpop.permute.xlu0 %2744
      %2746 = vrot.lane.b32.xlu0 %v2719, 56
      %v2747 = vpop.permute.xlu0 %2746
      %2748 = vrot.lane.b32.xlu0 %v2733, 56
      %v2749 = vpop.permute.xlu0 %2748
      %vm2758 = vcmask 519616
      %2759 = vst.msk [vmem:[#allocation3] sm:$0xf] %vm2758, %v2735
      %2760 = vst.msk [vmem:[#allocation3 + $0x4] sm:$0xf] %vm2758, %v2737
      %2761 = vst.msk [vmem:[#allocation3 + $0x8] sm:$0xf] %vm2758, %v2739
      %2762 = vst.msk [vmem:[#allocation3 + $0xc] sm:$0xf] %vm2758, %v2741
      %2763 = vst.msk [vmem:[#allocation3 + $0x10] sm:$0xf] %vm2758, %v2743
      %2764 = vst.msk [vmem:[#allocation3 + $0x14] sm:$0xf] %vm2758, %v2745
      %2765 = vst.msk [vmem:[#allocation3 + $0x18] sm:$0xf] %vm2758, %v2747
      %2766 = vst.msk [vmem:[#allocation3 + $0x1c] sm:$0xf] %vm2758, %v2749
      %v2767 = vld [vmem:[%s2556] sm:$0xe]
      %v2768 = vld [vmem:[%s2556 + $0x4] sm:$0x1]
      %v2769 = vld [vmem:[%s2556 + $0x8] sm:$0xe]
      %v2770 = vld [vmem:[%s2556 + $0xc] sm:$0x1]
      %v2771 = vld [vmem:[%s2556 + $0x10] sm:$0xe]
      %v2772 = vld [vmem:[%s2556 + $0x14] sm:$0x1]
      %v2773 = vld [vmem:[%s2556 + $0x18] sm:$0xe]
      %v2774 = vld [vmem:[%s2556 + $0x1c] sm:$0x1]
      %v2775 = vld [vmem:[%s2556 + $0x20] sm:$0xe]
      %v2776 = vld [vmem:[%s2556 + $0x24] sm:$0x1]
      %v2777 = vld [vmem:[%s2556 + $0x28] sm:$0xe]
      %v2778 = vld [vmem:[%s2556 + $0x2c] sm:$0x1]
      %v2779 = vld [vmem:[%s2556 + $0x30] sm:$0xe]
      %v2780 = vld [vmem:[%s2556 + $0x34] sm:$0x1]
      %v2781 = vld [vmem:[%s2556 + $0x38] sm:$0xe]
      %v2782 = vld [vmem:[%s2556 + $0x3c] sm:$0x1]
      %v2799 = vrot.slane %v2767, 5
      %v2800 = vrot.slane %v2799, 4
      %v2801 = vrot.slane %v2768, 5
      %v2802 = vsel %vm2182, %v2800, %v2801
      %v2803 = vrot.slane %v2769, 5
      %v2804 = vrot.slane %v2803, 4
      %v2805 = vrot.slane %v2770, 5
      %v2806 = vsel %vm2182, %v2804, %v2805
      %v2807 = vrot.slane %v2771, 5
      %v2808 = vrot.slane %v2807, 4
      %v2809 = vrot.slane %v2772, 5
      %v2810 = vsel %vm2182, %v2808, %v2809
      %v2811 = vrot.slane %v2773, 5
      %v2812 = vrot.slane %v2811, 4
      %v2813 = vrot.slane %v2774, 5
      %v2814 = vsel %vm2182, %v2812, %v2813
      %v2815 = vrot.slane %v2775, 5
      %v2816 = vrot.slane %v2815, 4
      %v2817 = vrot.slane %v2776, 5
      %v2818 = vsel %vm2182, %v2816, %v2817
      %v2819 = vrot.slane %v2777, 5
      %v2820 = vrot.slane %v2819, 4
      %v2821 = vrot.slane %v2778, 5
      %v2822 = vsel %vm2182, %v2820, %v2821
      %v2823 = vrot.slane %v2779, 5
      %v2824 = vrot.slane %v2823, 4
      %v2825 = vrot.slane %v2780, 5
      %v2826 = vsel %vm2182, %v2824, %v2825
      %v2827 = vrot.slane %v2781, 5
      %v2828 = vrot.slane %v2827, 4
      %v2829 = vrot.slane %v2782, 5
      %v2830 = vsel %vm2182, %v2828, %v2829
      %2831 = vrot.lane.b32.xlu0 %v2802, 64
      %v2832 = vpop.permute.xlu0 %2831
      %2833 = vrot.lane.b32.xlu0 %v2806, 64
      %v2834 = vpop.permute.xlu0 %2833
      %2835 = vrot.lane.b32.xlu0 %v2810, 64
      %v2836 = vpop.permute.xlu0 %2835
      %2837 = vrot.lane.b32.xlu0 %v2814, 64
      %v2838 = vpop.permute.xlu0 %2837
      %2839 = vrot.lane.b32.xlu0 %v2818, 64
      %v2840 = vpop.permute.xlu0 %2839
      %2841 = vrot.lane.b32.xlu0 %v2822, 64
      %v2842 = vpop.permute.xlu0 %2841
      %2843 = vrot.lane.b32.xlu0 %v2826, 64
      %v2844 = vpop.permute.xlu0 %2843
      %2845 = vrot.lane.b32.xlu0 %v2830, 64
      %v2846 = vpop.permute.xlu0 %2845
      %vm2855 = vcmask 585216
      %2856 = vst.msk [vmem:[#allocation3] sm:$0xf] %vm2855, %v2832
      %2857 = vst.msk [vmem:[#allocation3 + $0x4] sm:$0xf] %vm2855, %v2834
      %2858 = vst.msk [vmem:[#allocation3 + $0x8] sm:$0xf] %vm2855, %v2836
      %2859 = vst.msk [vmem:[#allocation3 + $0xc] sm:$0xf] %vm2855, %v2838
      %2860 = vst.msk [vmem:[#allocation3 + $0x10] sm:$0xf] %vm2855, %v2840
      %2861 = vst.msk [vmem:[#allocation3 + $0x14] sm:$0xf] %vm2855, %v2842
      %2862 = vst.msk [vmem:[#allocation3 + $0x18] sm:$0xf] %vm2855, %v2844
      %2863 = vst.msk [vmem:[#allocation3 + $0x1c] sm:$0xf] %vm2855, %v2846
      %v2864 = vld [vmem:[#allocation3] sm:$0xf]
      %v2865 = vld [vmem:[#allocation3 + $0x4] sm:$0xf]
      %v2866 = vld [vmem:[#allocation3 + $0x8] sm:$0xf]
      %v2867 = vld [vmem:[#allocation3 + $0xc] sm:$0xf]
      %v2868 = vld [vmem:[#allocation3 + $0x10] sm:$0xf]
      %v2869 = vld [vmem:[#allocation3 + $0x14] sm:$0xf]
      %v2870 = vld [vmem:[#allocation3 + $0x18] sm:$0xf]
      %v2871 = vld [vmem:[#allocation3 + $0x1c] sm:$0xf]
      %v2872 = vld [vmem:[%s7] sm:$0xf]
      %v2873 = vld [vmem:[%s7 + $0x4] sm:$0xf]
      %v2874 = vld [vmem:[%s7 + $0x8] sm:$0xf]
      %v2875 = vld [vmem:[%s7 + $0xc] sm:$0xf]
      %v2876 = vld [vmem:[%s7 + $0x10] sm:$0xf]
      %v2877 = vld [vmem:[%s7 + $0x14] sm:$0xf]
      %v2878 = vld [vmem:[%s7 + $0x18] sm:$0xf]
      %v2879 = vld [vmem:[%s7 + $0x1c] sm:$0xf]
      %v2880 = vld [vmem:[%s7 + $0x20] sm:$0xf]
      %v2889 = vunpack.c.l.b16 %v2864
      %v2890 = vunpack.c.l.b16 %v2865
      %v2891 = vunpack.c.l.b16 %v2866
      %v2892 = vunpack.c.l.b16 %v2867
      %v2893 = vunpack.c.l.b16 %v2868
      %v2894 = vunpack.c.l.b16 %v2869
      %v2895 = vunpack.c.l.b16 %v2870
      %v2896 = vunpack.c.l.b16 %v2871
      %v2897 = vpack.c.b16 %v2890, %v2889
      %v2898 = vpack.c.b16 %v2892, %v2891
      %v2899 = vpack.c.b16 %v2894, %v2893
      %v2900 = vpack.c.b16 %v2896, %v2895
      %v2910 = vunpack.c.l.b16 %v2872
      %v2911 = vunpack.c.l.b16 %v2873
      %v2912 = vunpack.c.l.b16 %v2874
      %v2913 = vunpack.c.l.b16 %v2875
      %v2914 = vunpack.c.l.b16 %v2876
      %v2915 = vunpack.c.l.b16 %v2877
      %v2916 = vunpack.c.l.b16 %v2878
      %v2917 = vunpack.c.l.b16 %v2879
      %v2918 = vunpack.c.l.b16 %v2880
      %v2919 = vpack.c.b16 %v2911, %v2910
      %v2920 = vpack.c.b16 %v2913, %v2912
      %v2921 = vpack.c.b16 %v2915, %v2914
      %v2922 = vpack.c.b16 %v2917, %v2916
      %v2923 = vpack.c.b16 %v2918, %v2918
      %vm2928 = vcmask 588800
      %v2930 = vsel %vm2928, %v2897, 0
      %v2933 = vsel %vm2928, %v2898, 0
      %v2936 = vsel %vm2928, %v2899, 0
      %v2939 = vsel %vm2928, %v2900, 0
      %vm2941 = vcmask 1043456
      %v2943 = vsel %vm2941, %v2923, 0
      %2945 = vmatprep.subr.bf16.mxu0 0
      %2946 = vmatpush1.bf16.msra.mxu0 %v2919
      %2947 = vmatprep.subr.bf16.mxu0 0
      %2948 = vmatpush1.bf16.msra.mxu0 %v2920
      %2949 = vmatprep.subr.bf16.mxu0 0
      %2950 = vmatpush1.bf16.msra.mxu0 %v2921
      %2951 = vmatprep.subr.bf16.mxu0 0
      %2952 = vmatpush1.bf16.msra.mxu0 %v2922
      %2953 = vmatprep.subr.bf16.mxu0 0
      %2954 = vmatpush1.bf16.msra.mxu0 %v2943
      %2955 = vmatprep.subr.bf16.mxu0 0
      %2956 = vmatpush1.bf16.msra.mxu0 0
      %2957 = vmatprep.subr.bf16.mxu0 0
      %2958 = vmatpush1.bf16.msra.mxu0 0
      %2959 = vmatprep.subr.bf16.mxu0 0
      %2960 = vmatpush1.bf16.msra.mxu0 0
      %2961 = vmatprep.subr.bf16.mxu0 0
      %2962 = vmatpush1.bf16.msra.mxu0 0
      %2963 = vmatprep.subr.bf16.mxu0 0
      %2964 = vmatpush1.bf16.msra.mxu0 0
      %2965 = vmatprep.subr.bf16.mxu0 0
      %2966 = vmatpush1.bf16.msra.mxu0 0
      %2967 = vmatprep.subr.bf16.mxu0 0
      %2968 = vmatpush1.bf16.msra.mxu0 0
      %2969 = vmatprep.subr.bf16.mxu0 0
      %2970 = vmatpush1.bf16.msra.mxu0 0
      %2971 = vmatprep.subr.bf16.mxu0 0
      %2972 = vmatpush1.bf16.msra.mxu0 0
      %2973 = vmatprep.subr.bf16.mxu0 0
      %2974 = vmatpush1.bf16.msra.mxu0 0
      %2975 = vmatprep.subr.bf16.mxu0 0
      %2976 = vmatpush1.bf16.msra.mxu0 0
      %2977 = vmatprep.mubr.bf16.mxu0 0
      %2978 = vmatmul.mubr.bf16.gmra.mrb[0].mxu0 %v2930
      %v2979 = vpop.f32.mrb[0].mxu0
      %v2980 = vadd.f32 0.0, %v2979
      %v2981 = vpop.f32.mrb[0].mxu0
      %v2982 = vpop.f32.mrb[0].mxu0
      %v2983 = vadd.f32 0.0, %v2982
      %v2984 = vpop.f32.mrb[0].mxu0
      %2985 = vmatprep.mubr.bf16.mxu0 0
      %2986 = vmatmul.mubr.bf16.gmra.mrb[0].mxu0 %v2933
      %v2987 = vpop.f32.mrb[0].mxu0
      %v2988 = vadd.f32 0.0, %v2987
      %v2989 = vpop.f32.mrb[0].mxu0
      %v2990 = vpop.f32.mrb[0].mxu0
      %v2991 = vadd.f32 0.0, %v2990
      %v2992 = vpop.f32.mrb[0].mxu0
      %2993 = vmatprep.mubr.bf16.mxu0 0
      %2994 = vmatmul.mubr.bf16.gmra.mrb[0].mxu0 %v2936
      %v2995 = vpop.f32.mrb[0].mxu0
      %v2996 = vadd.f32 0.0, %v2995
      %v2997 = vpop.f32.mrb[0].mxu0
      %v2998 = vpop.f32.mrb[0].mxu0
      %v2999 = vadd.f32 0.0, %v2998
      %v3000 = vpop.f32.mrb[0].mxu0
      %3001 = vmatprep.mubr.bf16.mxu0 0
      %3002 = vmatmul.mubr.bf16.gmra.mrb[0].mxu0 %v2939
      %v3003 = vpop.f32.mrb[0].mxu0
      %v3004 = vadd.f32 0.0, %v3003
      %v3005 = vpop.f32.mrb[0].mxu0
      %v3006 = vpop.f32.mrb[0].mxu0
      %v3007 = vadd.f32 0.0, %v3006
      %v3008 = vpop.f32.mrb[0].mxu0
      %3009 = vdwg.mxu0
      %v3010 = vld [vmem:[%s8] sm:$0x1]
      %v3012 = vlaneseq
      %v3013 = vshrl.u32 %v3012, 7
      %v3014 = vsub.s32 0, %v3013
      %v3015 = vrot.slane %v3010, %v3014
      %v3017 = vmul.f32 %v2980, %v3015
      %v3018 = vmul.f32 %v2983, %v3015
      %v3019 = vmul.f32 %v2988, %v3015
      %v3020 = vmul.f32 %v2991, %v3015
      %v3021 = vmul.f32 %v2996, %v3015
      %v3022 = vmul.f32 %v2999, %v3015
      %v3023 = vmul.f32 %v3004, %v3015
      %v3024 = vmul.f32 %v3007, %v3015
      %v3025 = vld [vmem:[%s9] sm:$0x1]
      %v3027 = vlaneseq
      %v3028 = vshrl.u32 %v3027, 7
      %v3029 = vsub.s32 0, %v3028
      %v3030 = vrot.slane %v3025, %v3029
      %v3032 = vadd.f32 %v3017, %v3030
      %v3033 = vadd.f32 %v3018, %v3030
      %v3034 = vadd.f32 %v3019, %v3030
      %v3035 = vadd.f32 %v3020, %v3030
      %v3036 = vadd.f32 %v3021, %v3030
      %v3037 = vadd.f32 %v3022, %v3030
      %v3038 = vadd.f32 %v3023, %v3030
      %v3039 = vadd.f32 %v3024, %v3030
      %v3040 = vadd.f32 %v3032, %v1962
      %v3041 = vadd.f32 %v3033, %v1963
      %v3042 = vadd.f32 %v3034, %v1964
      %v3043 = vadd.f32 %v3035, %v1965
      %v3044 = vadd.f32 %v3036, %v1966
      %v3045 = vadd.f32 %v3037, %v1967
      %v3046 = vadd.f32 %v3038, %v1968
      %v3047 = vadd.f32 %v3039, %v1969
      %v3048 = vmax.f32 %v3040, 0.0
      %v3049 = vmax.f32 %v3041, 0.0
      %v3050 = vmax.f32 %v3042, 0.0
      %v3051 = vmax.f32 %v3043, 0.0
      %v3052 = vmax.f32 %v3044, 0.0
      %v3053 = vmax.f32 %v3045, 0.0
      %v3054 = vmax.f32 %v3046, 0.0
      %v3055 = vmax.f32 %v3047, 0.0
      %v3056 = vpack.c.bf16 %v3048, %v3048
      %v3057 = vpack.c.bf16 %v3049, %v3049
      %v3058 = vpack.c.bf16 %v3050, %v3050
      %v3059 = vpack.c.bf16 %v3051, %v3051
      %v3060 = vpack.c.bf16 %v3052, %v3052
      %v3061 = vpack.c.bf16 %v3053, %v3053
      %v3062 = vpack.c.bf16 %v3054, %v3054
      %v3063 = vpack.c.bf16 %v3055, %v3055
      %3064 = vst.msk [vmem:[%s386] sm:$0xf] %vm1978, %v3056
      %3065 = vst.msk [vmem:[%s386 + $0x4] sm:$0xf] %vm1978, %v3057
      %3066 = vst.msk [vmem:[%s386 + $0x8] sm:$0xf] %vm1978, %v3058
      %3067 = vst.msk [vmem:[%s386 + $0xc] sm:$0xf] %vm1978, %v3059
      %3068 = vst.msk [vmem:[%s386 + $0x10] sm:$0xf] %vm1978, %v3060
      %3069 = vst.msk [vmem:[%s386 + $0x14] sm:$0xf] %vm1978, %v3061
      %3070 = vst.msk [vmem:[%s386 + $0x18] sm:$0xf] %vm1978, %v3062
      %3071 = vst.msk [vmem:[%s386 + $0x1c] sm:$0xf] %vm1978, %v3063
      %s3072 = smul.u32 8, %s26
      %p3073 = scmp.lt.s32.totalorder %s25, 1
      %s3074 = scalar_select %p3073, %s25, 1
      %p3075 = scmp.lt.s32.totalorder %s3072, 7
      %s3076 = scalar_select %p3075, %s3072, 7
      %s3077 = smul.addr %s3074, 8
      %s3078 = sadd.s32 %s3076, %s3077
      %s3079 = smul.addr %s3078, 4
      %s3080 = scalar_lea.vmem %s10, %s3079
      // Predicated region
      $region65: #{res_block_forward.1} parent=59 // pred_check
        %p3081 = pneg %p268
      $region66: #{res_block_forward.1} parent=59 // pred_check_branch
        %3083 = sbr.rel (%p3081) target = $region68
      $region67: #{res_block_forward.1} parent=59 // pred_region
        %s3084 = smul.u32 8, %s26
      $region68: #{res_block_forward.1} parent=59 // pred_fallthru
        _
    $region60: #{res_block_forward.1} parent=5 // pred_fallthru
      _
    %p3085 = scmp.le.s32.totalorder 2, %s16
    // Predicated region
    $region69: #{res_block_forward.1} parent=5 // pred_check
      %p3086 = pneg %p3085
    $region70: #{res_block_forward.1} parent=5 // pred_check_branch
      %3088 = sbr.rel (%p3086) target = $region72
    $region71: #{res_block_forward.1} parent=5 // pred_region
      %s3089 = ssub.s32 %s16, 2
      // Predicated region
      $region73: #{res_block_forward.1} parent=71 // pred_check
        %p3090 = pneg %p274
      $region74: #{res_block_forward.1} parent=71 // pred_check_branch
        %3092 = sbr.rel (%p3090) target = $region76
      $region75: #{res_block_forward.1} parent=71 // pred_region
        %s3093 = smul.u32 8, %s28
        %p3094 = scmp.lt.s32.totalorder %s27, 1
        %s3095 = scalar_select %p3094, %s27, 1
        %p3096 = scmp.lt.s32.totalorder %s3093, 7
        %s3097 = scalar_select %p3096, %s3093, 7
        %s3098 = smul.addr %s3095, 8
        %s3099 = sadd.s32 %s3097, %s3098
        %s3100 = smul.addr %s3099, 4
        %s3101 = scalar_lea.vmem %s10, %s3100
      $region76: #{res_block_forward.1} parent=71 // pred_fallthru
        _
    $region72: #{res_block_forward.1} parent=5 // pred_fallthru
      _
  $region6: #{res_block_forward.1} parent=0 // loop_footer
    %s20 = sadd.s32 1, %s16
  $region7: #{res_block_forward.1} parent=0 // loop_footer_branch
    %15 = sbr.rel target = $region3
  $region8: #{res_block_forward.1} parent=0 // loop_exit
    _

</llo_original>
